<compile_context>
chip_gen: v6e
topology: v6e:2x2x1
jax: 0.10.0
libtpu: 0.0.40
codegen_flags: <defaults>
</compile_context>

<pallas_src>
from functools import partial

import jax
import jax.numpy as jnp
from jax.experimental import pallas as pl
from jax.experimental.pallas import tpu as pltpu

HIDDEN = 32        # LSTM hidden size (also the chunk / sequence length)
FC_DIM = 128       # fc_01 / fc_02 width (== 4*HIDDEN, so every slab row is 128 lanes)
NUM_CLASSES = 1    # fc_out width

# Row indices inside the packed (8, 128) "vectors" slab.
_ROW_WIH, _ROW_BG, _ROW_B1, _ROW_B2, _ROW_WOUT, _ROW_BOUT = range(6)


def lstm_wp_kernel(x_ref, vec_ref, mat_ref, o_ref, *, seq_len, hidden):
    """Whole forward pass for one (seq_len,) chunk, entirely in VMEM/vregs."""
    H = hidden

    # ---- unpack the two packed slabs (static, 8-aligned ref slices) --------
    wih = vec_ref[_ROW_WIH:_ROW_WIH + 1, :]        # (1, 4H)  pre-scaled W_ih^T
    b_g = vec_ref[_ROW_BG:_ROW_BG + 1, :]          # (1, 4H)  pre-scaled b_ih+b_hh
    b1 = vec_ref[_ROW_B1:_ROW_B1 + 1, :]           # (1, 128)
    b2 = vec_ref[_ROW_B2:_ROW_B2 + 1, :]           # (1, 128)
    w_out = vec_ref[_ROW_WOUT:_ROW_WOUT + 1, :]    # (1, 128)
    bout_row = vec_ref[_ROW_BOUT:_ROW_BOUT + 1, :]  # (1, 128): b_out at lane 0, rest 0

    whh = mat_ref[0:H, :]                          # (H, 4H)  pre-scaled W_hh^T
    w1 = mat_ref[H:2 * H, :]                       # (H, 128) fc_01 weight^T
    w2 = mat_ref[2 * H:2 * H + FC_DIM, :]          # (128, 128) fc_02 weight^T

    # ---- input-to-gate contributions for every timestep at once -----------
    # (T,1)*(1,4H) outer product on the VPU (K == 1, the MXU would be wasted).
    x_col = jnp.transpose(x_ref[...])              # (T, 1); one-off transpose
    gx = x_col * wih + b_g                         # (T, 4H) kept in vregs

    h = jnp.zeros((1, H), jnp.float32)
    c = jnp.zeros((1, H), jnp.float32)

    # ---- fully unrolled serial recurrence (seq_len is a static Python int) -
    for t in range(seq_len):
        # h @ W_hh^T as a VPU/XLU matvec: small lane->sublane transpose of the
        # 32-value state, lane-broadcast against whh's 4 vregs, cross-sublane
        # reduce.  Keeps the serial chain off the MXU (no fill/drain x32).
        h_col = jnp.transpose(h)                                    # (H, 1)
        z = gx[t:t + 1, :] + jnp.sum(h_col * whh, axis=0, keepdims=True)  # (1,4H)

        # One wide EUP tanh; i/f/o columns were pre-scaled by 0.5 host-side so
        # p == sigmoid there; the g gate is recovered as 2*p - 1 == tanh(z_g).
        p = 0.5 * jnp.tanh(z) + 0.5
        i_g = p[:, 0:H]
        f_g = p[:, H:2 * H]
        g_g = 2.0 * p[:, 2 * H:3 * H] - 1.0
        o_g = p[:, 3 * H:4 * H]

        c = f_g * c + i_g * g_g
        h = o_g * jnp.tanh(c)

    # ---- MLP head (one-off; MXU matmuls are fine off the serial chain) ----
    # Dropout(0.2) is identity in eval mode.
    y = jnp.dot(h, w1, preferred_element_type=jnp.float32) + b1
    y = jnp.maximum(y, 0.0)
    y = jnp.dot(y, w2, preferred_element_type=jnp.float32) + b2
    y = jnp.maximum(y, 0.0)
    # fc_out: 128-MAC matvec -> VPU multiply + lane reduce; b_out (lane 0 of
    # bout_row, zeros elsewhere) is folded into the same reduce.
    o_ref[...] = jnp.sum(y * w_out + bout_row, axis=-1, keepdims=True)


def init_params(key):
    """Deterministic synthetic parameters with PyTorch-default shapes."""
    ks = jax.random.split(key, 10)
    H, F, C = HIDDEN, FC_DIM, NUM_CLASSES
    s_lstm = 1.0 / jnp.sqrt(jnp.float32(H))
    s_fc1 = 1.0 / jnp.sqrt(jnp.float32(H))
    s_fc2 = 1.0 / jnp.sqrt(jnp.float32(F))
    u = lambda k, shape, s: jax.random.uniform(k, shape, jnp.float32, -s, s)
    return {
        "w_ih": u(ks[0], (4 * H, 1), s_lstm),   # weight_ih_l0
        "w_hh": u(ks[1], (4 * H, H), s_lstm),   # weight_hh_l0
        "b_ih": u(ks[2], (4 * H,), s_lstm),
        "b_hh": u(ks[3], (4 * H,), s_lstm),
        "w1":   u(ks[4], (F, H), s_fc1),        # fc_01
        "b1":   u(ks[5], (F,), s_fc1),
        "w2":   u(ks[6], (F, F), s_fc2),        # fc_02
        "b2":   u(ks[7], (F,), s_fc2),
        "w_out": u(ks[8], (C, F), s_fc2),       # fc_out
        "b_out": u(ks[9], (C,), s_fc2),
    }


def prepare_params(params):
    """One-time host-side packing of all weights into two lane-dense slabs.

    Hoisted out of the per-call path (review item): gate-scale fold,
    transposes, bias fusion and slab packing happen exactly once.
    """
    H, F = HIDDEN, FC_DIM
    # Fold the 0.5 sigmoid-via-tanh pre-scale into the i/f/o gate columns
    # (PyTorch gate order along 4H is [i, f, g, o]; g keeps scale 1.0).
    gate_scale = jnp.concatenate([
        jnp.full((H,), 0.5, jnp.float32),    # i
        jnp.full((H,), 0.5, jnp.float32),    # f
        jnp.ones((H,), jnp.float32),         # g
        jnp.full((H,), 0.5, jnp.float32),    # o
    ])
    wih_row = (params["w_ih"].T * gate_scale[None, :]).astype(jnp.float32)   # (1,4H)
    b_row = ((params["b_ih"] + params["b_hh"]) * gate_scale).reshape(1, 4 * H)
    b1 = params["b1"].reshape(1, F).astype(jnp.float32)
    b2 = params["b2"].reshape(1, F).astype(jnp.float32)
    wout_row = params["w_out"].reshape(1, F).astype(jnp.float32)
    bout_row = jnp.zeros((1, F), jnp.float32).at[0, 0].set(params["b_out"][0])

    # (8, 128) vectors slab: [wih, b_g, b1, b2, w_out, b_out, pad, pad]
    vecs = jnp.concatenate(
        [wih_row, b_row, b1, b2, wout_row, bout_row,
         jnp.zeros((2, F), jnp.float32)], axis=0)

    whh = (params["w_hh"].T * gate_scale[None, :]).astype(jnp.float32)       # (H,4H)
    w1_t = params["w1"].T.astype(jnp.float32)                                # (H,F)
    w2_t = params["w2"].T.astype(jnp.float32)                                # (F,F)
    # (192, 128) matrices slab: [W_hh^T ; fc_01^T ; fc_02^T]
    mats = jnp.concatenate([whh, w1_t, w2_t], axis=0)
    return {"vecs": vecs, "mats": mats}


def lstm_wp_forward(x, prep):
    """Per-call path: flatten x like torch.reshape(-1, 1), take the last split
    chunk (the only one affecting outputs[-1, :]) and run the fused kernel."""
    flat = x.reshape(-1).astype(jnp.float32)
    n = flat.shape[0]
    rem = n % HIDDEN
    seq_len = HIDDEN if rem == 0 else rem
    x_row = flat[n - seq_len:].reshape(1, seq_len)    # lane-dense per-call input

    kernel = partial(lstm_wp_kernel, seq_len=seq_len, hidden=HIDDEN)
    vmem = pl.BlockSpec(memory_space=pltpu.MemorySpace.VMEM)
    out = pl.pallas_call(
        kernel,
        out_shape=jax.ShapeDtypeStruct((1, NUM_CLASSES), jnp.float32),
        in_specs=[vmem, vmem, vmem],
        out_specs=vmem,
    )(x_row, prep["vecs"], prep["mats"])
    return out.reshape(NUM_CLASSES)   # matches torch output shape (num_classes,)


def lstm_wp_reference(x, params):
    """Pure-JAX reference (straightforward formulation) for self-check."""
    H = HIDDEN
    flat = x.reshape(-1).astype(jnp.float32)
    n = flat.shape[0]
    rem = n % H
    seq_len = H if rem == 0 else rem
    xs = flat[n - seq_len:]
    w_ih = params["w_ih"][:, 0]
    w_hh = params["w_hh"]
    b = params["b_ih"] + params["b_hh"]

    def step(carry, x_t):
        h, c = carry
        z = w_ih * x_t + b + w_hh @ h
        i = jax.nn.sigmoid(z[0:H]); f = jax.nn.sigmoid(z[H:2 * H])
        g = jnp.tanh(z[2 * H:3 * H]); o = jax.nn.sigmoid(z[3 * H:4 * H])
        c = f * c + i * g
        h = o * jnp.tanh(c)
        return (h, c), None

    (h, _), _ = jax.lax.scan(step, (jnp.zeros(H), jnp.zeros(H)), xs)
    y = jnp.maximum(params["w1"] @ h + params["b1"], 0.0)
    y = jnp.maximum(params["w2"] @ y + params["b2"], 0.0)
    return params["w_out"] @ y + params["b_out"]


if __name__ == "__main__":
    key = jax.random.PRNGKey(0)
    k_param, k_x = jax.random.split(key)
    params = init_params(k_param)
    prep = prepare_params(params)          # one-time weight packing (hoisted)

    # Small input; N = 2*4*16*16 = 2048 elements -> 64 chunks of 32.
    x = jax.random.normal(k_x, (2, 4, 16, 16), dtype=jnp.float32)

    y = jax.jit(lstm_wp_forward)(x, prep)
    jax.block_until_ready(y)
    assert y.shape == (NUM_CLASSES,)

    y_ref = lstm_wp_reference(x, params)
    max_err = float(jnp.max(jnp.abs(y - y_ref)))
    assert max_err < 2e-3, f"kernel/reference mismatch: {max_err}"

    print("KERNEL_OK")
</pallas_src>

<mosaic_0001>
module attributes {stable_mosaic.version = 11 : i64} {
  func.func @lstm_wp_kernel(%arg0: memref<1x32xf32, #tpu.memory_space<vmem>>, %arg1: memref<8x128xf32, #tpu.memory_space<vmem>>, %arg2: memref<192x128xf32, #tpu.memory_space<vmem>>, %arg3: memref<1x1xf32, #tpu.memory_space<vmem>>) attributes {dimension_semantics = [], scalar_prefetch = 0 : i64, scratch_operands = 0 : i64, tpu.core_type = #tpu.core_type<tc>} {
    %c0 = arith.constant 0 : index
    %c0_0 = arith.constant 0 : index
    %0 = vector.load %arg1[%c0, %c0_0] : memref<8x128xf32, #tpu.memory_space<vmem>>, vector<1x128xf32>
    %c1 = arith.constant 1 : index
    %c0_1 = arith.constant 0 : index
    %1 = vector.load %arg1[%c1, %c0_1] : memref<8x128xf32, #tpu.memory_space<vmem>>, vector<1x128xf32>
    %c2 = arith.constant 2 : index
    %c0_2 = arith.constant 0 : index
    %2 = vector.load %arg1[%c2, %c0_2] : memref<8x128xf32, #tpu.memory_space<vmem>>, vector<1x128xf32>
    %c3 = arith.constant 3 : index
    %c0_3 = arith.constant 0 : index
    %3 = vector.load %arg1[%c3, %c0_3] : memref<8x128xf32, #tpu.memory_space<vmem>>, vector<1x128xf32>
    %c4 = arith.constant 4 : index
    %c0_4 = arith.constant 0 : index
    %4 = vector.load %arg1[%c4, %c0_4] : memref<8x128xf32, #tpu.memory_space<vmem>>, vector<1x128xf32>
    %c5 = arith.constant 5 : index
    %c0_5 = arith.constant 0 : index
    %5 = vector.load %arg1[%c5, %c0_5] : memref<8x128xf32, #tpu.memory_space<vmem>>, vector<1x128xf32>
    %c0_6 = arith.constant 0 : index
    %c0_7 = arith.constant 0 : index
    %6 = vector.load %arg2[%c0_6, %c0_7] : memref<192x128xf32, #tpu.memory_space<vmem>>, vector<32x128xf32>
    %c32 = arith.constant 32 : index
    %c0_8 = arith.constant 0 : index
    %7 = vector.load %arg2[%c32, %c0_8] : memref<192x128xf32, #tpu.memory_space<vmem>>, vector<32x128xf32>
    %c64 = arith.constant 64 : index
    %c0_9 = arith.constant 0 : index
    %8 = vector.load %arg2[%c64, %c0_9] : memref<192x128xf32, #tpu.memory_space<vmem>>, vector<128x128xf32>
    %c0_10 = arith.constant 0 : index
    %c0_11 = arith.constant 0 : index
    %9 = vector.load %arg0[%c0_10, %c0_11] : memref<1x32xf32, #tpu.memory_space<vmem>>, vector<1x32xf32>
    %10 = tpu.transpose %9, [1, 0] : vector<1x32xf32> -> vector<32x1xf32>
    %11 = vector.broadcast %10 : vector<32x1xf32> to vector<32x128xf32>
    %12 = vector.broadcast %0 : vector<1x128xf32> to vector<32x128xf32>
    %13 = arith.mulf %11, %12 : vector<32x128xf32>
    %14 = vector.broadcast %1 : vector<1x128xf32> to vector<32x128xf32>
    %15 = arith.addf %13, %14 : vector<32x128xf32>
    %cst = arith.constant 0.000000e+00 : f32
    %16 = vector.broadcast %cst : f32 to vector<1x32xf32>
    %cst_12 = arith.constant 0.000000e+00 : f32
    %17 = vector.broadcast %cst_12 : f32 to vector<1x32xf32>
    %18 = tpu.transpose %16, [1, 0] : vector<1x32xf32> -> vector<32x1xf32>
    %19 = vector.extract_strided_slice %15 {offsets = [0, 0], sizes = [1, 128], strides = [1, 1]} : vector<32x128xf32> to vector<1x128xf32>
    %20 = vector.broadcast %18 : vector<32x1xf32> to vector<32x128xf32>
    %21 = arith.mulf %20, %6 : vector<32x128xf32>
    %cst_13 = arith.constant dense<0.000000e+00> : vector<128xf32>
    %22 = vector.multi_reduction <add>, %21, %cst_13 [0] : vector<32x128xf32> to vector<128xf32>
    %23 = vector.shape_cast %22 : vector<128xf32> to vector<1x128xf32>
    %24 = arith.addf %19, %23 : vector<1x128xf32>
    %25 = math.tanh %24 : vector<1x128xf32>
    %cst_14 = arith.constant 5.000000e-01 : f32
    %26 = vector.broadcast %cst_14 : f32 to vector<1x128xf32>
    %27 = arith.mulf %26, %25 : vector<1x128xf32>
    %cst_15 = arith.constant 5.000000e-01 : f32
    %28 = vector.broadcast %cst_15 : f32 to vector<1x128xf32>
    %29 = arith.addf %27, %28 : vector<1x128xf32>
    %30 = vector.extract_strided_slice %29 {offsets = [0, 0], sizes = [1, 32], strides = [1, 1]} : vector<1x128xf32> to vector<1x32xf32>
    %31 = vector.extract_strided_slice %29 {offsets = [0, 32], sizes = [1, 32], strides = [1, 1]} : vector<1x128xf32> to vector<1x32xf32>
    %32 = vector.extract_strided_slice %29 {offsets = [0, 64], sizes = [1, 32], strides = [1, 1]} : vector<1x128xf32> to vector<1x32xf32>
    %cst_16 = arith.constant 2.000000e+00 : f32
    %33 = vector.broadcast %cst_16 : f32 to vector<1x32xf32>
    %34 = arith.mulf %33, %32 : vector<1x32xf32>
    %cst_17 = arith.constant 1.000000e+00 : f32
    %35 = vector.broadcast %cst_17 : f32 to vector<1x32xf32>
    %36 = arith.subf %34, %35 : vector<1x32xf32>
    %37 = vector.extract_strided_slice %29 {offsets = [0, 96], sizes = [1, 32], strides = [1, 1]} : vector<1x128xf32> to vector<1x32xf32>
    %38 = arith.mulf %31, %17 : vector<1x32xf32>
    %39 = arith.mulf %30, %36 : vector<1x32xf32>
    %40 = arith.addf %38, %39 : vector<1x32xf32>
    %41 = math.tanh %40 : vector<1x32xf32>
    %42 = arith.mulf %37, %41 : vector<1x32xf32>
    %43 = tpu.transpose %42, [1, 0] : vector<1x32xf32> -> vector<32x1xf32>
    %44 = vector.extract_strided_slice %15 {offsets = [1, 0], sizes = [1, 128], strides = [1, 1]} : vector<32x128xf32> to vector<1x128xf32>
    %45 = vector.broadcast %43 : vector<32x1xf32> to vector<32x128xf32>
    %46 = arith.mulf %45, %6 : vector<32x128xf32>
    %cst_18 = arith.constant dense<0.000000e+00> : vector<128xf32>
    %47 = vector.multi_reduction <add>, %46, %cst_18 [0] : vector<32x128xf32> to vector<128xf32>
    %48 = vector.shape_cast %47 : vector<128xf32> to vector<1x128xf32>
    %49 = arith.addf %44, %48 : vector<1x128xf32>
    %50 = math.tanh %49 : vector<1x128xf32>
    %cst_19 = arith.constant 5.000000e-01 : f32
    %51 = vector.broadcast %cst_19 : f32 to vector<1x128xf32>
    %52 = arith.mulf %51, %50 : vector<1x128xf32>
    %cst_20 = arith.constant 5.000000e-01 : f32
    %53 = vector.broadcast %cst_20 : f32 to vector<1x128xf32>
    %54 = arith.addf %52, %53 : vector<1x128xf32>
    %55 = vector.extract_strided_slice %54 {offsets = [0, 0], sizes = [1, 32], strides = [1, 1]} : vector<1x128xf32> to vector<1x32xf32>
    %56 = vector.extract_strided_slice %54 {offsets = [0, 32], sizes = [1, 32], strides = [1, 1]} : vector<1x128xf32> to vector<1x32xf32>
    %57 = vector.extract_strided_slice %54 {offsets = [0, 64], sizes = [1, 32], strides = [1, 1]} : vector<1x128xf32> to vector<1x32xf32>
    %cst_21 = arith.constant 2.000000e+00 : f32
    %58 = vector.broadcast %cst_21 : f32 to vector<1x32xf32>
    %59 = arith.mulf %58, %57 : vector<1x32xf32>
    %cst_22 = arith.constant 1.000000e+00 : f32
    %60 = vector.broadcast %cst_22 : f32 to vector<1x32xf32>
    %61 = arith.subf %59, %60 : vector<1x32xf32>
    %62 = vector.extract_strided_slice %54 {offsets = [0, 96], sizes = [1, 32], strides = [1, 1]} : vector<1x128xf32> to vector<1x32xf32>
    %63 = arith.mulf %56, %40 : vector<1x32xf32>
    %64 = arith.mulf %55, %61 : vector<1x32xf32>
    %65 = arith.addf %63, %64 : vector<1x32xf32>
    %66 = math.tanh %65 : vector<1x32xf32>
    %67 = arith.mulf %62, %66 : vector<1x32xf32>
    %68 = tpu.transpose %67, [1, 0] : vector<1x32xf32> -> vector<32x1xf32>
    %69 = vector.extract_strided_slice %15 {offsets = [2, 0], sizes = [1, 128], strides = [1, 1]} : vector<32x128xf32> to vector<1x128xf32>
    %70 = vector.broadcast %68 : vector<32x1xf32> to vector<32x128xf32>
    %71 = arith.mulf %70, %6 : vector<32x128xf32>
    %cst_23 = arith.constant dense<0.000000e+00> : vector<128xf32>
    %72 = vector.multi_reduction <add>, %71, %cst_23 [0] : vector<32x128xf32> to vector<128xf32>
    %73 = vector.shape_cast %72 : vector<128xf32> to vector<1x128xf32>
    %74 = arith.addf %69, %73 : vector<1x128xf32>
    %75 = math.tanh %74 : vector<1x128xf32>
    %cst_24 = arith.constant 5.000000e-01 : f32
    %76 = vector.broadcast %cst_24 : f32 to vector<1x128xf32>
    %77 = arith.mulf %76, %75 : vector<1x128xf32>
    %cst_25 = arith.constant 5.000000e-01 : f32
    %78 = vector.broadcast %cst_25 : f32 to vector<1x128xf32>
    %79 = arith.addf %77, %78 : vector<1x128xf32>
    %80 = vector.extract_strided_slice %79 {offsets = [0, 0], sizes = [1, 32], strides = [1, 1]} : vector<1x128xf32> to vector<1x32xf32>
    %81 = vector.extract_strided_slice %79 {offsets = [0, 32], sizes = [1, 32], strides = [1, 1]} : vector<1x128xf32> to vector<1x32xf32>
    %82 = vector.extract_strided_slice %79 {offsets = [0, 64], sizes = [1, 32], strides = [1, 1]} : vector<1x128xf32> to vector<1x32xf32>
    %cst_26 = arith.constant 2.000000e+00 : f32
    %83 = vector.broadcast %cst_26 : f32 to vector<1x32xf32>
    %84 = arith.mulf %83, %82 : vector<1x32xf32>
    %cst_27 = arith.constant 1.000000e+00 : f32
    %85 = vector.broadcast %cst_27 : f32 to vector<1x32xf32>
    %86 = arith.subf %84, %85 : vector<1x32xf32>
    %87 = vector.extract_strided_slice %79 {offsets = [0, 96], sizes = [1, 32], strides = [1, 1]} : vector<1x128xf32> to vector<1x32xf32>
    %88 = arith.mulf %81, %65 : vector<1x32xf32>
    %89 = arith.mulf %80, %86 : vector<1x32xf32>
    %90 = arith.addf %88, %89 : vector<1x32xf32>
    %91 = math.tanh %90 : vector<1x32xf32>
    %92 = arith.mulf %87, %91 : vector<1x32xf32>
    %93 = tpu.transpose %92, [1, 0] : vector<1x32xf32> -> vector<32x1xf32>
    %94 = vector.extract_strided_slice %15 {offsets = [3, 0], sizes = [1, 128], strides = [1, 1]} : vector<32x128xf32> to vector<1x128xf32>
    %95 = vector.broadcast %93 : vector<32x1xf32> to vector<32x128xf32>
    %96 = arith.mulf %95, %6 : vector<32x128xf32>
    %cst_28 = arith.constant dense<0.000000e+00> : vector<128xf32>
    %97 = vector.multi_reduction <add>, %96, %cst_28 [0] : vector<32x128xf32> to vector<128xf32>
    %98 = vector.shape_cast %97 : vector<128xf32> to vector<1x128xf32>
    %99 = arith.addf %94, %98 : vector<1x128xf32>
    %100 = math.tanh %99 : vector<1x128xf32>
    %cst_29 = arith.constant 5.000000e-01 : f32
    %101 = vector.broadcast %cst_29 : f32 to vector<1x128xf32>
    %102 = arith.mulf %101, %100 : vector<1x128xf32>
    %cst_30 = arith.constant 5.000000e-01 : f32
    %103 = vector.broadcast %cst_30 : f32 to vector<1x128xf32>
    %104 = arith.addf %102, %103 : vector<1x128xf32>
    %105 = vector.extract_strided_slice %104 {offsets = [0, 0], sizes = [1, 32], strides = [1, 1]} : vector<1x128xf32> to vector<1x32xf32>
    %106 = vector.extract_strided_slice %104 {offsets = [0, 32], sizes = [1, 32], strides = [1, 1]} : vector<1x128xf32> to vector<1x32xf32>
    %107 = vector.extract_strided_slice %104 {offsets = [0, 64], sizes = [1, 32], strides = [1, 1]} : vector<1x128xf32> to vector<1x32xf32>
    %cst_31 = arith.constant 2.000000e+00 : f32
    %108 = vector.broadcast %cst_31 : f32 to vector<1x32xf32>
    %109 = arith.mulf %108, %107 : vector<1x32xf32>
    %cst_32 = arith.constant 1.000000e+00 : f32
    %110 = vector.broadcast %cst_32 : f32 to vector<1x32xf32>
    %111 = arith.subf %109, %110 : vector<1x32xf32>
    %112 = vector.extract_strided_slice %104 {offsets = [0, 96], sizes = [1, 32], strides = [1, 1]} : vector<1x128xf32> to vector<1x32xf32>
    %113 = arith.mulf %106, %90 : vector<1x32xf32>
    %114 = arith.mulf %105, %111 : vector<1x32xf32>
    %115 = arith.addf %113, %114 : vector<1x32xf32>
    %116 = math.tanh %115 : vector<1x32xf32>
    %117 = arith.mulf %112, %116 : vector<1x32xf32>
    %118 = tpu.transpose %117, [1, 0] : vector<1x32xf32> -> vector<32x1xf32>
    %119 = vector.extract_strided_slice %15 {offsets = [4, 0], sizes = [1, 128], strides = [1, 1]} : vector<32x128xf32> to vector<1x128xf32>
    %120 = vector.broadcast %118 : vector<32x1xf32> to vector<32x128xf32>
    %121 = arith.mulf %120, %6 : vector<32x128xf32>
    %cst_33 = arith.constant dense<0.000000e+00> : vector<128xf32>
    %122 = vector.multi_reduction <add>, %121, %cst_33 [0] : vector<32x128xf32> to vector<128xf32>
    %123 = vector.shape_cast %122 : vector<128xf32> to vector<1x128xf32>
    %124 = arith.addf %119, %123 : vector<1x128xf32>
    %125 = math.tanh %124 : vector<1x128xf32>
    %cst_34 = arith.constant 5.000000e-01 : f32
    %126 = vector.broadcast %cst_34 : f32 to vector<1x128xf32>
    %127 = arith.mulf %126, %125 : vector<1x128xf32>
    %cst_35 = arith.constant 5.000000e-01 : f32
    %128 = vector.broadcast %cst_35 : f32 to vector<1x128xf32>
    %129 = arith.addf %127, %128 : vector<1x128xf32>
    %130 = vector.extract_strided_slice %129 {offsets = [0, 0], sizes = [1, 32], strides = [1, 1]} : vector<1x128xf32> to vector<1x32xf32>
    %131 = vector.extract_strided_slice %129 {offsets = [0, 32], sizes = [1, 32], strides = [1, 1]} : vector<1x128xf32> to vector<1x32xf32>
    %132 = vector.extract_strided_slice %129 {offsets = [0, 64], sizes = [1, 32], strides = [1, 1]} : vector<1x128xf32> to vector<1x32xf32>
    %cst_36 = arith.constant 2.000000e+00 : f32
    %133 = vector.broadcast %cst_36 : f32 to vector<1x32xf32>
    %134 = arith.mulf %133, %132 : vector<1x32xf32>
    %cst_37 = arith.constant 1.000000e+00 : f32
    %135 = vector.broadcast %cst_37 : f32 to vector<1x32xf32>
    %136 = arith.subf %134, %135 : vector<1x32xf32>
    %137 = vector.extract_strided_slice %129 {offsets = [0, 96], sizes = [1, 32], strides = [1, 1]} : vector<1x128xf32> to vector<1x32xf32>
    %138 = arith.mulf %131, %115 : vector<1x32xf32>
    %139 = arith.mulf %130, %136 : vector<1x32xf32>
    %140 = arith.addf %138, %139 : vector<1x32xf32>
    %141 = math.tanh %140 : vector<1x32xf32>
    %142 = arith.mulf %137, %141 : vector<1x32xf32>
    %143 = tpu.transpose %142, [1, 0] : vector<1x32xf32> -> vector<32x1xf32>
    %144 = vector.extract_strided_slice %15 {offsets = [5, 0], sizes = [1, 128], strides = [1, 1]} : vector<32x128xf32> to vector<1x128xf32>
    %145 = vector.broadcast %143 : vector<32x1xf32> to vector<32x128xf32>
    %146 = arith.mulf %145, %6 : vector<32x128xf32>
    %cst_38 = arith.constant dense<0.000000e+00> : vector<128xf32>
    %147 = vector.multi_reduction <add>, %146, %cst_38 [0] : vector<32x128xf32> to vector<128xf32>
    %148 = vector.shape_cast %147 : vector<128xf32> to vector<1x128xf32>
    %149 = arith.addf %144, %148 : vector<1x128xf32>
    %150 = math.tanh %149 : vector<1x128xf32>
    %cst_39 = arith.constant 5.000000e-01 : f32
    %151 = vector.broadcast %cst_39 : f32 to vector<1x128xf32>
    %152 = arith.mulf %151, %150 : vector<1x128xf32>
    %cst_40 = arith.constant 5.000000e-01 : f32
    %153 = vector.broadcast %cst_40 : f32 to vector<1x128xf32>
    %154 = arith.addf %152, %153 : vector<1x128xf32>
    %155 = vector.extract_strided_slice %154 {offsets = [0, 0], sizes = [1, 32], strides = [1, 1]} : vector<1x128xf32> to vector<1x32xf32>
    %156 = vector.extract_strided_slice %154 {offsets = [0, 32], sizes = [1, 32], strides = [1, 1]} : vector<1x128xf32> to vector<1x32xf32>
    %157 = vector.extract_strided_slice %154 {offsets = [0, 64], sizes = [1, 32], strides = [1, 1]} : vector<1x128xf32> to vector<1x32xf32>
    %cst_41 = arith.constant 2.000000e+00 : f32
    %158 = vector.broadcast %cst_41 : f32 to vector<1x32xf32>
    %159 = arith.mulf %158, %157 : vector<1x32xf32>
    %cst_42 = arith.constant 1.000000e+00 : f32
    %160 = vector.broadcast %cst_42 : f32 to vector<1x32xf32>
    %161 = arith.subf %159, %160 : vector<1x32xf32>
    %162 = vector.extract_strided_slice %154 {offsets = [0, 96], sizes = [1, 32], strides = [1, 1]} : vector<1x128xf32> to vector<1x32xf32>
    %163 = arith.mulf %156, %140 : vector<1x32xf32>
    %164 = arith.mulf %155, %161 : vector<1x32xf32>
    %165 = arith.addf %163, %164 : vector<1x32xf32>
    %166 = math.tanh %165 : vector<1x32xf32>
    %167 = arith.mulf %162, %166 : vector<1x32xf32>
    %168 = tpu.transpose %167, [1, 0] : vector<1x32xf32> -> vector<32x1xf32>
    %169 = vector.extract_strided_slice %15 {offsets = [6, 0], sizes = [1, 128], strides = [1, 1]} : vector<32x128xf32> to vector<1x128xf32>
    %170 = vector.broadcast %168 : vector<32x1xf32> to vector<32x128xf32>
    %171 = arith.mulf %170, %6 : vector<32x128xf32>
    %cst_43 = arith.constant dense<0.000000e+00> : vector<128xf32>
    %172 = vector.multi_reduction <add>, %171, %cst_43 [0] : vector<32x128xf32> to vector<128xf32>
    %173 = vector.shape_cast %172 : vector<128xf32> to vector<1x128xf32>
    %174 = arith.addf %169, %173 : vector<1x128xf32>
    %175 = math.tanh %174 : vector<1x128xf32>
    %cst_44 = arith.constant 5.000000e-01 : f32
    %176 = vector.broadcast %cst_44 : f32 to vector<1x128xf32>
    %177 = arith.mulf %176, %175 : vector<1x128xf32>
    %cst_45 = arith.constant 5.000000e-01 : f32
    %178 = vector.broadcast %cst_45 : f32 to vector<1x128xf32>
    %179 = arith.addf %177, %178 : vector<1x128xf32>
    %180 = vector.extract_strided_slice %179 {offsets = [0, 0], sizes = [1, 32], strides = [1, 1]} : vector<1x128xf32> to vector<1x32xf32>
    %181 = vector.extract_strided_slice %179 {offsets = [0, 32], sizes = [1, 32], strides = [1, 1]} : vector<1x128xf32> to vector<1x32xf32>
    %182 = vector.extract_strided_slice %179 {offsets = [0, 64], sizes = [1, 32], strides = [1, 1]} : vector<1x128xf32> to vector<1x32xf32>
    %cst_46 = arith.constant 2.000000e+00 : f32
    %183 = vector.broadcast %cst_46 : f32 to vector<1x32xf32>
    %184 = arith.mulf %183, %182 : vector<1x32xf32>
    %cst_47 = arith.constant 1.000000e+00 : f32
    %185 = vector.broadcast %cst_47 : f32 to vector<1x32xf32>
    %186 = arith.subf %184, %185 : vector<1x32xf32>
    %187 = vector.extract_strided_slice %179 {offsets = [0, 96], sizes = [1, 32], strides = [1, 1]} : vector<1x128xf32> to vector<1x32xf32>
    %188 = arith.mulf %181, %165 : vector<1x32xf32>
    %189 = arith.mulf %180, %186 : vector<1x32xf32>
    %190 = arith.addf %188, %189 : vector<1x32xf32>
    %191 = math.tanh %190 : vector<1x32xf32>
    %192 = arith.mulf %187, %191 : vector<1x32xf32>
    %193 = tpu.transpose %192, [1, 0] : vector<1x32xf32> -> vector<32x1xf32>
    %194 = vector.extract_strided_slice %15 {offsets = [7, 0], sizes = [1, 128], strides = [1, 1]} : vector<32x128xf32> to vector<1x128xf32>
    %195 = vector.broadcast %193 : vector<32x1xf32> to vector<32x128xf32>
    %196 = arith.mulf %195, %6 : vector<32x128xf32>
    %cst_48 = arith.constant dense<0.000000e+00> : vector<128xf32>
    %197 = vector.multi_reduction <add>, %196, %cst_48 [0] : vector<32x128xf32> to vector<128xf32>
    %198 = vector.shape_cast %197 : vector<128xf32> to vector<1x128xf32>
    %199 = arith.addf %194, %198 : vector<1x128xf32>
    %200 = math.tanh %199 : vector<1x128xf32>
    %cst_49 = arith.constant 5.000000e-01 : f32
    %201 = vector.broadcast %cst_49 : f32 to vector<1x128xf32>
    %202 = arith.mulf %201, %200 : vector<1x128xf32>
    %cst_50 = arith.constant 5.000000e-01 : f32
    %203 = vector.broadcast %cst_50 : f32 to vector<1x128xf32>
    %204 = arith.addf %202, %203 : vector<1x128xf32>
    %205 = vector.extract_strided_slice %204 {offsets = [0, 0], sizes = [1, 32], strides = [1, 1]} : vector<1x128xf32> to vector<1x32xf32>
    %206 = vector.extract_strided_slice %204 {offsets = [0, 32], sizes = [1, 32], strides = [1, 1]} : vector<1x128xf32> to vector<1x32xf32>
    %207 = vector.extract_strided_slice %204 {offsets = [0, 64], sizes = [1, 32], strides = [1, 1]} : vector<1x128xf32> to vector<1x32xf32>
    %cst_51 = arith.constant 2.000000e+00 : f32
    %208 = vector.broadcast %cst_51 : f32 to vector<1x32xf32>
    %209 = arith.mulf %208, %207 : vector<1x32xf32>
    %cst_52 = arith.constant 1.000000e+00 : f32
    %210 = vector.broadcast %cst_52 : f32 to vector<1x32xf32>
    %211 = arith.subf %209, %210 : vector<1x32xf32>
    %212 = vector.extract_strided_slice %204 {offsets = [0, 96], sizes = [1, 32], strides = [1, 1]} : vector<1x128xf32> to vector<1x32xf32>
    %213 = arith.mulf %206, %190 : vector<1x32xf32>
    %214 = arith.mulf %205, %211 : vector<1x32xf32>
    %215 = arith.addf %213, %214 : vector<1x32xf32>
    %216 = math.tanh %215 : vector<1x32xf32>
    %217 = arith.mulf %212, %216 : vector<1x32xf32>
    %218 = tpu.transpose %217, [1, 0] : vector<1x32xf32> -> vector<32x1xf32>
    %219 = vector.extract_strided_slice %15 {offsets = [8, 0], sizes = [1, 128], strides = [1, 1]} : vector<32x128xf32> to vector<1x128xf32>
    %220 = vector.broadcast %218 : vector<32x1xf32> to vector<32x128xf32>
    %221 = arith.mulf %220, %6 : vector<32x128xf32>
    %cst_53 = arith.constant dense<0.000000e+00> : vector<128xf32>
    %222 = vector.multi_reduction <add>, %221, %cst_53 [0] : vector<32x128xf32> to vector<128xf32>
    %223 = vector.shape_cast %222 : vector<128xf32> to vector<1x128xf32>
    %224 = arith.addf %219, %223 : vector<1x128xf32>
    %225 = math.tanh %224 : vector<1x128xf32>
    %cst_54 = arith.constant 5.000000e-01 : f32
    %226 = vector.broadcast %cst_54 : f32 to vector<1x128xf32>
    %227 = arith.mulf %226, %225 : vector<1x128xf32>
    %cst_55 = arith.constant 5.000000e-01 : f32
    %228 = vector.broadcast %cst_55 : f32 to vector<1x128xf32>
    %229 = arith.addf %227, %228 : vector<1x128xf32>
    %230 = vector.extract_strided_slice %229 {offsets = [0, 0], sizes = [1, 32], strides = [1, 1]} : vector<1x128xf32> to vector<1x32xf32>
    %231 = vector.extract_strided_slice %229 {offsets = [0, 32], sizes = [1, 32], strides = [1, 1]} : vector<1x128xf32> to vector<1x32xf32>
    %232 = vector.extract_strided_slice %229 {offsets = [0, 64], sizes = [1, 32], strides = [1, 1]} : vector<1x128xf32> to vector<1x32xf32>
    %cst_56 = arith.constant 2.000000e+00 : f32
    %233 = vector.broadcast %cst_56 : f32 to vector<1x32xf32>
    %234 = arith.mulf %233, %232 : vector<1x32xf32>
    %cst_57 = arith.constant 1.000000e+00 : f32
    %235 = vector.broadcast %cst_57 : f32 to vector<1x32xf32>
    %236 = arith.subf %234, %235 : vector<1x32xf32>
    %237 = vector.extract_strided_slice %229 {offsets = [0, 96], sizes = [1, 32], strides = [1, 1]} : vector<1x128xf32> to vector<1x32xf32>
    %238 = arith.mulf %231, %215 : vector<1x32xf32>
    %239 = arith.mulf %230, %236 : vector<1x32xf32>
    %240 = arith.addf %238, %239 : vector<1x32xf32>
    %241 = math.tanh %240 : vector<1x32xf32>
    %242 = arith.mulf %237, %241 : vector<1x32xf32>
    %243 = tpu.transpose %242, [1, 0] : vector<1x32xf32> -> vector<32x1xf32>
    %244 = vector.extract_strided_slice %15 {offsets = [9, 0], sizes = [1, 128], strides = [1, 1]} : vector<32x128xf32> to vector<1x128xf32>
    %245 = vector.broadcast %243 : vector<32x1xf32> to vector<32x128xf32>
    %246 = arith.mulf %245, %6 : vector<32x128xf32>
    %cst_58 = arith.constant dense<0.000000e+00> : vector<128xf32>
    %247 = vector.multi_reduction <add>, %246, %cst_58 [0] : vector<32x128xf32> to vector<128xf32>
    %248 = vector.shape_cast %247 : vector<128xf32> to vector<1x128xf32>
    %249 = arith.addf %244, %248 : vector<1x128xf32>
    %250 = math.tanh %249 : vector<1x128xf32>
    %cst_59 = arith.constant 5.000000e-01 : f32
    %251 = vector.broadcast %cst_59 : f32 to vector<1x128xf32>
    %252 = arith.mulf %251, %250 : vector<1x128xf32>
    %cst_60 = arith.constant 5.000000e-01 : f32
    %253 = vector.broadcast %cst_60 : f32 to vector<1x128xf32>
    %254 = arith.addf %252, %253 : vector<1x128xf32>
    %255 = vector.extract_strided_slice %254 {offsets = [0, 0], sizes = [1, 32], strides = [1, 1]} : vector<1x128xf32> to vector<1x32xf32>
    %256 = vector.extract_strided_slice %254 {offsets = [0, 32], sizes = [1, 32], strides = [1, 1]} : vector<1x128xf32> to vector<1x32xf32>
    %257 = vector.extract_strided_slice %254 {offsets = [0, 64], sizes = [1, 32], strides = [1, 1]} : vector<1x128xf32> to vector<1x32xf32>
    %cst_61 = arith.constant 2.000000e+00 : f32
    %258 = vector.broadcast %cst_61 : f32 to vector<1x32xf32>
    %259 = arith.mulf %258, %257 : vector<1x32xf32>
    %cst_62 = arith.constant 1.000000e+00 : f32
    %260 = vector.broadcast %cst_62 : f32 to vector<1x32xf32>
    %261 = arith.subf %259, %260 : vector<1x32xf32>
    %262 = vector.extract_strided_slice %254 {offsets = [0, 96], sizes = [1, 32], strides = [1, 1]} : vector<1x128xf32> to vector<1x32xf32>
    %263 = arith.mulf %256, %240 : vector<1x32xf32>
    %264 = arith.mulf %255, %261 : vector<1x32xf32>
    %265 = arith.addf %263, %264 : vector<1x32xf32>
    %266 = math.tanh %265 : vector<1x32xf32>
    %267 = arith.mulf %262, %266 : vector<1x32xf32>
    %268 = tpu.transpose %267, [1, 0] : vector<1x32xf32> -> vector<32x1xf32>
    %269 = vector.extract_strided_slice %15 {offsets = [10, 0], sizes = [1, 128], strides = [1, 1]} : vector<32x128xf32> to vector<1x128xf32>
    %270 = vector.broadcast %268 : vector<32x1xf32> to vector<32x128xf32>
    %271 = arith.mulf %270, %6 : vector<32x128xf32>
    %cst_63 = arith.constant dense<0.000000e+00> : vector<128xf32>
    %272 = vector.multi_reduction <add>, %271, %cst_63 [0] : vector<32x128xf32> to vector<128xf32>
    %273 = vector.shape_cast %272 : vector<128xf32> to vector<1x128xf32>
    %274 = arith.addf %269, %273 : vector<1x128xf32>
    %275 = math.tanh %274 : vector<1x128xf32>
    %cst_64 = arith.constant 5.000000e-01 : f32
    %276 = vector.broadcast %cst_64 : f32 to vector<1x128xf32>
    %277 = arith.mulf %276, %275 : vector<1x128xf32>
    %cst_65 = arith.constant 5.000000e-01 : f32
    %278 = vector.broadcast %cst_65 : f32 to vector<1x128xf32>
    %279 = arith.addf %277, %278 : vector<1x128xf32>
    %280 = vector.extract_strided_slice %279 {offsets = [0, 0], sizes = [1, 32], strides = [1, 1]} : vector<1x128xf32> to vector<1x32xf32>
    %281 = vector.extract_strided_slice %279 {offsets = [0, 32], sizes = [1, 32], strides = [1, 1]} : vector<1x128xf32> to vector<1x32xf32>
    %282 = vector.extract_strided_slice %279 {offsets = [0, 64], sizes = [1, 32], strides = [1, 1]} : vector<1x128xf32> to vector<1x32xf32>
    %cst_66 = arith.constant 2.000000e+00 : f32
    %283 = vector.broadcast %cst_66 : f32 to vector<1x32xf32>
    %284 = arith.mulf %283, %282 : vector<1x32xf32>
    %cst_67 = arith.constant 1.000000e+00 : f32
    %285 = vector.broadcast %cst_67 : f32 to vector<1x32xf32>
    %286 = arith.subf %284, %285 : vector<1x32xf32>
    %287 = vector.extract_strided_slice %279 {offsets = [0, 96], sizes = [1, 32], strides = [1, 1]} : vector<1x128xf32> to vector<1x32xf32>
    %288 = arith.mulf %281, %265 : vector<1x32xf32>
    %289 = arith.mulf %280, %286 : vector<1x32xf32>
    %290 = arith.addf %288, %289 : vector<1x32xf32>
    %291 = math.tanh %290 : vector<1x32xf32>
    %292 = arith.mulf %287, %291 : vector<1x32xf32>
    %293 = tpu.transpose %292, [1, 0] : vector<1x32xf32> -> vector<32x1xf32>
    %294 = vector.extract_strided_slice %15 {offsets = [11, 0], sizes = [1, 128], strides = [1, 1]} : vector<32x128xf32> to vector<1x128xf32>
    %295 = vector.broadcast %293 : vector<32x1xf32> to vector<32x128xf32>
    %296 = arith.mulf %295, %6 : vector<32x128xf32>
    %cst_68 = arith.constant dense<0.000000e+00> : vector<128xf32>
    %297 = vector.multi_reduction <add>, %296, %cst_68 [0] : vector<32x128xf32> to vector<128xf32>
    %298 = vector.shape_cast %297 : vector<128xf32> to vector<1x128xf32>
    %299 = arith.addf %294, %298 : vector<1x128xf32>
    %300 = math.tanh %299 : vector<1x128xf32>
    %cst_69 = arith.constant 5.000000e-01 : f32
    %301 = vector.broadcast %cst_69 : f32 to vector<1x128xf32>
    %302 = arith.mulf %301, %300 : vector<1x128xf32>
    %cst_70 = arith.constant 5.000000e-01 : f32
    %303 = vector.broadcast %cst_70 : f32 to vector<1x128xf32>
    %304 = arith.addf %302, %303 : vector<1x128xf32>
    %305 = vector.extract_strided_slice %304 {offsets = [0, 0], sizes = [1, 32], strides = [1, 1]} : vector<1x128xf32> to vector<1x32xf32>
    %306 = vector.extract_strided_slice %304 {offsets = [0, 32], sizes = [1, 32], strides = [1, 1]} : vector<1x128xf32> to vector<1x32xf32>
    %307 = vector.extract_strided_slice %304 {offsets = [0, 64], sizes = [1, 32], strides = [1, 1]} : vector<1x128xf32> to vector<1x32xf32>
    %cst_71 = arith.constant 2.000000e+00 : f32
    %308 = vector.broadcast %cst_71 : f32 to vector<1x32xf32>
    %309 = arith.mulf %308, %307 : vector<1x32xf32>
    %cst_72 = arith.constant 1.000000e+00 : f32
    %310 = vector.broadcast %cst_72 : f32 to vector<1x32xf32>
    %311 = arith.subf %309, %310 : vector<1x32xf32>
    %312 = vector.extract_strided_slice %304 {offsets = [0, 96], sizes = [1, 32], strides = [1, 1]} : vector<1x128xf32> to vector<1x32xf32>
    %313 = arith.mulf %306, %290 : vector<1x32xf32>
    %314 = arith.mulf %305, %311 : vector<1x32xf32>
    %315 = arith.addf %313, %314 : vector<1x32xf32>
    %316 = math.tanh %315 : vector<1x32xf32>
    %317 = arith.mulf %312, %316 : vector<1x32xf32>
    %318 = tpu.transpose %317, [1, 0] : vector<1x32xf32> -> vector<32x1xf32>
    %319 = vector.extract_strided_slice %15 {offsets = [12, 0], sizes = [1, 128], strides = [1, 1]} : vector<32x128xf32> to vector<1x128xf32>
    %320 = vector.broadcast %318 : vector<32x1xf32> to vector<32x128xf32>
    %321 = arith.mulf %320, %6 : vector<32x128xf32>
    %cst_73 = arith.constant dense<0.000000e+00> : vector<128xf32>
    %322 = vector.multi_reduction <add>, %321, %cst_73 [0] : vector<32x128xf32> to vector<128xf32>
    %323 = vector.shape_cast %322 : vector<128xf32> to vector<1x128xf32>
    %324 = arith.addf %319, %323 : vector<1x128xf32>
    %325 = math.tanh %324 : vector<1x128xf32>
    %cst_74 = arith.constant 5.000000e-01 : f32
    %326 = vector.broadcast %cst_74 : f32 to vector<1x128xf32>
    %327 = arith.mulf %326, %325 : vector<1x128xf32>
    %cst_75 = arith.constant 5.000000e-01 : f32
    %328 = vector.broadcast %cst_75 : f32 to vector<1x128xf32>
    %329 = arith.addf %327, %328 : vector<1x128xf32>
    %330 = vector.extract_strided_slice %329 {offsets = [0, 0], sizes = [1, 32], strides = [1, 1]} : vector<1x128xf32> to vector<1x32xf32>
    %331 = vector.extract_strided_slice %329 {offsets = [0, 32], sizes = [1, 32], strides = [1, 1]} : vector<1x128xf32> to vector<1x32xf32>
    %332 = vector.extract_strided_slice %329 {offsets = [0, 64], sizes = [1, 32], strides = [1, 1]} : vector<1x128xf32> to vector<1x32xf32>
    %cst_76 = arith.constant 2.000000e+00 : f32
    %333 = vector.broadcast %cst_76 : f32 to vector<1x32xf32>
    %334 = arith.mulf %333, %332 : vector<1x32xf32>
    %cst_77 = arith.constant 1.000000e+00 : f32
    %335 = vector.broadcast %cst_77 : f32 to vector<1x32xf32>
    %336 = arith.subf %334, %335 : vector<1x32xf32>
    %337 = vector.extract_strided_slice %329 {offsets = [0, 96], sizes = [1, 32], strides = [1, 1]} : vector<1x128xf32> to vector<1x32xf32>
    %338 = arith.mulf %331, %315 : vector<1x32xf32>
    %339 = arith.mulf %330, %336 : vector<1x32xf32>
    %340 = arith.addf %338, %339 : vector<1x32xf32>
    %341 = math.tanh %340 : vector<1x32xf32>
    %342 = arith.mulf %337, %341 : vector<1x32xf32>
    %343 = tpu.transpose %342, [1, 0] : vector<1x32xf32> -> vector<32x1xf32>
    %344 = vector.extract_strided_slice %15 {offsets = [13, 0], sizes = [1, 128], strides = [1, 1]} : vector<32x128xf32> to vector<1x128xf32>
    %345 = vector.broadcast %343 : vector<32x1xf32> to vector<32x128xf32>
    %346 = arith.mulf %345, %6 : vector<32x128xf32>
    %cst_78 = arith.constant dense<0.000000e+00> : vector<128xf32>
    %347 = vector.multi_reduction <add>, %346, %cst_78 [0] : vector<32x128xf32> to vector<128xf32>
    %348 = vector.shape_cast %347 : vector<128xf32> to vector<1x128xf32>
    %349 = arith.addf %344, %348 : vector<1x128xf32>
    %350 = math.tanh %349 : vector<1x128xf32>
    %cst_79 = arith.constant 5.000000e-01 : f32
    %351 = vector.broadcast %cst_79 : f32 to vector<1x128xf32>
    %352 = arith.mulf %351, %350 : vector<1x128xf32>
    %cst_80 = arith.constant 5.000000e-01 : f32
    %353 = vector.broadcast %cst_80 : f32 to vector<1x128xf32>
    %354 = arith.addf %352, %353 : vector<1x128xf32>
    %355 = vector.extract_strided_slice %354 {offsets = [0, 0], sizes = [1, 32], strides = [1, 1]} : vector<1x128xf32> to vector<1x32xf32>
    %356 = vector.extract_strided_slice %354 {offsets = [0, 32], sizes = [1, 32], strides = [1, 1]} : vector<1x128xf32> to vector<1x32xf32>
    %357 = vector.extract_strided_slice %354 {offsets = [0, 64], sizes = [1, 32], strides = [1, 1]} : vector<1x128xf32> to vector<1x32xf32>
    %cst_81 = arith.constant 2.000000e+00 : f32
    %358 = vector.broadcast %cst_81 : f32 to vector<1x32xf32>
    %359 = arith.mulf %358, %357 : vector<1x32xf32>
    %cst_82 = arith.constant 1.000000e+00 : f32
    %360 = vector.broadcast %cst_82 : f32 to vector<1x32xf32>
    %361 = arith.subf %359, %360 : vector<1x32xf32>
    %362 = vector.extract_strided_slice %354 {offsets = [0, 96], sizes = [1, 32], strides = [1, 1]} : vector<1x128xf32> to vector<1x32xf32>
    %363 = arith.mulf %356, %340 : vector<1x32xf32>
    %364 = arith.mulf %355, %361 : vector<1x32xf32>
    %365 = arith.addf %363, %364 : vector<1x32xf32>
    %366 = math.tanh %365 : vector<1x32xf32>
    %367 = arith.mulf %362, %366 : vector<1x32xf32>
    %368 = tpu.transpose %367, [1, 0] : vector<1x32xf32> -> vector<32x1xf32>
    %369 = vector.extract_strided_slice %15 {offsets = [14, 0], sizes = [1, 128], strides = [1, 1]} : vector<32x128xf32> to vector<1x128xf32>
    %370 = vector.broadcast %368 : vector<32x1xf32> to vector<32x128xf32>
    %371 = arith.mulf %370, %6 : vector<32x128xf32>
    %cst_83 = arith.constant dense<0.000000e+00> : vector<128xf32>
    %372 = vector.multi_reduction <add>, %371, %cst_83 [0] : vector<32x128xf32> to vector<128xf32>
    %373 = vector.shape_cast %372 : vector<128xf32> to vector<1x128xf32>
    %374 = arith.addf %369, %373 : vector<1x128xf32>
    %375 = math.tanh %374 : vector<1x128xf32>
    %cst_84 = arith.constant 5.000000e-01 : f32
    %376 = vector.broadcast %cst_84 : f32 to vector<1x128xf32>
    %377 = arith.mulf %376, %375 : vector<1x128xf32>
    %cst_85 = arith.constant 5.000000e-01 : f32
    %378 = vector.broadcast %cst_85 : f32 to vector<1x128xf32>
    %379 = arith.addf %377, %378 : vector<1x128xf32>
    %380 = vector.extract_strided_slice %379 {offsets = [0, 0], sizes = [1, 32], strides = [1, 1]} : vector<1x128xf32> to vector<1x32xf32>
    %381 = vector.extract_strided_slice %379 {offsets = [0, 32], sizes = [1, 32], strides = [1, 1]} : vector<1x128xf32> to vector<1x32xf32>
    %382 = vector.extract_strided_slice %379 {offsets = [0, 64], sizes = [1, 32], strides = [1, 1]} : vector<1x128xf32> to vector<1x32xf32>
    %cst_86 = arith.constant 2.000000e+00 : f32
    %383 = vector.broadcast %cst_86 : f32 to vector<1x32xf32>
    %384 = arith.mulf %383, %382 : vector<1x32xf32>
    %cst_87 = arith.constant 1.000000e+00 : f32
    %385 = vector.broadcast %cst_87 : f32 to vector<1x32xf32>
    %386 = arith.subf %384, %385 : vector<1x32xf32>
    %387 = vector.extract_strided_slice %379 {offsets = [0, 96], sizes = [1, 32], strides = [1, 1]} : vector<1x128xf32> to vector<1x32xf32>
    %388 = arith.mulf %381, %365 : vector<1x32xf32>
    %389 = arith.mulf %380, %386 : vector<1x32xf32>
    %390 = arith.addf %388, %389 : vector<1x32xf32>
    %391 = math.tanh %390 : vector<1x32xf32>
    %392 = arith.mulf %387, %391 : vector<1x32xf32>
    %393 = tpu.transpose %392, [1, 0] : vector<1x32xf32> -> vector<32x1xf32>
    %394 = vector.extract_strided_slice %15 {offsets = [15, 0], sizes = [1, 128], strides = [1, 1]} : vector<32x128xf32> to vector<1x128xf32>
    %395 = vector.broadcast %393 : vector<32x1xf32> to vector<32x128xf32>
    %396 = arith.mulf %395, %6 : vector<32x128xf32>
    %cst_88 = arith.constant dense<0.000000e+00> : vector<128xf32>
    %397 = vector.multi_reduction <add>, %396, %cst_88 [0] : vector<32x128xf32> to vector<128xf32>
    %398 = vector.shape_cast %397 : vector<128xf32> to vector<1x128xf32>
    %399 = arith.addf %394, %398 : vector<1x128xf32>
    %400 = math.tanh %399 : vector<1x128xf32>
    %cst_89 = arith.constant 5.000000e-01 : f32
    %401 = vector.broadcast %cst_89 : f32 to vector<1x128xf32>
    %402 = arith.mulf %401, %400 : vector<1x128xf32>
    %cst_90 = arith.constant 5.000000e-01 : f32
    %403 = vector.broadcast %cst_90 : f32 to vector<1x128xf32>
    %404 = arith.addf %402, %403 : vector<1x128xf32>
    %405 = vector.extract_strided_slice %404 {offsets = [0, 0], sizes = [1, 32], strides = [1, 1]} : vector<1x128xf32> to vector<1x32xf32>
    %406 = vector.extract_strided_slice %404 {offsets = [0, 32], sizes = [1, 32], strides = [1, 1]} : vector<1x128xf32> to vector<1x32xf32>
    %407 = vector.extract_strided_slice %404 {offsets = [0, 64], sizes = [1, 32], strides = [1, 1]} : vector<1x128xf32> to vector<1x32xf32>
    %cst_91 = arith.constant 2.000000e+00 : f32
    %408 = vector.broadcast %cst_91 : f32 to vector<1x32xf32>
    %409 = arith.mulf %408, %407 : vector<1x32xf32>
    %cst_92 = arith.constant 1.000000e+00 : f32
    %410 = vector.broadcast %cst_92 : f32 to vector<1x32xf32>
    %411 = arith.subf %409, %410 : vector<1x32xf32>
    %412 = vector.extract_strided_slice %404 {offsets = [0, 96], sizes = [1, 32], strides = [1, 1]} : vector<1x128xf32> to vector<1x32xf32>
    %413 = arith.mulf %406, %390 : vector<1x32xf32>
    %414 = arith.mulf %405, %411 : vector<1x32xf32>
    %415 = arith.addf %413, %414 : vector<1x32xf32>
    %416 = math.tanh %415 : vector<1x32xf32>
    %417 = arith.mulf %412, %416 : vector<1x32xf32>
    %418 = tpu.transpose %417, [1, 0] : vector<1x32xf32> -> vector<32x1xf32>
    %419 = vector.extract_strided_slice %15 {offsets = [16, 0], sizes = [1, 128], strides = [1, 1]} : vector<32x128xf32> to vector<1x128xf32>
    %420 = vector.broadcast %418 : vector<32x1xf32> to vector<32x128xf32>
    %421 = arith.mulf %420, %6 : vector<32x128xf32>
    %cst_93 = arith.constant dense<0.000000e+00> : vector<128xf32>
    %422 = vector.multi_reduction <add>, %421, %cst_93 [0] : vector<32x128xf32> to vector<128xf32>
    %423 = vector.shape_cast %422 : vector<128xf32> to vector<1x128xf32>
    %424 = arith.addf %419, %423 : vector<1x128xf32>
    %425 = math.tanh %424 : vector<1x128xf32>
    %cst_94 = arith.constant 5.000000e-01 : f32
    %426 = vector.broadcast %cst_94 : f32 to vector<1x128xf32>
    %427 = arith.mulf %426, %425 : vector<1x128xf32>
    %cst_95 = arith.constant 5.000000e-01 : f32
    %428 = vector.broadcast %cst_95 : f32 to vector<1x128xf32>
    %429 = arith.addf %427, %428 : vector<1x128xf32>
    %430 = vector.extract_strided_slice %429 {offsets = [0, 0], sizes = [1, 32], strides = [1, 1]} : vector<1x128xf32> to vector<1x32xf32>
    %431 = vector.extract_strided_slice %429 {offsets = [0, 32], sizes = [1, 32], strides = [1, 1]} : vector<1x128xf32> to vector<1x32xf32>
    %432 = vector.extract_strided_slice %429 {offsets = [0, 64], sizes = [1, 32], strides = [1, 1]} : vector<1x128xf32> to vector<1x32xf32>
    %cst_96 = arith.constant 2.000000e+00 : f32
    %433 = vector.broadcast %cst_96 : f32 to vector<1x32xf32>
    %434 = arith.mulf %433, %432 : vector<1x32xf32>
    %cst_97 = arith.constant 1.000000e+00 : f32
    %435 = vector.broadcast %cst_97 : f32 to vector<1x32xf32>
    %436 = arith.subf %434, %435 : vector<1x32xf32>
    %437 = vector.extract_strided_slice %429 {offsets = [0, 96], sizes = [1, 32], strides = [1, 1]} : vector<1x128xf32> to vector<1x32xf32>
    %438 = arith.mulf %431, %415 : vector<1x32xf32>
    %439 = arith.mulf %430, %436 : vector<1x32xf32>
    %440 = arith.addf %438, %439 : vector<1x32xf32>
    %441 = math.tanh %440 : vector<1x32xf32>
    %442 = arith.mulf %437, %441 : vector<1x32xf32>
    %443 = tpu.transpose %442, [1, 0] : vector<1x32xf32> -> vector<32x1xf32>
    %444 = vector.extract_strided_slice %15 {offsets = [17, 0], sizes = [1, 128], strides = [1, 1]} : vector<32x128xf32> to vector<1x128xf32>
    %445 = vector.broadcast %443 : vector<32x1xf32> to vector<32x128xf32>
    %446 = arith.mulf %445, %6 : vector<32x128xf32>
    %cst_98 = arith.constant dense<0.000000e+00> : vector<128xf32>
    %447 = vector.multi_reduction <add>, %446, %cst_98 [0] : vector<32x128xf32> to vector<128xf32>
    %448 = vector.shape_cast %447 : vector<128xf32> to vector<1x128xf32>
    %449 = arith.addf %444, %448 : vector<1x128xf32>
    %450 = math.tanh %449 : vector<1x128xf32>
    %cst_99 = arith.constant 5.000000e-01 : f32
    %451 = vector.broadcast %cst_99 : f32 to vector<1x128xf32>
    %452 = arith.mulf %451, %450 : vector<1x128xf32>
    %cst_100 = arith.constant 5.000000e-01 : f32
    %453 = vector.broadcast %cst_100 : f32 to vector<1x128xf32>
    %454 = arith.addf %452, %453 : vector<1x128xf32>
    %455 = vector.extract_strided_slice %454 {offsets = [0, 0], sizes = [1, 32], strides = [1, 1]} : vector<1x128xf32> to vector<1x32xf32>
    %456 = vector.extract_strided_slice %454 {offsets = [0, 32], sizes = [1, 32], strides = [1, 1]} : vector<1x128xf32> to vector<1x32xf32>
    %457 = vector.extract_strided_slice %454 {offsets = [0, 64], sizes = [1, 32], strides = [1, 1]} : vector<1x128xf32> to vector<1x32xf32>
    %cst_101 = arith.constant 2.000000e+00 : f32
    %458 = vector.broadcast %cst_101 : f32 to vector<1x32xf32>
    %459 = arith.mulf %458, %457 : vector<1x32xf32>
    %cst_102 = arith.constant 1.000000e+00 : f32
    %460 = vector.broadcast %cst_102 : f32 to vector<1x32xf32>
    %461 = arith.subf %459, %460 : vector<1x32xf32>
    %462 = vector.extract_strided_slice %454 {offsets = [0, 96], sizes = [1, 32], strides = [1, 1]} : vector<1x128xf32> to vector<1x32xf32>
    %463 = arith.mulf %456, %440 : vector<1x32xf32>
    %464 = arith.mulf %455, %461 : vector<1x32xf32>
    %465 = arith.addf %463, %464 : vector<1x32xf32>
    %466 = math.tanh %465 : vector<1x32xf32>
    %467 = arith.mulf %462, %466 : vector<1x32xf32>
    %468 = tpu.transpose %467, [1, 0] : vector<1x32xf32> -> vector<32x1xf32>
    %469 = vector.extract_strided_slice %15 {offsets = [18, 0], sizes = [1, 128], strides = [1, 1]} : vector<32x128xf32> to vector<1x128xf32>
    %470 = vector.broadcast %468 : vector<32x1xf32> to vector<32x128xf32>
    %471 = arith.mulf %470, %6 : vector<32x128xf32>
    %cst_103 = arith.constant dense<0.000000e+00> : vector<128xf32>
    %472 = vector.multi_reduction <add>, %471, %cst_103 [0] : vector<32x128xf32> to vector<128xf32>
    %473 = vector.shape_cast %472 : vector<128xf32> to vector<1x128xf32>
    %474 = arith.addf %469, %473 : vector<1x128xf32>
    %475 = math.tanh %474 : vector<1x128xf32>
    %cst_104 = arith.constant 5.000000e-01 : f32
    %476 = vector.broadcast %cst_104 : f32 to vector<1x128xf32>
    %477 = arith.mulf %476, %475 : vector<1x128xf32>
    %cst_105 = arith.constant 5.000000e-01 : f32
    %478 = vector.broadcast %cst_105 : f32 to vector<1x128xf32>
    %479 = arith.addf %477, %478 : vector<1x128xf32>
    %480 = vector.extract_strided_slice %479 {offsets = [0, 0], sizes = [1, 32], strides = [1, 1]} : vector<1x128xf32> to vector<1x32xf32>
    %481 = vector.extract_strided_slice %479 {offsets = [0, 32], sizes = [1, 32], strides = [1, 1]} : vector<1x128xf32> to vector<1x32xf32>
    %482 = vector.extract_strided_slice %479 {offsets = [0, 64], sizes = [1, 32], strides = [1, 1]} : vector<1x128xf32> to vector<1x32xf32>
    %cst_106 = arith.constant 2.000000e+00 : f32
    %483 = vector.broadcast %cst_106 : f32 to vector<1x32xf32>
    %484 = arith.mulf %483, %482 : vector<1x32xf32>
    %cst_107 = arith.constant 1.000000e+00 : f32
    %485 = vector.broadcast %cst_107 : f32 to vector<1x32xf32>
    %486 = arith.subf %484, %485 : vector<1x32xf32>
    %487 = vector.extract_strided_slice %479 {offsets = [0, 96], sizes = [1, 32], strides = [1, 1]} : vector<1x128xf32> to vector<1x32xf32>
    %488 = arith.mulf %481, %465 : vector<1x32xf32>
    %489 = arith.mulf %480, %486 : vector<1x32xf32>
    %490 = arith.addf %488, %489 : vector<1x32xf32>
    %491 = math.tanh %490 : vector<1x32xf32>
    %492 = arith.mulf %487, %491 : vector<1x32xf32>
    %493 = tpu.transpose %492, [1, 0] : vector<1x32xf32> -> vector<32x1xf32>
    %494 = vector.extract_strided_slice %15 {offsets = [19, 0], sizes = [1, 128], strides = [1, 1]} : vector<32x128xf32> to vector<1x128xf32>
    %495 = vector.broadcast %493 : vector<32x1xf32> to vector<32x128xf32>
    %496 = arith.mulf %495, %6 : vector<32x128xf32>
    %cst_108 = arith.constant dense<0.000000e+00> : vector<128xf32>
    %497 = vector.multi_reduction <add>, %496, %cst_108 [0] : vector<32x128xf32> to vector<128xf32>
    %498 = vector.shape_cast %497 : vector<128xf32> to vector<1x128xf32>
    %499 = arith.addf %494, %498 : vector<1x128xf32>
    %500 = math.tanh %499 : vector<1x128xf32>
    %cst_109 = arith.constant 5.000000e-01 : f32
    %501 = vector.broadcast %cst_109 : f32 to vector<1x128xf32>
    %502 = arith.mulf %501, %500 : vector<1x128xf32>
    %cst_110 = arith.constant 5.000000e-01 : f32
    %503 = vector.broadcast %cst_110 : f32 to vector<1x128xf32>
    %504 = arith.addf %502, %503 : vector<1x128xf32>
    %505 = vector.extract_strided_slice %504 {offsets = [0, 0], sizes = [1, 32], strides = [1, 1]} : vector<1x128xf32> to vector<1x32xf32>
    %506 = vector.extract_strided_slice %504 {offsets = [0, 32], sizes = [1, 32], strides = [1, 1]} : vector<1x128xf32> to vector<1x32xf32>
    %507 = vector.extract_strided_slice %504 {offsets = [0, 64], sizes = [1, 32], strides = [1, 1]} : vector<1x128xf32> to vector<1x32xf32>
    %cst_111 = arith.constant 2.000000e+00 : f32
    %508 = vector.broadcast %cst_111 : f32 to vector<1x32xf32>
    %509 = arith.mulf %508, %507 : vector<1x32xf32>
    %cst_112 = arith.constant 1.000000e+00 : f32
    %510 = vector.broadcast %cst_112 : f32 to vector<1x32xf32>
    %511 = arith.subf %509, %510 : vector<1x32xf32>
    %512 = vector.extract_strided_slice %504 {offsets = [0, 96], sizes = [1, 32], strides = [1, 1]} : vector<1x128xf32> to vector<1x32xf32>
    %513 = arith.mulf %506, %490 : vector<1x32xf32>
    %514 = arith.mulf %505, %511 : vector<1x32xf32>
    %515 = arith.addf %513, %514 : vector<1x32xf32>
    %516 = math.tanh %515 : vector<1x32xf32>
    %517 = arith.mulf %512, %516 : vector<1x32xf32>
    %518 = tpu.transpose %517, [1, 0] : vector<1x32xf32> -> vector<32x1xf32>
    %519 = vector.extract_strided_slice %15 {offsets = [20, 0], sizes = [1, 128], strides = [1, 1]} : vector<32x128xf32> to vector<1x128xf32>
    %520 = vector.broadcast %518 : vector<32x1xf32> to vector<32x128xf32>
    %521 = arith.mulf %520, %6 : vector<32x128xf32>
    %cst_113 = arith.constant dense<0.000000e+00> : vector<128xf32>
    %522 = vector.multi_reduction <add>, %521, %cst_113 [0] : vector<32x128xf32> to vector<128xf32>
    %523 = vector.shape_cast %522 : vector<128xf32> to vector<1x128xf32>
    %524 = arith.addf %519, %523 : vector<1x128xf32>
    %525 = math.tanh %524 : vector<1x128xf32>
    %cst_114 = arith.constant 5.000000e-01 : f32
    %526 = vector.broadcast %cst_114 : f32 to vector<1x128xf32>
    %527 = arith.mulf %526, %525 : vector<1x128xf32>
    %cst_115 = arith.constant 5.000000e-01 : f32
    %528 = vector.broadcast %cst_115 : f32 to vector<1x128xf32>
    %529 = arith.addf %527, %528 : vector<1x128xf32>
    %530 = vector.extract_strided_slice %529 {offsets = [0, 0], sizes = [1, 32], strides = [1, 1]} : vector<1x128xf32> to vector<1x32xf32>
    %531 = vector.extract_strided_slice %529 {offsets = [0, 32], sizes = [1, 32], strides = [1, 1]} : vector<1x128xf32> to vector<1x32xf32>
    %532 = vector.extract_strided_slice %529 {offsets = [0, 64], sizes = [1, 32], strides = [1, 1]} : vector<1x128xf32> to vector<1x32xf32>
    %cst_116 = arith.constant 2.000000e+00 : f32
    %533 = vector.broadcast %cst_116 : f32 to vector<1x32xf32>
    %534 = arith.mulf %533, %532 : vector<1x32xf32>
    %cst_117 = arith.constant 1.000000e+00 : f32
    %535 = vector.broadcast %cst_117 : f32 to vector<1x32xf32>
    %536 = arith.subf %534, %535 : vector<1x32xf32>
    %537 = vector.extract_strided_slice %529 {offsets = [0, 96], sizes = [1, 32], strides = [1, 1]} : vector<1x128xf32> to vector<1x32xf32>
    %538 = arith.mulf %531, %515 : vector<1x32xf32>
    %539 = arith.mulf %530, %536 : vector<1x32xf32>
    %540 = arith.addf %538, %539 : vector<1x32xf32>
    %541 = math.tanh %540 : vector<1x32xf32>
    %542 = arith.mulf %537, %541 : vector<1x32xf32>
    %543 = tpu.transpose %542, [1, 0] : vector<1x32xf32> -> vector<32x1xf32>
    %544 = vector.extract_strided_slice %15 {offsets = [21, 0], sizes = [1, 128], strides = [1, 1]} : vector<32x128xf32> to vector<1x128xf32>
    %545 = vector.broadcast %543 : vector<32x1xf32> to vector<32x128xf32>
    %546 = arith.mulf %545, %6 : vector<32x128xf32>
    %cst_118 = arith.constant dense<0.000000e+00> : vector<128xf32>
    %547 = vector.multi_reduction <add>, %546, %cst_118 [0] : vector<32x128xf32> to vector<128xf32>
    %548 = vector.shape_cast %547 : vector<128xf32> to vector<1x128xf32>
    %549 = arith.addf %544, %548 : vector<1x128xf32>
    %550 = math.tanh %549 : vector<1x128xf32>
    %cst_119 = arith.constant 5.000000e-01 : f32
    %551 = vector.broadcast %cst_119 : f32 to vector<1x128xf32>
    %552 = arith.mulf %551, %550 : vector<1x128xf32>
    %cst_120 = arith.constant 5.000000e-01 : f32
    %553 = vector.broadcast %cst_120 : f32 to vector<1x128xf32>
    %554 = arith.addf %552, %553 : vector<1x128xf32>
    %555 = vector.extract_strided_slice %554 {offsets = [0, 0], sizes = [1, 32], strides = [1, 1]} : vector<1x128xf32> to vector<1x32xf32>
    %556 = vector.extract_strided_slice %554 {offsets = [0, 32], sizes = [1, 32], strides = [1, 1]} : vector<1x128xf32> to vector<1x32xf32>
    %557 = vector.extract_strided_slice %554 {offsets = [0, 64], sizes = [1, 32], strides = [1, 1]} : vector<1x128xf32> to vector<1x32xf32>
    %cst_121 = arith.constant 2.000000e+00 : f32
    %558 = vector.broadcast %cst_121 : f32 to vector<1x32xf32>
    %559 = arith.mulf %558, %557 : vector<1x32xf32>
    %cst_122 = arith.constant 1.000000e+00 : f32
    %560 = vector.broadcast %cst_122 : f32 to vector<1x32xf32>
    %561 = arith.subf %559, %560 : vector<1x32xf32>
    %562 = vector.extract_strided_slice %554 {offsets = [0, 96], sizes = [1, 32], strides = [1, 1]} : vector<1x128xf32> to vector<1x32xf32>
    %563 = arith.mulf %556, %540 : vector<1x32xf32>
    %564 = arith.mulf %555, %561 : vector<1x32xf32>
    %565 = arith.addf %563, %564 : vector<1x32xf32>
    %566 = math.tanh %565 : vector<1x32xf32>
    %567 = arith.mulf %562, %566 : vector<1x32xf32>
    %568 = tpu.transpose %567, [1, 0] : vector<1x32xf32> -> vector<32x1xf32>
    %569 = vector.extract_strided_slice %15 {offsets = [22, 0], sizes = [1, 128], strides = [1, 1]} : vector<32x128xf32> to vector<1x128xf32>
    %570 = vector.broadcast %568 : vector<32x1xf32> to vector<32x128xf32>
    %571 = arith.mulf %570, %6 : vector<32x128xf32>
    %cst_123 = arith.constant dense<0.000000e+00> : vector<128xf32>
    %572 = vector.multi_reduction <add>, %571, %cst_123 [0] : vector<32x128xf32> to vector<128xf32>
    %573 = vector.shape_cast %572 : vector<128xf32> to vector<1x128xf32>
    %574 = arith.addf %569, %573 : vector<1x128xf32>
    %575 = math.tanh %574 : vector<1x128xf32>
    %cst_124 = arith.constant 5.000000e-01 : f32
    %576 = vector.broadcast %cst_124 : f32 to vector<1x128xf32>
    %577 = arith.mulf %576, %575 : vector<1x128xf32>
    %cst_125 = arith.constant 5.000000e-01 : f32
    %578 = vector.broadcast %cst_125 : f32 to vector<1x128xf32>
    %579 = arith.addf %577, %578 : vector<1x128xf32>
    %580 = vector.extract_strided_slice %579 {offsets = [0, 0], sizes = [1, 32], strides = [1, 1]} : vector<1x128xf32> to vector<1x32xf32>
    %581 = vector.extract_strided_slice %579 {offsets = [0, 32], sizes = [1, 32], strides = [1, 1]} : vector<1x128xf32> to vector<1x32xf32>
    %582 = vector.extract_strided_slice %579 {offsets = [0, 64], sizes = [1, 32], strides = [1, 1]} : vector<1x128xf32> to vector<1x32xf32>
    %cst_126 = arith.constant 2.000000e+00 : f32
    %583 = vector.broadcast %cst_126 : f32 to vector<1x32xf32>
    %584 = arith.mulf %583, %582 : vector<1x32xf32>
    %cst_127 = arith.constant 1.000000e+00 : f32
    %585 = vector.broadcast %cst_127 : f32 to vector<1x32xf32>
    %586 = arith.subf %584, %585 : vector<1x32xf32>
    %587 = vector.extract_strided_slice %579 {offsets = [0, 96], sizes = [1, 32], strides = [1, 1]} : vector<1x128xf32> to vector<1x32xf32>
    %588 = arith.mulf %581, %565 : vector<1x32xf32>
    %589 = arith.mulf %580, %586 : vector<1x32xf32>
    %590 = arith.addf %588, %589 : vector<1x32xf32>
    %591 = math.tanh %590 : vector<1x32xf32>
    %592 = arith.mulf %587, %591 : vector<1x32xf32>
    %593 = tpu.transpose %592, [1, 0] : vector<1x32xf32> -> vector<32x1xf32>
    %594 = vector.extract_strided_slice %15 {offsets = [23, 0], sizes = [1, 128], strides = [1, 1]} : vector<32x128xf32> to vector<1x128xf32>
    %595 = vector.broadcast %593 : vector<32x1xf32> to vector<32x128xf32>
    %596 = arith.mulf %595, %6 : vector<32x128xf32>
    %cst_128 = arith.constant dense<0.000000e+00> : vector<128xf32>
    %597 = vector.multi_reduction <add>, %596, %cst_128 [0] : vector<32x128xf32> to vector<128xf32>
    %598 = vector.shape_cast %597 : vector<128xf32> to vector<1x128xf32>
    %599 = arith.addf %594, %598 : vector<1x128xf32>
    %600 = math.tanh %599 : vector<1x128xf32>
    %cst_129 = arith.constant 5.000000e-01 : f32
    %601 = vector.broadcast %cst_129 : f32 to vector<1x128xf32>
    %602 = arith.mulf %601, %600 : vector<1x128xf32>
    %cst_130 = arith.constant 5.000000e-01 : f32
    %603 = vector.broadcast %cst_130 : f32 to vector<1x128xf32>
    %604 = arith.addf %602, %603 : vector<1x128xf32>
    %605 = vector.extract_strided_slice %604 {offsets = [0, 0], sizes = [1, 32], strides = [1, 1]} : vector<1x128xf32> to vector<1x32xf32>
    %606 = vector.extract_strided_slice %604 {offsets = [0, 32], sizes = [1, 32], strides = [1, 1]} : vector<1x128xf32> to vector<1x32xf32>
    %607 = vector.extract_strided_slice %604 {offsets = [0, 64], sizes = [1, 32], strides = [1, 1]} : vector<1x128xf32> to vector<1x32xf32>
    %cst_131 = arith.constant 2.000000e+00 : f32
    %608 = vector.broadcast %cst_131 : f32 to vector<1x32xf32>
    %609 = arith.mulf %608, %607 : vector<1x32xf32>
    %cst_132 = arith.constant 1.000000e+00 : f32
    %610 = vector.broadcast %cst_132 : f32 to vector<1x32xf32>
    %611 = arith.subf %609, %610 : vector<1x32xf32>
    %612 = vector.extract_strided_slice %604 {offsets = [0, 96], sizes = [1, 32], strides = [1, 1]} : vector<1x128xf32> to vector<1x32xf32>
    %613 = arith.mulf %606, %590 : vector<1x32xf32>
    %614 = arith.mulf %605, %611 : vector<1x32xf32>
    %615 = arith.addf %613, %614 : vector<1x32xf32>
    %616 = math.tanh %615 : vector<1x32xf32>
    %617 = arith.mulf %612, %616 : vector<1x32xf32>
    %618 = tpu.transpose %617, [1, 0] : vector<1x32xf32> -> vector<32x1xf32>
    %619 = vector.extract_strided_slice %15 {offsets = [24, 0], sizes = [1, 128], strides = [1, 1]} : vector<32x128xf32> to vector<1x128xf32>
    %620 = vector.broadcast %618 : vector<32x1xf32> to vector<32x128xf32>
    %621 = arith.mulf %620, %6 : vector<32x128xf32>
    %cst_133 = arith.constant dense<0.000000e+00> : vector<128xf32>
    %622 = vector.multi_reduction <add>, %621, %cst_133 [0] : vector<32x128xf32> to vector<128xf32>
    %623 = vector.shape_cast %622 : vector<128xf32> to vector<1x128xf32>
    %624 = arith.addf %619, %623 : vector<1x128xf32>
    %625 = math.tanh %624 : vector<1x128xf32>
    %cst_134 = arith.constant 5.000000e-01 : f32
    %626 = vector.broadcast %cst_134 : f32 to vector<1x128xf32>
    %627 = arith.mulf %626, %625 : vector<1x128xf32>
    %cst_135 = arith.constant 5.000000e-01 : f32
    %628 = vector.broadcast %cst_135 : f32 to vector<1x128xf32>
    %629 = arith.addf %627, %628 : vector<1x128xf32>
    %630 = vector.extract_strided_slice %629 {offsets = [0, 0], sizes = [1, 32], strides = [1, 1]} : vector<1x128xf32> to vector<1x32xf32>
    %631 = vector.extract_strided_slice %629 {offsets = [0, 32], sizes = [1, 32], strides = [1, 1]} : vector<1x128xf32> to vector<1x32xf32>
    %632 = vector.extract_strided_slice %629 {offsets = [0, 64], sizes = [1, 32], strides = [1, 1]} : vector<1x128xf32> to vector<1x32xf32>
    %cst_136 = arith.constant 2.000000e+00 : f32
    %633 = vector.broadcast %cst_136 : f32 to vector<1x32xf32>
    %634 = arith.mulf %633, %632 : vector<1x32xf32>
    %cst_137 = arith.constant 1.000000e+00 : f32
    %635 = vector.broadcast %cst_137 : f32 to vector<1x32xf32>
    %636 = arith.subf %634, %635 : vector<1x32xf32>
    %637 = vector.extract_strided_slice %629 {offsets = [0, 96], sizes = [1, 32], strides = [1, 1]} : vector<1x128xf32> to vector<1x32xf32>
    %638 = arith.mulf %631, %615 : vector<1x32xf32>
    %639 = arith.mulf %630, %636 : vector<1x32xf32>
    %640 = arith.addf %638, %639 : vector<1x32xf32>
    %641 = math.tanh %640 : vector<1x32xf32>
    %642 = arith.mulf %637, %641 : vector<1x32xf32>
    %643 = tpu.transpose %642, [1, 0] : vector<1x32xf32> -> vector<32x1xf32>
    %644 = vector.extract_strided_slice %15 {offsets = [25, 0], sizes = [1, 128], strides = [1, 1]} : vector<32x128xf32> to vector<1x128xf32>
    %645 = vector.broadcast %643 : vector<32x1xf32> to vector<32x128xf32>
    %646 = arith.mulf %645, %6 : vector<32x128xf32>
    %cst_138 = arith.constant dense<0.000000e+00> : vector<128xf32>
    %647 = vector.multi_reduction <add>, %646, %cst_138 [0] : vector<32x128xf32> to vector<128xf32>
    %648 = vector.shape_cast %647 : vector<128xf32> to vector<1x128xf32>
    %649 = arith.addf %644, %648 : vector<1x128xf32>
    %650 = math.tanh %649 : vector<1x128xf32>
    %cst_139 = arith.constant 5.000000e-01 : f32
    %651 = vector.broadcast %cst_139 : f32 to vector<1x128xf32>
    %652 = arith.mulf %651, %650 : vector<1x128xf32>
    %cst_140 = arith.constant 5.000000e-01 : f32
    %653 = vector.broadcast %cst_140 : f32 to vector<1x128xf32>
    %654 = arith.addf %652, %653 : vector<1x128xf32>
    %655 = vector.extract_strided_slice %654 {offsets = [0, 0], sizes = [1, 32], strides = [1, 1]} : vector<1x128xf32> to vector<1x32xf32>
    %656 = vector.extract_strided_slice %654 {offsets = [0, 32], sizes = [1, 32], strides = [1, 1]} : vector<1x128xf32> to vector<1x32xf32>
    %657 = vector.extract_strided_slice %654 {offsets = [0, 64], sizes = [1, 32], strides = [1, 1]} : vector<1x128xf32> to vector<1x32xf32>
    %cst_141 = arith.constant 2.000000e+00 : f32
    %658 = vector.broadcast %cst_141 : f32 to vector<1x32xf32>
    %659 = arith.mulf %658, %657 : vector<1x32xf32>
    %cst_142 = arith.constant 1.000000e+00 : f32
    %660 = vector.broadcast %cst_142 : f32 to vector<1x32xf32>
    %661 = arith.subf %659, %660 : vector<1x32xf32>
    %662 = vector.extract_strided_slice %654 {offsets = [0, 96], sizes = [1, 32], strides = [1, 1]} : vector<1x128xf32> to vector<1x32xf32>
    %663 = arith.mulf %656, %640 : vector<1x32xf32>
    %664 = arith.mulf %655, %661 : vector<1x32xf32>
    %665 = arith.addf %663, %664 : vector<1x32xf32>
    %666 = math.tanh %665 : vector<1x32xf32>
    %667 = arith.mulf %662, %666 : vector<1x32xf32>
    %668 = tpu.transpose %667, [1, 0] : vector<1x32xf32> -> vector<32x1xf32>
    %669 = vector.extract_strided_slice %15 {offsets = [26, 0], sizes = [1, 128], strides = [1, 1]} : vector<32x128xf32> to vector<1x128xf32>
    %670 = vector.broadcast %668 : vector<32x1xf32> to vector<32x128xf32>
    %671 = arith.mulf %670, %6 : vector<32x128xf32>
    %cst_143 = arith.constant dense<0.000000e+00> : vector<128xf32>
    %672 = vector.multi_reduction <add>, %671, %cst_143 [0] : vector<32x128xf32> to vector<128xf32>
    %673 = vector.shape_cast %672 : vector<128xf32> to vector<1x128xf32>
    %674 = arith.addf %669, %673 : vector<1x128xf32>
    %675 = math.tanh %674 : vector<1x128xf32>
    %cst_144 = arith.constant 5.000000e-01 : f32
    %676 = vector.broadcast %cst_144 : f32 to vector<1x128xf32>
    %677 = arith.mulf %676, %675 : vector<1x128xf32>
    %cst_145 = arith.constant 5.000000e-01 : f32
    %678 = vector.broadcast %cst_145 : f32 to vector<1x128xf32>
    %679 = arith.addf %677, %678 : vector<1x128xf32>
    %680 = vector.extract_strided_slice %679 {offsets = [0, 0], sizes = [1, 32], strides = [1, 1]} : vector<1x128xf32> to vector<1x32xf32>
    %681 = vector.extract_strided_slice %679 {offsets = [0, 32], sizes = [1, 32], strides = [1, 1]} : vector<1x128xf32> to vector<1x32xf32>
    %682 = vector.extract_strided_slice %679 {offsets = [0, 64], sizes = [1, 32], strides = [1, 1]} : vector<1x128xf32> to vector<1x32xf32>
    %cst_146 = arith.constant 2.000000e+00 : f32
    %683 = vector.broadcast %cst_146 : f32 to vector<1x32xf32>
    %684 = arith.mulf %683, %682 : vector<1x32xf32>
    %cst_147 = arith.constant 1.000000e+00 : f32
    %685 = vector.broadcast %cst_147 : f32 to vector<1x32xf32>
    %686 = arith.subf %684, %685 : vector<1x32xf32>
    %687 = vector.extract_strided_slice %679 {offsets = [0, 96], sizes = [1, 32], strides = [1, 1]} : vector<1x128xf32> to vector<1x32xf32>
    %688 = arith.mulf %681, %665 : vector<1x32xf32>
    %689 = arith.mulf %680, %686 : vector<1x32xf32>
    %690 = arith.addf %688, %689 : vector<1x32xf32>
    %691 = math.tanh %690 : vector<1x32xf32>
    %692 = arith.mulf %687, %691 : vector<1x32xf32>
    %693 = tpu.transpose %692, [1, 0] : vector<1x32xf32> -> vector<32x1xf32>
    %694 = vector.extract_strided_slice %15 {offsets = [27, 0], sizes = [1, 128], strides = [1, 1]} : vector<32x128xf32> to vector<1x128xf32>
    %695 = vector.broadcast %693 : vector<32x1xf32> to vector<32x128xf32>
    %696 = arith.mulf %695, %6 : vector<32x128xf32>
    %cst_148 = arith.constant dense<0.000000e+00> : vector<128xf32>
    %697 = vector.multi_reduction <add>, %696, %cst_148 [0] : vector<32x128xf32> to vector<128xf32>
    %698 = vector.shape_cast %697 : vector<128xf32> to vector<1x128xf32>
    %699 = arith.addf %694, %698 : vector<1x128xf32>
    %700 = math.tanh %699 : vector<1x128xf32>
    %cst_149 = arith.constant 5.000000e-01 : f32
    %701 = vector.broadcast %cst_149 : f32 to vector<1x128xf32>
    %702 = arith.mulf %701, %700 : vector<1x128xf32>
    %cst_150 = arith.constant 5.000000e-01 : f32
    %703 = vector.broadcast %cst_150 : f32 to vector<1x128xf32>
    %704 = arith.addf %702, %703 : vector<1x128xf32>
    %705 = vector.extract_strided_slice %704 {offsets = [0, 0], sizes = [1, 32], strides = [1, 1]} : vector<1x128xf32> to vector<1x32xf32>
    %706 = vector.extract_strided_slice %704 {offsets = [0, 32], sizes = [1, 32], strides = [1, 1]} : vector<1x128xf32> to vector<1x32xf32>
    %707 = vector.extract_strided_slice %704 {offsets = [0, 64], sizes = [1, 32], strides = [1, 1]} : vector<1x128xf32> to vector<1x32xf32>
    %cst_151 = arith.constant 2.000000e+00 : f32
    %708 = vector.broadcast %cst_151 : f32 to vector<1x32xf32>
    %709 = arith.mulf %708, %707 : vector<1x32xf32>
    %cst_152 = arith.constant 1.000000e+00 : f32
    %710 = vector.broadcast %cst_152 : f32 to vector<1x32xf32>
    %711 = arith.subf %709, %710 : vector<1x32xf32>
    %712 = vector.extract_strided_slice %704 {offsets = [0, 96], sizes = [1, 32], strides = [1, 1]} : vector<1x128xf32> to vector<1x32xf32>
    %713 = arith.mulf %706, %690 : vector<1x32xf32>
    %714 = arith.mulf %705, %711 : vector<1x32xf32>
    %715 = arith.addf %713, %714 : vector<1x32xf32>
    %716 = math.tanh %715 : vector<1x32xf32>
    %717 = arith.mulf %712, %716 : vector<1x32xf32>
    %718 = tpu.transpose %717, [1, 0] : vector<1x32xf32> -> vector<32x1xf32>
    %719 = vector.extract_strided_slice %15 {offsets = [28, 0], sizes = [1, 128], strides = [1, 1]} : vector<32x128xf32> to vector<1x128xf32>
    %720 = vector.broadcast %718 : vector<32x1xf32> to vector<32x128xf32>
    %721 = arith.mulf %720, %6 : vector<32x128xf32>
    %cst_153 = arith.constant dense<0.000000e+00> : vector<128xf32>
    %722 = vector.multi_reduction <add>, %721, %cst_153 [0] : vector<32x128xf32> to vector<128xf32>
    %723 = vector.shape_cast %722 : vector<128xf32> to vector<1x128xf32>
    %724 = arith.addf %719, %723 : vector<1x128xf32>
    %725 = math.tanh %724 : vector<1x128xf32>
    %cst_154 = arith.constant 5.000000e-01 : f32
    %726 = vector.broadcast %cst_154 : f32 to vector<1x128xf32>
    %727 = arith.mulf %726, %725 : vector<1x128xf32>
    %cst_155 = arith.constant 5.000000e-01 : f32
    %728 = vector.broadcast %cst_155 : f32 to vector<1x128xf32>
    %729 = arith.addf %727, %728 : vector<1x128xf32>
    %730 = vector.extract_strided_slice %729 {offsets = [0, 0], sizes = [1, 32], strides = [1, 1]} : vector<1x128xf32> to vector<1x32xf32>
    %731 = vector.extract_strided_slice %729 {offsets = [0, 32], sizes = [1, 32], strides = [1, 1]} : vector<1x128xf32> to vector<1x32xf32>
    %732 = vector.extract_strided_slice %729 {offsets = [0, 64], sizes = [1, 32], strides = [1, 1]} : vector<1x128xf32> to vector<1x32xf32>
    %cst_156 = arith.constant 2.000000e+00 : f32
    %733 = vector.broadcast %cst_156 : f32 to vector<1x32xf32>
    %734 = arith.mulf %733, %732 : vector<1x32xf32>
    %cst_157 = arith.constant 1.000000e+00 : f32
    %735 = vector.broadcast %cst_157 : f32 to vector<1x32xf32>
    %736 = arith.subf %734, %735 : vector<1x32xf32>
    %737 = vector.extract_strided_slice %729 {offsets = [0, 96], sizes = [1, 32], strides = [1, 1]} : vector<1x128xf32> to vector<1x32xf32>
    %738 = arith.mulf %731, %715 : vector<1x32xf32>
    %739 = arith.mulf %730, %736 : vector<1x32xf32>
    %740 = arith.addf %738, %739 : vector<1x32xf32>
    %741 = math.tanh %740 : vector<1x32xf32>
    %742 = arith.mulf %737, %741 : vector<1x32xf32>
    %743 = tpu.transpose %742, [1, 0] : vector<1x32xf32> -> vector<32x1xf32>
    %744 = vector.extract_strided_slice %15 {offsets = [29, 0], sizes = [1, 128], strides = [1, 1]} : vector<32x128xf32> to vector<1x128xf32>
    %745 = vector.broadcast %743 : vector<32x1xf32> to vector<32x128xf32>
    %746 = arith.mulf %745, %6 : vector<32x128xf32>
    %cst_158 = arith.constant dense<0.000000e+00> : vector<128xf32>
    %747 = vector.multi_reduction <add>, %746, %cst_158 [0] : vector<32x128xf32> to vector<128xf32>
    %748 = vector.shape_cast %747 : vector<128xf32> to vector<1x128xf32>
    %749 = arith.addf %744, %748 : vector<1x128xf32>
    %750 = math.tanh %749 : vector<1x128xf32>
    %cst_159 = arith.constant 5.000000e-01 : f32
    %751 = vector.broadcast %cst_159 : f32 to vector<1x128xf32>
    %752 = arith.mulf %751, %750 : vector<1x128xf32>
    %cst_160 = arith.constant 5.000000e-01 : f32
    %753 = vector.broadcast %cst_160 : f32 to vector<1x128xf32>
    %754 = arith.addf %752, %753 : vector<1x128xf32>
    %755 = vector.extract_strided_slice %754 {offsets = [0, 0], sizes = [1, 32], strides = [1, 1]} : vector<1x128xf32> to vector<1x32xf32>
    %756 = vector.extract_strided_slice %754 {offsets = [0, 32], sizes = [1, 32], strides = [1, 1]} : vector<1x128xf32> to vector<1x32xf32>
    %757 = vector.extract_strided_slice %754 {offsets = [0, 64], sizes = [1, 32], strides = [1, 1]} : vector<1x128xf32> to vector<1x32xf32>
    %cst_161 = arith.constant 2.000000e+00 : f32
    %758 = vector.broadcast %cst_161 : f32 to vector<1x32xf32>
    %759 = arith.mulf %758, %757 : vector<1x32xf32>
    %cst_162 = arith.constant 1.000000e+00 : f32
    %760 = vector.broadcast %cst_162 : f32 to vector<1x32xf32>
    %761 = arith.subf %759, %760 : vector<1x32xf32>
    %762 = vector.extract_strided_slice %754 {offsets = [0, 96], sizes = [1, 32], strides = [1, 1]} : vector<1x128xf32> to vector<1x32xf32>
    %763 = arith.mulf %756, %740 : vector<1x32xf32>
    %764 = arith.mulf %755, %761 : vector<1x32xf32>
    %765 = arith.addf %763, %764 : vector<1x32xf32>
    %766 = math.tanh %765 : vector<1x32xf32>
    %767 = arith.mulf %762, %766 : vector<1x32xf32>
    %768 = tpu.transpose %767, [1, 0] : vector<1x32xf32> -> vector<32x1xf32>
    %769 = vector.extract_strided_slice %15 {offsets = [30, 0], sizes = [1, 128], strides = [1, 1]} : vector<32x128xf32> to vector<1x128xf32>
    %770 = vector.broadcast %768 : vector<32x1xf32> to vector<32x128xf32>
    %771 = arith.mulf %770, %6 : vector<32x128xf32>
    %cst_163 = arith.constant dense<0.000000e+00> : vector<128xf32>
    %772 = vector.multi_reduction <add>, %771, %cst_163 [0] : vector<32x128xf32> to vector<128xf32>
    %773 = vector.shape_cast %772 : vector<128xf32> to vector<1x128xf32>
    %774 = arith.addf %769, %773 : vector<1x128xf32>
    %775 = math.tanh %774 : vector<1x128xf32>
    %cst_164 = arith.constant 5.000000e-01 : f32
    %776 = vector.broadcast %cst_164 : f32 to vector<1x128xf32>
    %777 = arith.mulf %776, %775 : vector<1x128xf32>
    %cst_165 = arith.constant 5.000000e-01 : f32
    %778 = vector.broadcast %cst_165 : f32 to vector<1x128xf32>
    %779 = arith.addf %777, %778 : vector<1x128xf32>
    %780 = vector.extract_strided_slice %779 {offsets = [0, 0], sizes = [1, 32], strides = [1, 1]} : vector<1x128xf32> to vector<1x32xf32>
    %781 = vector.extract_strided_slice %779 {offsets = [0, 32], sizes = [1, 32], strides = [1, 1]} : vector<1x128xf32> to vector<1x32xf32>
    %782 = vector.extract_strided_slice %779 {offsets = [0, 64], sizes = [1, 32], strides = [1, 1]} : vector<1x128xf32> to vector<1x32xf32>
    %cst_166 = arith.constant 2.000000e+00 : f32
    %783 = vector.broadcast %cst_166 : f32 to vector<1x32xf32>
    %784 = arith.mulf %783, %782 : vector<1x32xf32>
    %cst_167 = arith.constant 1.000000e+00 : f32
    %785 = vector.broadcast %cst_167 : f32 to vector<1x32xf32>
    %786 = arith.subf %784, %785 : vector<1x32xf32>
    %787 = vector.extract_strided_slice %779 {offsets = [0, 96], sizes = [1, 32], strides = [1, 1]} : vector<1x128xf32> to vector<1x32xf32>
    %788 = arith.mulf %781, %765 : vector<1x32xf32>
    %789 = arith.mulf %780, %786 : vector<1x32xf32>
    %790 = arith.addf %788, %789 : vector<1x32xf32>
    %791 = math.tanh %790 : vector<1x32xf32>
    %792 = arith.mulf %787, %791 : vector<1x32xf32>
    %793 = tpu.transpose %792, [1, 0] : vector<1x32xf32> -> vector<32x1xf32>
    %794 = vector.extract_strided_slice %15 {offsets = [31, 0], sizes = [1, 128], strides = [1, 1]} : vector<32x128xf32> to vector<1x128xf32>
    %795 = vector.broadcast %793 : vector<32x1xf32> to vector<32x128xf32>
    %796 = arith.mulf %795, %6 : vector<32x128xf32>
    %cst_168 = arith.constant dense<0.000000e+00> : vector<128xf32>
    %797 = vector.multi_reduction <add>, %796, %cst_168 [0] : vector<32x128xf32> to vector<128xf32>
    %798 = vector.shape_cast %797 : vector<128xf32> to vector<1x128xf32>
    %799 = arith.addf %794, %798 : vector<1x128xf32>
    %800 = math.tanh %799 : vector<1x128xf32>
    %cst_169 = arith.constant 5.000000e-01 : f32
    %801 = vector.broadcast %cst_169 : f32 to vector<1x128xf32>
    %802 = arith.mulf %801, %800 : vector<1x128xf32>
    %cst_170 = arith.constant 5.000000e-01 : f32
    %803 = vector.broadcast %cst_170 : f32 to vector<1x128xf32>
    %804 = arith.addf %802, %803 : vector<1x128xf32>
    %805 = vector.extract_strided_slice %804 {offsets = [0, 0], sizes = [1, 32], strides = [1, 1]} : vector<1x128xf32> to vector<1x32xf32>
    %806 = vector.extract_strided_slice %804 {offsets = [0, 32], sizes = [1, 32], strides = [1, 1]} : vector<1x128xf32> to vector<1x32xf32>
    %807 = vector.extract_strided_slice %804 {offsets = [0, 64], sizes = [1, 32], strides = [1, 1]} : vector<1x128xf32> to vector<1x32xf32>
    %cst_171 = arith.constant 2.000000e+00 : f32
    %808 = vector.broadcast %cst_171 : f32 to vector<1x32xf32>
    %809 = arith.mulf %808, %807 : vector<1x32xf32>
    %cst_172 = arith.constant 1.000000e+00 : f32
    %810 = vector.broadcast %cst_172 : f32 to vector<1x32xf32>
    %811 = arith.subf %809, %810 : vector<1x32xf32>
    %812 = vector.extract_strided_slice %804 {offsets = [0, 96], sizes = [1, 32], strides = [1, 1]} : vector<1x128xf32> to vector<1x32xf32>
    %813 = arith.mulf %806, %790 : vector<1x32xf32>
    %814 = arith.mulf %805, %811 : vector<1x32xf32>
    %815 = arith.addf %813, %814 : vector<1x32xf32>
    %816 = math.tanh %815 : vector<1x32xf32>
    %817 = arith.mulf %812, %816 : vector<1x32xf32>
    %cst_173 = arith.constant dense<0.000000e+00> : vector<1x128xf32>
    %818 = tpu.matmul %817, %7, %cst_173 {dimension_numbers = #tpu.dot_dimension_numbers<[1], [0], [0], [1], [0, 0, 1, 1], [], []>} : vector<1x32xf32>, vector<32x128xf32>, vector<1x128xf32> -> vector<1x128xf32>
    %819 = arith.addf %818, %2 : vector<1x128xf32>
    %cst_174 = arith.constant 0.000000e+00 : f32
    %820 = vector.broadcast %cst_174 : f32 to vector<1x128xf32>
    %821 = arith.maximumf %819, %820 : vector<1x128xf32>
    %cst_175 = arith.constant dense<0.000000e+00> : vector<1x128xf32>
    %822 = tpu.matmul %821, %8, %cst_175 {dimension_numbers = #tpu.dot_dimension_numbers<[1], [0], [0], [1], [0, 0, 1, 1], [], []>} : vector<1x128xf32>, vector<128x128xf32>, vector<1x128xf32> -> vector<1x128xf32>
    %823 = arith.addf %822, %3 : vector<1x128xf32>
    %cst_176 = arith.constant 0.000000e+00 : f32
    %824 = vector.broadcast %cst_176 : f32 to vector<1x128xf32>
    %825 = arith.maximumf %823, %824 : vector<1x128xf32>
    %826 = arith.mulf %825, %4 : vector<1x128xf32>
    %827 = arith.addf %826, %5 : vector<1x128xf32>
    %cst_177 = arith.constant dense<0.000000e+00> : vector<1xf32>
    %828 = vector.multi_reduction <add>, %827, %cst_177 [1] : vector<1x128xf32> to vector<1xf32>
    %829 = vector.shape_cast %828 : vector<1xf32> to vector<1x1xf32>
    %c0_178 = arith.constant 0 : index
    %c0_179 = arith.constant 0 : index
    %830 = vector.load %arg3[%c0_178, %c0_179] : memref<1x1xf32, #tpu.memory_space<vmem>>, vector<1x1xf32>
    tpu.vector_store %arg3[%c0_178, %c0_179], %829 {strides = array<i32>} : memref<1x1xf32, #tpu.memory_space<vmem>>, vector<1x1xf32>,
    return
  }
}

</mosaic_0001>

<llo_original>
// kernel: lstm_wp_forward.1
$region0: #{lstm_wp_forward.1}
  #allocation0 [shape = 'u32[]', space=smem, size = 0x4, offset = 0x4, fixed_abs, tag = 'smem constant byte address 0x4 - core index']
  #allocation1 [shape = 'u32[144,128]{1,0:T(1,128)}', space=vmem, size = 0x12000, scoped, tag = 'internal scratch']
  %s0 = inlined_call_operand.vmem [shape: f32[1,32], index: 0, kind: input, shape index: {}]
  %s1 = inlined_call_operand.vmem [shape: f32[8,128], index: 1, kind: input, shape index: {}]
  %s2 = inlined_call_operand.hbm [shape: f32[192,128], index: 2, kind: input, shape index: {}]
  %s3 = inlined_call_operand.hbm [shape: f32[1,1], index: 3, kind: output, shape index: {}]
  %s4 = sld [smem:[#allocation0]]
  $region26: #{lstm_wp_forward.1} parent=0
    _
  %s6 = ssub.s32 1, %s4
  %s7 = scalar_select 0, %s6, %s4
  $region1: #{lstm_wp_forward.1} parent=0
    #allocation2 [shape = 'u8[98304]{0}', space=vmem, size = 0x18000, scoped, tag = 'input window, operand 2, single buffered']
    #allocation3 [shape = 's32[1]{0}', space=sflag, size = 0x4, scoped, tag = 'scoped memory for lstm_wp_forward.1']
    #allocation4 [shape = 's32[1]{0}', space=sflag, size = 0x4, scoped, tag = 'scoped memory for lstm_wp_forward.1']
    #allocation5 [shape = 'u8[512]{0}', space=vmem, size = 0x400, scoped, tag = 'output window, operand 0, single buffered']
    %8 = vsyncpa [#allocation3], 0
    %9 = vsyncpa [#allocation4], 0
    // Predicated region
    $region2: #{lstm_wp_forward.1} parent=1 // pred_check
      _
    $region3: #{lstm_wp_forward.1} parent=1 // pred_check_branch
      %11 = sbr.rel (0) target = $region5
    $region4: #{lstm_wp_forward.1} parent=1 // pred_region
      _
    $region5: #{lstm_wp_forward.1} parent=1 // pred_fallthru
      _
    // Predicated region
    $region6: #{lstm_wp_forward.1} parent=1 // pred_check
      _
    $region7: #{lstm_wp_forward.1} parent=1 // pred_check_branch
      %13 = sbr.rel (0) target = $region9
    $region8: #{lstm_wp_forward.1} parent=1 // pred_region
      _
    $region9: #{lstm_wp_forward.1} parent=1 // pred_fallthru
      _
    // Predicated region
    $region10: #{lstm_wp_forward.1} parent=1 // pred_check
      _
    $region11: #{lstm_wp_forward.1} parent=1 // pred_check_branch
      %15 = sbr.rel (0) target = $region13
    $region12: #{lstm_wp_forward.1} parent=1 // pred_region
      %s17 = ssub.s32 3072, 3072
      %18 = vsyncadd [#allocation3], %s17
      %s19 = sshll.u32 [#allocation2], 4
      %s20 = int_to_ptr.vmem [resolvable:$true] %s19
      %25 = dma.hbm_to_vmem [thread:$0]  %s2, 3072, %s20, [#allocation3], 128, 128, 8
    $region13: #{lstm_wp_forward.1} parent=1 // pred_fallthru
      _
    // Predicated region
    $region14: #{lstm_wp_forward.1} parent=1 // pred_check
      _
    $region15: #{lstm_wp_forward.1} parent=1 // pred_check_branch
      %27 = sbr.rel (0) target = $region17
    $region16: #{lstm_wp_forward.1} parent=1 // pred_region
      %28 = dma.done [#allocation3], 3072
    $region17: #{lstm_wp_forward.1} parent=1 // pred_fallthru
      _
    %v29 = vld [vmem:[%s1] sm:$0x1]
    %v30 = vld [vmem:[%s1 + $0x1] sm:$0x1]
    %v31 = vld [vmem:[%s1 + $0x2] sm:$0x1]
    %v32 = vld [vmem:[%s1 + $0x3] sm:$0x1]
    %v33 = vld [vmem:[%s1 + $0x4] sm:$0x1]
    %v34 = vld [vmem:[%s1 + $0x5] sm:$0x1]
    %v35 = vld [vmem:[#allocation2] sm:$0xff]
    %v36 = vld [vmem:[#allocation2 + $0x8] sm:$0xff]
    %v37 = vld [vmem:[#allocation2 + $0x10] sm:$0xff]
    %v38 = vld [vmem:[#allocation2 + $0x18] sm:$0xff]
    %v39 = vld [vmem:[#allocation2 + $0x20] sm:$0xff]
    %v40 = vld [vmem:[#allocation2 + $0x28] sm:$0xff]
    %v41 = vld [vmem:[#allocation2 + $0x30] sm:$0xff]
    %v42 = vld [vmem:[#allocation2 + $0x38] sm:$0xff]
    %v43 = vld [vmem:[#allocation2 + $0x40] sm:$0xff]
    %v44 = vld [vmem:[#allocation2 + $0x48] sm:$0xff]
    %v45 = vld [vmem:[#allocation2 + $0x50] sm:$0xff]
    %v46 = vld [vmem:[#allocation2 + $0x58] sm:$0xff]
    %v47 = vld [vmem:[#allocation2 + $0x60] sm:$0xff]
    %v48 = vld [vmem:[#allocation2 + $0x68] sm:$0xff]
    %v49 = vld [vmem:[#allocation2 + $0x70] sm:$0xff]
    %v50 = vld [vmem:[#allocation2 + $0x78] sm:$0xff]
    %v51 = vld [vmem:[#allocation2 + $0x80] sm:$0xff]
    %v52 = vld [vmem:[#allocation2 + $0x88] sm:$0xff]
    %v53 = vld [vmem:[#allocation2 + $0x90] sm:$0xff]
    %v54 = vld [vmem:[#allocation2 + $0x98] sm:$0xff]
    %v55 = vld [vmem:[#allocation2 + $0xa0] sm:$0xff]
    %v56 = vld [vmem:[#allocation2 + $0xa8] sm:$0xff]
    %v57 = vld [vmem:[#allocation2 + $0xb0] sm:$0xff]
    %v58 = vld [vmem:[#allocation2 + $0xb8] sm:$0xff]
    %v59 = vld [vmem:[%s0] sm:$0x1]
    %60 = vxpose.xlu0.b32.start [1/16] %v59, 128
    %61 = vxpose.xlu0.b32.cont [2/16] 0.0, 128
    %62 = vxpose.xlu0.b32.cont [3/16] 0.0, 128
    %63 = vxpose.xlu0.b32.cont [4/16] 0.0, 128
    %64 = vxpose.xlu0.b32.cont [5/16] 0.0, 128
    %65 = vxpose.xlu0.b32.cont [6/16] 0.0, 128
    %66 = vxpose.xlu0.b32.cont [7/16] 0.0, 128
    %67 = vxpose.xlu0.b32.cont [8/16] 0.0, 128
    %68 = vxpose.xlu0.b32.cont [9/16] 0.0, 128
    %69 = vxpose.xlu0.b32.cont [10/16] 0.0, 128
    %70 = vxpose.xlu0.b32.cont [11/16] 0.0, 128
    %71 = vxpose.xlu0.b32.cont [12/16] 0.0, 128
    %72 = vxpose.xlu0.b32.cont [13/16] 0.0, 128
    %73 = vxpose.xlu0.b32.cont [14/16] 0.0, 128
    %74 = vxpose.xlu0.b32.cont [15/16] 0.0, 128
    %75 = vxpose.xlu0.b32.end [16/16] 0.0, 128
    %v76 = vpop.trf.xlu0
    %v77 = vpop.trf.xlu0
    %v78 = vpop.trf.xlu0
    %v79 = vpop.trf.xlu0
    %v80 = vpop.trf.xlu0
    %v81 = vpop.trf.xlu0
    %v82 = vpop.trf.xlu0
    %v83 = vpop.trf.xlu0
    %v84 = vpop.trf.xlu0
    %v85 = vpop.trf.xlu0
    %v86 = vpop.trf.xlu0
    %v87 = vpop.trf.xlu0
    %v88 = vpop.trf.xlu0
    %v89 = vpop.trf.xlu0
    %v90 = vpop.trf.xlu0
    %v91 = vpop.trf.xlu0
    %93 = vset.pattern.permute.xlu0 0
    %94 = vperm.xlu0 %93, %v76
    %v95 = vpop.permute.xlu0 %94
    %98 = vset.pattern.permute.xlu0 0
    %99 = vperm.xlu0 %98, %v77
    %v100 = vpop.permute.xlu0 %99
    %103 = vset.pattern.permute.xlu0 0
    %104 = vperm.xlu0 %103, %v78
    %v105 = vpop.permute.xlu0 %104
    %108 = vset.pattern.permute.xlu0 0
    %109 = vperm.xlu0 %108, %v79
    %v110 = vpop.permute.xlu0 %109
    %v112 = vlaneseq
    %v113 = vshrl.u32 %v112, 7
    %v114 = vsub.s32 0, %v113
    %v115 = vrot.slane %v29, %v114
    %v116 = vmul.f32 %v95, %v115
    %v117 = vmul.f32 %v100, %v115
    %v118 = vmul.f32 %v105, %v115
    %v119 = vmul.f32 %v110, %v115
    %v120 = vlaneseq
    %v121 = vshrl.u32 %v120, 7
    %v122 = vsub.s32 0, %v121
    %v123 = vrot.slane %v30, %v122
    %v124 = vadd.f32 %v116, %v123
    %v125 = vadd.f32 %v117, %v123
    %v126 = vadd.f32 %v118, %v123
    %v127 = vadd.f32 %v119, %v123
    %128 = vxpose.xlu0.b32.start [1/16] 0.0, 128
    %129 = vxpose.xlu0.b32.cont [2/16] 0.0, 128
    %130 = vxpose.xlu0.b32.cont [3/16] 0.0, 128
    %131 = vxpose.xlu0.b32.cont [4/16] 0.0, 128
    %132 = vxpose.xlu0.b32.cont [5/16] 0.0, 128
    %133 = vxpose.xlu0.b32.cont [6/16] 0.0, 128
    %134 = vxpose.xlu0.b32.cont [7/16] 0.0, 128
    %135 = vxpose.xlu0.b32.cont [8/16] 0.0, 128
    %136 = vxpose.xlu0.b32.cont [9/16] 0.0, 128
    %137 = vxpose.xlu0.b32.cont [10/16] 0.0, 128
    %138 = vxpose.xlu0.b32.cont [11/16] 0.0, 128
    %139 = vxpose.xlu0.b32.cont [12/16] 0.0, 128
    %140 = vxpose.xlu0.b32.cont [13/16] 0.0, 128
    %141 = vxpose.xlu0.b32.cont [14/16] 0.0, 128
    %142 = vxpose.xlu0.b32.cont [15/16] 0.0, 128
    %143 = vxpose.xlu0.b32.end [16/16] 0.0, 128
    %v144 = vpop.trf.xlu0
    %v145 = vpop.trf.xlu0
    %v146 = vpop.trf.xlu0
    %v147 = vpop.trf.xlu0
    %v148 = vpop.trf.xlu0
    %v149 = vpop.trf.xlu0
    %v150 = vpop.trf.xlu0
    %v151 = vpop.trf.xlu0
    %v152 = vpop.trf.xlu0
    %v153 = vpop.trf.xlu0
    %v154 = vpop.trf.xlu0
    %v155 = vpop.trf.xlu0
    %v156 = vpop.trf.xlu0
    %v157 = vpop.trf.xlu0
    %v158 = vpop.trf.xlu0
    %v159 = vpop.trf.xlu0
    %161 = vset.pattern.permute.xlu0 0
    %162 = vperm.xlu0 %161, %v144
    %v163 = vpop.permute.xlu0 %162
    %166 = vset.pattern.permute.xlu0 0
    %167 = vperm.xlu0 %166, %v145
    %v168 = vpop.permute.xlu0 %167
    %171 = vset.pattern.permute.xlu0 0
    %172 = vperm.xlu0 %171, %v146
    %v173 = vpop.permute.xlu0 %172
    %176 = vset.pattern.permute.xlu0 0
    %177 = vperm.xlu0 %176, %v147
    %v178 = vpop.permute.xlu0 %177
    %v180 = vmul.f32 %v163, %v35
    %v181 = vmul.f32 %v168, %v36
    %v182 = vmul.f32 %v173, %v37
    %v183 = vmul.f32 %v178, %v38
    %v184 = vadd.f32 %v180, %v181
    %v185 = vadd.f32 %v184, %v182
    %v186 = vadd.f32 %v185, %v183
    %v187 = vrot.slane %v186, 4
    %v188 = vadd.f32 %v186, %v187
    %v189 = vrot.slane %v188, 2
    %v190 = vadd.f32 %v188, %v189
    %v191 = vrot.slane %v190, 1
    %v192 = vadd.f32 %v190, %v191
    %v193 = vadd.f32 %v124, %v192
    %v194 = vtanh.pop %v193
    %v195 = vmul.f32 %v194, 0.5
    %v196 = vadd.f32 %v195, 0.5
    %v197 = vmul.f32 %v196, 2.0
    %v198 = vsub.f32 %v197, 1.0
    %v199 = vmul.f32 %v196, 0.0
    %201 = vrot.lane.b32.xlu0 %v198, 64
    %v202 = vpop.permute.xlu0 %201
    %v204 = vmul.f32 %v196, %v202
    %206 = vrot.lane.b32.xlu0 %v204, 32
    %v207 = vpop.permute.xlu0 %206
    %v209 = vadd.f32 %v199, %v207
    %v210 = vtanh.pop %v209
    %212 = vrot.lane.b32.xlu0 %v210, 64
    %v213 = vpop.permute.xlu0 %212
    %v215 = vmul.f32 %v196, %v213
    %217 = vrot.lane.b32.xlu0 %v215, 32
    %v218 = vpop.permute.xlu0 %217
    %220 = vxpose.xlu0.b32.start [1/16] %v218, 128
    %221 = vxpose.xlu0.b32.cont [2/16] 0.0, 128
    %222 = vxpose.xlu0.b32.cont [3/16] 0.0, 128
    %223 = vxpose.xlu0.b32.cont [4/16] 0.0, 128
    %224 = vxpose.xlu0.b32.cont [5/16] 0.0, 128
    %225 = vxpose.xlu0.b32.cont [6/16] 0.0, 128
    %226 = vxpose.xlu0.b32.cont [7/16] 0.0, 128
    %227 = vxpose.xlu0.b32.cont [8/16] 0.0, 128
    %228 = vxpose.xlu0.b32.cont [9/16] 0.0, 128
    %229 = vxpose.xlu0.b32.cont [10/16] 0.0, 128
    %230 = vxpose.xlu0.b32.cont [11/16] 0.0, 128
    %231 = vxpose.xlu0.b32.cont [12/16] 0.0, 128
    %232 = vxpose.xlu0.b32.cont [13/16] 0.0, 128
    %233 = vxpose.xlu0.b32.cont [14/16] 0.0, 128
    %234 = vxpose.xlu0.b32.cont [15/16] 0.0, 128
    %235 = vxpose.xlu0.b32.end [16/16] 0.0, 128
    %v236 = vpop.trf.xlu0
    %v237 = vpop.trf.xlu0
    %v238 = vpop.trf.xlu0
    %v239 = vpop.trf.xlu0
    %v240 = vpop.trf.xlu0
    %v241 = vpop.trf.xlu0
    %v242 = vpop.trf.xlu0
    %v243 = vpop.trf.xlu0
    %v244 = vpop.trf.xlu0
    %v245 = vpop.trf.xlu0
    %v246 = vpop.trf.xlu0
    %v247 = vpop.trf.xlu0
    %v248 = vpop.trf.xlu0
    %v249 = vpop.trf.xlu0
    %v250 = vpop.trf.xlu0
    %v251 = vpop.trf.xlu0
    %253 = vset.pattern.permute.xlu0 0
    %254 = vperm.xlu0 %253, %v236
    %v255 = vpop.permute.xlu0 %254
    %258 = vset.pattern.permute.xlu0 0
    %259 = vperm.xlu0 %258, %v237
    %v260 = vpop.permute.xlu0 %259
    %263 = vset.pattern.permute.xlu0 0
    %264 = vperm.xlu0 %263, %v238
    %v265 = vpop.permute.xlu0 %264
    %268 = vset.pattern.permute.xlu0 0
    %269 = vperm.xlu0 %268, %v239
    %v270 = vpop.permute.xlu0 %269
    %v272 = vmul.f32 %v255, %v35
    %v273 = vmul.f32 %v260, %v36
    %v274 = vmul.f32 %v265, %v37
    %v275 = vmul.f32 %v270, %v38
    %v276 = vadd.f32 %v272, %v273
    %v277 = vadd.f32 %v276, %v274
    %v278 = vadd.f32 %v277, %v275
    %v279 = vrot.slane %v278, 4
    %v280 = vadd.f32 %v278, %v279
    %v281 = vrot.slane %v280, 2
    %v282 = vadd.f32 %v280, %v281
    %v283 = vrot.slane %v282, 1
    %v284 = vadd.f32 %v282, %v283
    %v285 = vadd.f32 %v124, %v284
    %v286 = vtanh.pop %v285
    %v287 = vmul.f32 %v286, 0.5
    %v288 = vadd.f32 %v287, 0.5
    %v289 = vmul.f32 %v288, 2.0
    %v290 = vsub.f32 %v289, 1.0
    %v292 = vrot.slane %v209, 7
    %v294 = vmul.f32 %v288, %v292
    %296 = vrot.lane.b32.xlu0 %v290, 64
    %v297 = vpop.permute.xlu0 %296
    %v299 = vmul.f32 %v288, %v297
    %301 = vrot.lane.b32.xlu0 %v299, 32
    %v302 = vpop.permute.xlu0 %301
    %v304 = vadd.f32 %v294, %v302
    %v305 = vtanh.pop %v304
    %307 = vrot.lane.b32.xlu0 %v305, 64
    %v308 = vpop.permute.xlu0 %307
    %v310 = vmul.f32 %v288, %v308
    %v312 = vrot.slane %v310, 1
    %313 = vrot.lane.b32.xlu0 %v312, 32
    %v314 = vpop.permute.xlu0 %313
    %316 = vxpose.xlu0.b32.start [1/16] %v314, 128
    %317 = vxpose.xlu0.b32.cont [2/16] 0.0, 128
    %318 = vxpose.xlu0.b32.cont [3/16] 0.0, 128
    %319 = vxpose.xlu0.b32.cont [4/16] 0.0, 128
    %320 = vxpose.xlu0.b32.cont [5/16] 0.0, 128
    %321 = vxpose.xlu0.b32.cont [6/16] 0.0, 128
    %322 = vxpose.xlu0.b32.cont [7/16] 0.0, 128
    %323 = vxpose.xlu0.b32.cont [8/16] 0.0, 128
    %324 = vxpose.xlu0.b32.cont [9/16] 0.0, 128
    %325 = vxpose.xlu0.b32.cont [10/16] 0.0, 128
    %326 = vxpose.xlu0.b32.cont [11/16] 0.0, 128
    %327 = vxpose.xlu0.b32.cont [12/16] 0.0, 128
    %328 = vxpose.xlu0.b32.cont [13/16] 0.0, 128
    %329 = vxpose.xlu0.b32.cont [14/16] 0.0, 128
    %330 = vxpose.xlu0.b32.cont [15/16] 0.0, 128
    %331 = vxpose.xlu0.b32.end [16/16] 0.0, 128
    %v332 = vpop.trf.xlu0
    %v333 = vpop.trf.xlu0
    %v334 = vpop.trf.xlu0
    %v335 = vpop.trf.xlu0
    %v336 = vpop.trf.xlu0
    %v337 = vpop.trf.xlu0
    %v338 = vpop.trf.xlu0
    %v339 = vpop.trf.xlu0
    %v340 = vpop.trf.xlu0
    %v341 = vpop.trf.xlu0
    %v342 = vpop.trf.xlu0
    %v343 = vpop.trf.xlu0
    %v344 = vpop.trf.xlu0
    %v345 = vpop.trf.xlu0
    %v346 = vpop.trf.xlu0
    %v347 = vpop.trf.xlu0
    %349 = vset.pattern.permute.xlu0 0
    %350 = vperm.xlu0 %349, %v332
    %v351 = vpop.permute.xlu0 %350
    %354 = vset.pattern.permute.xlu0 0
    %355 = vperm.xlu0 %354, %v333
    %v356 = vpop.permute.xlu0 %355
    %359 = vset.pattern.permute.xlu0 0
    %360 = vperm.xlu0 %359, %v334
    %v361 = vpop.permute.xlu0 %360
    %364 = vset.pattern.permute.xlu0 0
    %365 = vperm.xlu0 %364, %v335
    %v366 = vpop.permute.xlu0 %365
    %v368 = vmul.f32 %v351, %v35
    %v369 = vmul.f32 %v356, %v36
    %v370 = vmul.f32 %v361, %v37
    %v371 = vmul.f32 %v366, %v38
    %v372 = vadd.f32 %v368, %v369
    %v373 = vadd.f32 %v372, %v370
    %v374 = vadd.f32 %v373, %v371
    %v375 = vrot.slane %v374, 4
    %v376 = vadd.f32 %v374, %v375
    %v377 = vrot.slane %v376, 2
    %v378 = vadd.f32 %v376, %v377
    %v379 = vrot.slane %v378, 1
    %v380 = vadd.f32 %v378, %v379
    %v381 = vadd.f32 %v124, %v380
    %v382 = vtanh.pop %v381
    %v383 = vmul.f32 %v382, 0.5
    %v384 = vadd.f32 %v383, 0.5
    %v385 = vmul.f32 %v384, 2.0
    %v386 = vsub.f32 %v385, 1.0
    %v388 = vrot.slane %v304, 7
    %v390 = vmul.f32 %v384, %v388
    %392 = vrot.lane.b32.xlu0 %v386, 64
    %v393 = vpop.permute.xlu0 %392
    %v395 = vmul.f32 %v384, %v393
    %397 = vrot.lane.b32.xlu0 %v395, 32
    %v398 = vpop.permute.xlu0 %397
    %v400 = vadd.f32 %v390, %v398
    %v401 = vtanh.pop %v400
    %403 = vrot.lane.b32.xlu0 %v401, 64
    %v404 = vpop.permute.xlu0 %403
    %v406 = vmul.f32 %v384, %v404
    %v408 = vrot.slane %v406, 2
    %409 = vrot.lane.b32.xlu0 %v408, 32
    %v410 = vpop.permute.xlu0 %409
    %412 = vxpose.xlu0.b32.start [1/16] %v410, 128
    %413 = vxpose.xlu0.b32.cont [2/16] 0.0, 128
    %414 = vxpose.xlu0.b32.cont [3/16] 0.0, 128
    %415 = vxpose.xlu0.b32.cont [4/16] 0.0, 128
    %416 = vxpose.xlu0.b32.cont [5/16] 0.0, 128
    %417 = vxpose.xlu0.b32.cont [6/16] 0.0, 128
    %418 = vxpose.xlu0.b32.cont [7/16] 0.0, 128
    %419 = vxpose.xlu0.b32.cont [8/16] 0.0, 128
    %420 = vxpose.xlu0.b32.cont [9/16] 0.0, 128
    %421 = vxpose.xlu0.b32.cont [10/16] 0.0, 128
    %422 = vxpose.xlu0.b32.cont [11/16] 0.0, 128
    %423 = vxpose.xlu0.b32.cont [12/16] 0.0, 128
    %424 = vxpose.xlu0.b32.cont [13/16] 0.0, 128
    %425 = vxpose.xlu0.b32.cont [14/16] 0.0, 128
    %426 = vxpose.xlu0.b32.cont [15/16] 0.0, 128
    %427 = vxpose.xlu0.b32.end [16/16] 0.0, 128
    %v428 = vpop.trf.xlu0
    %v429 = vpop.trf.xlu0
    %v430 = vpop.trf.xlu0
    %v431 = vpop.trf.xlu0
    %v432 = vpop.trf.xlu0
    %v433 = vpop.trf.xlu0
    %v434 = vpop.trf.xlu0
    %v435 = vpop.trf.xlu0
    %v436 = vpop.trf.xlu0
    %v437 = vpop.trf.xlu0
    %v438 = vpop.trf.xlu0
    %v439 = vpop.trf.xlu0
    %v440 = vpop.trf.xlu0
    %v441 = vpop.trf.xlu0
    %v442 = vpop.trf.xlu0
    %v443 = vpop.trf.xlu0
    %445 = vset.pattern.permute.xlu0 0
    %446 = vperm.xlu0 %445, %v428
    %v447 = vpop.permute.xlu0 %446
    %450 = vset.pattern.permute.xlu0 0
    %451 = vperm.xlu0 %450, %v429
    %v452 = vpop.permute.xlu0 %451
    %455 = vset.pattern.permute.xlu0 0
    %456 = vperm.xlu0 %455, %v430
    %v457 = vpop.permute.xlu0 %456
    %460 = vset.pattern.permute.xlu0 0
    %461 = vperm.xlu0 %460, %v431
    %v462 = vpop.permute.xlu0 %461
    %v464 = vmul.f32 %v447, %v35
    %v465 = vmul.f32 %v452, %v36
    %v466 = vmul.f32 %v457, %v37
    %v467 = vmul.f32 %v462, %v38
    %v468 = vadd.f32 %v464, %v465
    %v469 = vadd.f32 %v468, %v466
    %v470 = vadd.f32 %v469, %v467
    %v471 = vrot.slane %v470, 4
    %v472 = vadd.f32 %v470, %v471
    %v473 = vrot.slane %v472, 2
    %v474 = vadd.f32 %v472, %v473
    %v475 = vrot.slane %v474, 1
    %v476 = vadd.f32 %v474, %v475
    %v477 = vadd.f32 %v124, %v476
    %v478 = vtanh.pop %v477
    %v479 = vmul.f32 %v478, 0.5
    %v480 = vadd.f32 %v479, 0.5
    %v481 = vmul.f32 %v480, 2.0
    %v482 = vsub.f32 %v481, 1.0
    %v484 = vrot.slane %v400, 7
    %v486 = vmul.f32 %v480, %v484
    %488 = vrot.lane.b32.xlu0 %v482, 64
    %v489 = vpop.permute.xlu0 %488
    %v491 = vmul.f32 %v480, %v489
    %493 = vrot.lane.b32.xlu0 %v491, 32
    %v494 = vpop.permute.xlu0 %493
    %v496 = vadd.f32 %v486, %v494
    %v497 = vtanh.pop %v496
    %499 = vrot.lane.b32.xlu0 %v497, 64
    %v500 = vpop.permute.xlu0 %499
    %v502 = vmul.f32 %v480, %v500
    %v504 = vrot.slane %v502, 3
    %505 = vrot.lane.b32.xlu0 %v504, 32
    %v506 = vpop.permute.xlu0 %505
    %508 = vxpose.xlu0.b32.start [1/16] %v506, 128
    %509 = vxpose.xlu0.b32.cont [2/16] 0.0, 128
    %510 = vxpose.xlu0.b32.cont [3/16] 0.0, 128
    %511 = vxpose.xlu0.b32.cont [4/16] 0.0, 128
    %512 = vxpose.xlu0.b32.cont [5/16] 0.0, 128
    %513 = vxpose.xlu0.b32.cont [6/16] 0.0, 128
    %514 = vxpose.xlu0.b32.cont [7/16] 0.0, 128
    %515 = vxpose.xlu0.b32.cont [8/16] 0.0, 128
    %516 = vxpose.xlu0.b32.cont [9/16] 0.0, 128
    %517 = vxpose.xlu0.b32.cont [10/16] 0.0, 128
    %518 = vxpose.xlu0.b32.cont [11/16] 0.0, 128
    %519 = vxpose.xlu0.b32.cont [12/16] 0.0, 128
    %520 = vxpose.xlu0.b32.cont [13/16] 0.0, 128
    %521 = vxpose.xlu0.b32.cont [14/16] 0.0, 128
    %522 = vxpose.xlu0.b32.cont [15/16] 0.0, 128
    %523 = vxpose.xlu0.b32.end [16/16] 0.0, 128
    %v524 = vpop.trf.xlu0
    %v525 = vpop.trf.xlu0
    %v526 = vpop.trf.xlu0
    %v527 = vpop.trf.xlu0
    %v528 = vpop.trf.xlu0
    %v529 = vpop.trf.xlu0
    %v530 = vpop.trf.xlu0
    %v531 = vpop.trf.xlu0
    %v532 = vpop.trf.xlu0
    %v533 = vpop.trf.xlu0
    %v534 = vpop.trf.xlu0
    %v535 = vpop.trf.xlu0
    %v536 = vpop.trf.xlu0
    %v537 = vpop.trf.xlu0
    %v538 = vpop.trf.xlu0
    %v539 = vpop.trf.xlu0
    %541 = vset.pattern.permute.xlu0 0
    %542 = vperm.xlu0 %541, %v524
    %v543 = vpop.permute.xlu0 %542
    %546 = vset.pattern.permute.xlu0 0
    %547 = vperm.xlu0 %546, %v525
    %v548 = vpop.permute.xlu0 %547
    %551 = vset.pattern.permute.xlu0 0
    %552 = vperm.xlu0 %551, %v526
    %v553 = vpop.permute.xlu0 %552
    %556 = vset.pattern.permute.xlu0 0
    %557 = vperm.xlu0 %556, %v527
    %v558 = vpop.permute.xlu0 %557
    %v560 = vmul.f32 %v543, %v35
    %v561 = vmul.f32 %v548, %v36
    %v562 = vmul.f32 %v553, %v37
    %v563 = vmul.f32 %v558, %v38
    %v564 = vadd.f32 %v560, %v561
    %v565 = vadd.f32 %v564, %v562
    %v566 = vadd.f32 %v565, %v563
    %v567 = vrot.slane %v566, 4
    %v568 = vadd.f32 %v566, %v567
    %v569 = vrot.slane %v568, 2
    %v570 = vadd.f32 %v568, %v569
    %v571 = vrot.slane %v570, 1
    %v572 = vadd.f32 %v570, %v571
    %v573 = vadd.f32 %v124, %v572
    %v574 = vtanh.pop %v573
    %v575 = vmul.f32 %v574, 0.5
    %v576 = vadd.f32 %v575, 0.5
    %v577 = vmul.f32 %v576, 2.0
    %v578 = vsub.f32 %v577, 1.0
    %v580 = vrot.slane %v496, 7
    %v582 = vmul.f32 %v576, %v580
    %584 = vrot.lane.b32.xlu0 %v578, 64
    %v585 = vpop.permute.xlu0 %584
    %v587 = vmul.f32 %v576, %v585
    %589 = vrot.lane.b32.xlu0 %v587, 32
    %v590 = vpop.permute.xlu0 %589
    %v592 = vadd.f32 %v582, %v590
    %v593 = vtanh.pop %v592
    %595 = vrot.lane.b32.xlu0 %v593, 64
    %v596 = vpop.permute.xlu0 %595
    %v598 = vmul.f32 %v576, %v596
    %v600 = vrot.slane %v598, 4
    %601 = vrot.lane.b32.xlu0 %v600, 32
    %v602 = vpop.permute.xlu0 %601
    %604 = vxpose.xlu0.b32.start [1/16] %v602, 128
    %605 = vxpose.xlu0.b32.cont [2/16] 0.0, 128
    %606 = vxpose.xlu0.b32.cont [3/16] 0.0, 128
    %607 = vxpose.xlu0.b32.cont [4/16] 0.0, 128
    %608 = vxpose.xlu0.b32.cont [5/16] 0.0, 128
    %609 = vxpose.xlu0.b32.cont [6/16] 0.0, 128
    %610 = vxpose.xlu0.b32.cont [7/16] 0.0, 128
    %611 = vxpose.xlu0.b32.cont [8/16] 0.0, 128
    %612 = vxpose.xlu0.b32.cont [9/16] 0.0, 128
    %613 = vxpose.xlu0.b32.cont [10/16] 0.0, 128
    %614 = vxpose.xlu0.b32.cont [11/16] 0.0, 128
    %615 = vxpose.xlu0.b32.cont [12/16] 0.0, 128
    %616 = vxpose.xlu0.b32.cont [13/16] 0.0, 128
    %617 = vxpose.xlu0.b32.cont [14/16] 0.0, 128
    %618 = vxpose.xlu0.b32.cont [15/16] 0.0, 128
    %619 = vxpose.xlu0.b32.end [16/16] 0.0, 128
    %v620 = vpop.trf.xlu0
    %v621 = vpop.trf.xlu0
    %v622 = vpop.trf.xlu0
    %v623 = vpop.trf.xlu0
    %v624 = vpop.trf.xlu0
    %v625 = vpop.trf.xlu0
    %v626 = vpop.trf.xlu0
    %v627 = vpop.trf.xlu0
    %v628 = vpop.trf.xlu0
    %v629 = vpop.trf.xlu0
    %v630 = vpop.trf.xlu0
    %v631 = vpop.trf.xlu0
    %v632 = vpop.trf.xlu0
    %v633 = vpop.trf.xlu0
    %v634 = vpop.trf.xlu0
    %v635 = vpop.trf.xlu0
    %637 = vset.pattern.permute.xlu0 0
    %638 = vperm.xlu0 %637, %v620
    %v639 = vpop.permute.xlu0 %638
    %642 = vset.pattern.permute.xlu0 0
    %643 = vperm.xlu0 %642, %v621
    %v644 = vpop.permute.xlu0 %643
    %647 = vset.pattern.permute.xlu0 0
    %648 = vperm.xlu0 %647, %v622
    %v649 = vpop.permute.xlu0 %648
    %652 = vset.pattern.permute.xlu0 0
    %653 = vperm.xlu0 %652, %v623
    %v654 = vpop.permute.xlu0 %653
    %v656 = vmul.f32 %v639, %v35
    %v657 = vmul.f32 %v644, %v36
    %v658 = vmul.f32 %v649, %v37
    %v659 = vmul.f32 %v654, %v38
    %v660 = vadd.f32 %v656, %v657
    %v661 = vadd.f32 %v660, %v658
    %v662 = vadd.f32 %v661, %v659
    %v663 = vrot.slane %v662, 4
    %v664 = vadd.f32 %v662, %v663
    %v665 = vrot.slane %v664, 2
    %v666 = vadd.f32 %v664, %v665
    %v667 = vrot.slane %v666, 1
    %v668 = vadd.f32 %v666, %v667
    %v669 = vadd.f32 %v124, %v668
    %v670 = vtanh.pop %v669
    %v671 = vmul.f32 %v670, 0.5
    %v672 = vadd.f32 %v671, 0.5
    %v673 = vmul.f32 %v672, 2.0
    %v674 = vsub.f32 %v673, 1.0
    %v676 = vrot.slane %v592, 7
    %v678 = vmul.f32 %v672, %v676
    %680 = vrot.lane.b32.xlu0 %v674, 64
    %v681 = vpop.permute.xlu0 %680
    %v683 = vmul.f32 %v672, %v681
    %685 = vrot.lane.b32.xlu0 %v683, 32
    %v686 = vpop.permute.xlu0 %685
    %v688 = vadd.f32 %v678, %v686
    %v689 = vtanh.pop %v688
    %691 = vrot.lane.b32.xlu0 %v689, 64
    %v692 = vpop.permute.xlu0 %691
    %v694 = vmul.f32 %v672, %v692
    %v696 = vrot.slane %v694, 5
    %697 = vrot.lane.b32.xlu0 %v696, 32
    %v698 = vpop.permute.xlu0 %697
    %700 = vxpose.xlu0.b32.start [1/16] %v698, 128
    %701 = vxpose.xlu0.b32.cont [2/16] 0.0, 128
    %702 = vxpose.xlu0.b32.cont [3/16] 0.0, 128
    %703 = vxpose.xlu0.b32.cont [4/16] 0.0, 128
    %704 = vxpose.xlu0.b32.cont [5/16] 0.0, 128
    %705 = vxpose.xlu0.b32.cont [6/16] 0.0, 128
    %706 = vxpose.xlu0.b32.cont [7/16] 0.0, 128
    %707 = vxpose.xlu0.b32.cont [8/16] 0.0, 128
    %708 = vxpose.xlu0.b32.cont [9/16] 0.0, 128
    %709 = vxpose.xlu0.b32.cont [10/16] 0.0, 128
    %710 = vxpose.xlu0.b32.cont [11/16] 0.0, 128
    %711 = vxpose.xlu0.b32.cont [12/16] 0.0, 128
    %712 = vxpose.xlu0.b32.cont [13/16] 0.0, 128
    %713 = vxpose.xlu0.b32.cont [14/16] 0.0, 128
    %714 = vxpose.xlu0.b32.cont [15/16] 0.0, 128
    %715 = vxpose.xlu0.b32.end [16/16] 0.0, 128
    %v716 = vpop.trf.xlu0
    %v717 = vpop.trf.xlu0
    %v718 = vpop.trf.xlu0
    %v719 = vpop.trf.xlu0
    %v720 = vpop.trf.xlu0
    %v721 = vpop.trf.xlu0
    %v722 = vpop.trf.xlu0
    %v723 = vpop.trf.xlu0
    %v724 = vpop.trf.xlu0
    %v725 = vpop.trf.xlu0
    %v726 = vpop.trf.xlu0
    %v727 = vpop.trf.xlu0
    %v728 = vpop.trf.xlu0
    %v729 = vpop.trf.xlu0
    %v730 = vpop.trf.xlu0
    %v731 = vpop.trf.xlu0
    %733 = vset.pattern.permute.xlu0 0
    %734 = vperm.xlu0 %733, %v716
    %v735 = vpop.permute.xlu0 %734
    %738 = vset.pattern.permute.xlu0 0
    %739 = vperm.xlu0 %738, %v717
    %v740 = vpop.permute.xlu0 %739
    %743 = vset.pattern.permute.xlu0 0
    %744 = vperm.xlu0 %743, %v718
    %v745 = vpop.permute.xlu0 %744
    %748 = vset.pattern.permute.xlu0 0
    %749 = vperm.xlu0 %748, %v719
    %v750 = vpop.permute.xlu0 %749
    %v752 = vmul.f32 %v735, %v35
    %v753 = vmul.f32 %v740, %v36
    %v754 = vmul.f32 %v745, %v37
    %v755 = vmul.f32 %v750, %v38
    %v756 = vadd.f32 %v752, %v753
    %v757 = vadd.f32 %v756, %v754
    %v758 = vadd.f32 %v757, %v755
    %v759 = vrot.slane %v758, 4
    %v760 = vadd.f32 %v758, %v759
    %v761 = vrot.slane %v760, 2
    %v762 = vadd.f32 %v760, %v761
    %v763 = vrot.slane %v762, 1
    %v764 = vadd.f32 %v762, %v763
    %v765 = vadd.f32 %v124, %v764
    %v766 = vtanh.pop %v765
    %v767 = vmul.f32 %v766, 0.5
    %v768 = vadd.f32 %v767, 0.5
    %v769 = vmul.f32 %v768, 2.0
    %v770 = vsub.f32 %v769, 1.0
    %v772 = vrot.slane %v688, 7
    %v774 = vmul.f32 %v768, %v772
    %776 = vrot.lane.b32.xlu0 %v770, 64
    %v777 = vpop.permute.xlu0 %776
    %v779 = vmul.f32 %v768, %v777
    %781 = vrot.lane.b32.xlu0 %v779, 32
    %v782 = vpop.permute.xlu0 %781
    %v784 = vadd.f32 %v774, %v782
    %v785 = vtanh.pop %v784
    %787 = vrot.lane.b32.xlu0 %v785, 64
    %v788 = vpop.permute.xlu0 %787
    %v790 = vmul.f32 %v768, %v788
    %v792 = vrot.slane %v790, 6
    %793 = vrot.lane.b32.xlu0 %v792, 32
    %v794 = vpop.permute.xlu0 %793
    %796 = vxpose.xlu0.b32.start [1/16] %v794, 128
    %797 = vxpose.xlu0.b32.cont [2/16] 0.0, 128
    %798 = vxpose.xlu0.b32.cont [3/16] 0.0, 128
    %799 = vxpose.xlu0.b32.cont [4/16] 0.0, 128
    %800 = vxpose.xlu0.b32.cont [5/16] 0.0, 128
    %801 = vxpose.xlu0.b32.cont [6/16] 0.0, 128
    %802 = vxpose.xlu0.b32.cont [7/16] 0.0, 128
    %803 = vxpose.xlu0.b32.cont [8/16] 0.0, 128
    %804 = vxpose.xlu0.b32.cont [9/16] 0.0, 128
    %805 = vxpose.xlu0.b32.cont [10/16] 0.0, 128
    %806 = vxpose.xlu0.b32.cont [11/16] 0.0, 128
    %807 = vxpose.xlu0.b32.cont [12/16] 0.0, 128
    %808 = vxpose.xlu0.b32.cont [13/16] 0.0, 128
    %809 = vxpose.xlu0.b32.cont [14/16] 0.0, 128
    %810 = vxpose.xlu0.b32.cont [15/16] 0.0, 128
    %811 = vxpose.xlu0.b32.end [16/16] 0.0, 128
    %v812 = vpop.trf.xlu0
    %v813 = vpop.trf.xlu0
    %v814 = vpop.trf.xlu0
    %v815 = vpop.trf.xlu0
    %v816 = vpop.trf.xlu0
    %v817 = vpop.trf.xlu0
    %v818 = vpop.trf.xlu0
    %v819 = vpop.trf.xlu0
    %v820 = vpop.trf.xlu0
    %v821 = vpop.trf.xlu0
    %v822 = vpop.trf.xlu0
    %v823 = vpop.trf.xlu0
    %v824 = vpop.trf.xlu0
    %v825 = vpop.trf.xlu0
    %v826 = vpop.trf.xlu0
    %v827 = vpop.trf.xlu0
    %829 = vset.pattern.permute.xlu0 0
    %830 = vperm.xlu0 %829, %v812
    %v831 = vpop.permute.xlu0 %830
    %834 = vset.pattern.permute.xlu0 0
    %835 = vperm.xlu0 %834, %v813
    %v836 = vpop.permute.xlu0 %835
    %839 = vset.pattern.permute.xlu0 0
    %840 = vperm.xlu0 %839, %v814
    %v841 = vpop.permute.xlu0 %840
    %844 = vset.pattern.permute.xlu0 0
    %845 = vperm.xlu0 %844, %v815
    %v846 = vpop.permute.xlu0 %845
    %v848 = vmul.f32 %v831, %v35
    %v849 = vmul.f32 %v836, %v36
    %v850 = vmul.f32 %v841, %v37
    %v851 = vmul.f32 %v846, %v38
    %v852 = vadd.f32 %v848, %v849
    %v853 = vadd.f32 %v852, %v850
    %v854 = vadd.f32 %v853, %v851
    %v855 = vrot.slane %v854, 4
    %v856 = vadd.f32 %v854, %v855
    %v857 = vrot.slane %v856, 2
    %v858 = vadd.f32 %v856, %v857
    %v859 = vrot.slane %v858, 1
    %v860 = vadd.f32 %v858, %v859
    %v861 = vadd.f32 %v124, %v860
    %v862 = vtanh.pop %v861
    %v863 = vmul.f32 %v862, 0.5
    %v864 = vadd.f32 %v863, 0.5
    %v865 = vmul.f32 %v864, 2.0
    %v866 = vsub.f32 %v865, 1.0
    %v868 = vrot.slane %v784, 7
    %v870 = vmul.f32 %v864, %v868
    %872 = vrot.lane.b32.xlu0 %v866, 64
    %v873 = vpop.permute.xlu0 %872
    %v875 = vmul.f32 %v864, %v873
    %877 = vrot.lane.b32.xlu0 %v875, 32
    %v878 = vpop.permute.xlu0 %877
    %v880 = vadd.f32 %v870, %v878
    %v881 = vtanh.pop %v880
    %883 = vrot.lane.b32.xlu0 %v881, 64
    %v884 = vpop.permute.xlu0 %883
    %v886 = vmul.f32 %v864, %v884
    %v888 = vrot.slane %v886, 7
    %889 = vrot.lane.b32.xlu0 %v888, 32
    %v890 = vpop.permute.xlu0 %889
    %892 = vxpose.xlu0.b32.start [1/16] %v890, 128
    %893 = vxpose.xlu0.b32.cont [2/16] 0.0, 128
    %894 = vxpose.xlu0.b32.cont [3/16] 0.0, 128
    %895 = vxpose.xlu0.b32.cont [4/16] 0.0, 128
    %896 = vxpose.xlu0.b32.cont [5/16] 0.0, 128
    %897 = vxpose.xlu0.b32.cont [6/16] 0.0, 128
    %898 = vxpose.xlu0.b32.cont [7/16] 0.0, 128
    %899 = vxpose.xlu0.b32.cont [8/16] 0.0, 128
    %900 = vxpose.xlu0.b32.cont [9/16] 0.0, 128
    %901 = vxpose.xlu0.b32.cont [10/16] 0.0, 128
    %902 = vxpose.xlu0.b32.cont [11/16] 0.0, 128
    %903 = vxpose.xlu0.b32.cont [12/16] 0.0, 128
    %904 = vxpose.xlu0.b32.cont [13/16] 0.0, 128
    %905 = vxpose.xlu0.b32.cont [14/16] 0.0, 128
    %906 = vxpose.xlu0.b32.cont [15/16] 0.0, 128
    %907 = vxpose.xlu0.b32.end [16/16] 0.0, 128
    %v908 = vpop.trf.xlu0
    %v909 = vpop.trf.xlu0
    %v910 = vpop.trf.xlu0
    %v911 = vpop.trf.xlu0
    %v912 = vpop.trf.xlu0
    %v913 = vpop.trf.xlu0
    %v914 = vpop.trf.xlu0
    %v915 = vpop.trf.xlu0
    %v916 = vpop.trf.xlu0
    %v917 = vpop.trf.xlu0
    %v918 = vpop.trf.xlu0
    %v919 = vpop.trf.xlu0
    %v920 = vpop.trf.xlu0
    %v921 = vpop.trf.xlu0
    %v922 = vpop.trf.xlu0
    %v923 = vpop.trf.xlu0
    %925 = vset.pattern.permute.xlu0 0
    %926 = vperm.xlu0 %925, %v908
    %v927 = vpop.permute.xlu0 %926
    %930 = vset.pattern.permute.xlu0 0
    %931 = vperm.xlu0 %930, %v909
    %v932 = vpop.permute.xlu0 %931
    %935 = vset.pattern.permute.xlu0 0
    %936 = vperm.xlu0 %935, %v910
    %v937 = vpop.permute.xlu0 %936
    %940 = vset.pattern.permute.xlu0 0
    %941 = vperm.xlu0 %940, %v911
    %v942 = vpop.permute.xlu0 %941
    %v944 = vmul.f32 %v927, %v35
    %v945 = vmul.f32 %v932, %v36
    %v946 = vmul.f32 %v937, %v37
    %v947 = vmul.f32 %v942, %v38
    %v948 = vadd.f32 %v944, %v945
    %v949 = vadd.f32 %v948, %v946
    %v950 = vadd.f32 %v949, %v947
    %v951 = vrot.slane %v950, 4
    %v952 = vadd.f32 %v950, %v951
    %v953 = vrot.slane %v952, 2
    %v954 = vadd.f32 %v952, %v953
    %v955 = vrot.slane %v954, 1
    %v956 = vadd.f32 %v954, %v955
    %v957 = vadd.f32 %v125, %v956
    %v958 = vtanh.pop %v957
    %v959 = vmul.f32 %v958, 0.5
    %v960 = vadd.f32 %v959, 0.5
    %v961 = vmul.f32 %v960, 2.0
    %v962 = vsub.f32 %v961, 1.0
    %v964 = vrot.slane %v880, 7
    %v966 = vmul.f32 %v960, %v964
    %968 = vrot.lane.b32.xlu0 %v962, 64
    %v969 = vpop.permute.xlu0 %968
    %v971 = vmul.f32 %v960, %v969
    %973 = vrot.lane.b32.xlu0 %v971, 32
    %v974 = vpop.permute.xlu0 %973
    %v976 = vadd.f32 %v966, %v974
    %v977 = vtanh.pop %v976
    %979 = vrot.lane.b32.xlu0 %v977, 64
    %v980 = vpop.permute.xlu0 %979
    %v982 = vmul.f32 %v960, %v980
    %984 = vrot.lane.b32.xlu0 %v982, 32
    %v985 = vpop.permute.xlu0 %984
    %987 = vxpose.xlu0.b32.start [1/16] %v985, 128
    %988 = vxpose.xlu0.b32.cont [2/16] 0.0, 128
    %989 = vxpose.xlu0.b32.cont [3/16] 0.0, 128
    %990 = vxpose.xlu0.b32.cont [4/16] 0.0, 128
    %991 = vxpose.xlu0.b32.cont [5/16] 0.0, 128
    %992 = vxpose.xlu0.b32.cont [6/16] 0.0, 128
    %993 = vxpose.xlu0.b32.cont [7/16] 0.0, 128
    %994 = vxpose.xlu0.b32.cont [8/16] 0.0, 128
    %995 = vxpose.xlu0.b32.cont [9/16] 0.0, 128
    %996 = vxpose.xlu0.b32.cont [10/16] 0.0, 128
    %997 = vxpose.xlu0.b32.cont [11/16] 0.0, 128
    %998 = vxpose.xlu0.b32.cont [12/16] 0.0, 128
    %999 = vxpose.xlu0.b32.cont [13/16] 0.0, 128
    %1000 = vxpose.xlu0.b32.cont [14/16] 0.0, 128
    %1001 = vxpose.xlu0.b32.cont [15/16] 0.0, 128
    %1002 = vxpose.xlu0.b32.end [16/16] 0.0, 128
    %v1003 = vpop.trf.xlu0
    %v1004 = vpop.trf.xlu0
    %v1005 = vpop.trf.xlu0
    %v1006 = vpop.trf.xlu0
    %v1007 = vpop.trf.xlu0
    %v1008 = vpop.trf.xlu0
    %v1009 = vpop.trf.xlu0
    %v1010 = vpop.trf.xlu0
    %v1011 = vpop.trf.xlu0
    %v1012 = vpop.trf.xlu0
    %v1013 = vpop.trf.xlu0
    %v1014 = vpop.trf.xlu0
    %v1015 = vpop.trf.xlu0
    %v1016 = vpop.trf.xlu0
    %v1017 = vpop.trf.xlu0
    %v1018 = vpop.trf.xlu0
    %1020 = vset.pattern.permute.xlu0 0
    %1021 = vperm.xlu0 %1020, %v1003
    %v1022 = vpop.permute.xlu0 %1021
    %1025 = vset.pattern.permute.xlu0 0
    %1026 = vperm.xlu0 %1025, %v1004
    %v1027 = vpop.permute.xlu0 %1026
    %1030 = vset.pattern.permute.xlu0 0
    %1031 = vperm.xlu0 %1030, %v1005
    %v1032 = vpop.permute.xlu0 %1031
    %1035 = vset.pattern.permute.xlu0 0
    %1036 = vperm.xlu0 %1035, %v1006
    %v1037 = vpop.permute.xlu0 %1036
    %v1039 = vmul.f32 %v1022, %v35
    %v1040 = vmul.f32 %v1027, %v36
    %v1041 = vmul.f32 %v1032, %v37
    %v1042 = vmul.f32 %v1037, %v38
    %v1043 = vadd.f32 %v1039, %v1040
    %v1044 = vadd.f32 %v1043, %v1041
    %v1045 = vadd.f32 %v1044, %v1042
    %v1046 = vrot.slane %v1045, 4
    %v1047 = vadd.f32 %v1045, %v1046
    %v1048 = vrot.slane %v1047, 2
    %v1049 = vadd.f32 %v1047, %v1048
    %v1050 = vrot.slane %v1049, 1
    %v1051 = vadd.f32 %v1049, %v1050
    %v1052 = vadd.f32 %v125, %v1051
    %v1053 = vtanh.pop %v1052
    %v1054 = vmul.f32 %v1053, 0.5
    %v1055 = vadd.f32 %v1054, 0.5
    %v1056 = vmul.f32 %v1055, 2.0
    %v1057 = vsub.f32 %v1056, 1.0
    %v1059 = vrot.slane %v976, 7
    %v1061 = vmul.f32 %v1055, %v1059
    %1063 = vrot.lane.b32.xlu0 %v1057, 64
    %v1064 = vpop.permute.xlu0 %1063
    %v1066 = vmul.f32 %v1055, %v1064
    %1068 = vrot.lane.b32.xlu0 %v1066, 32
    %v1069 = vpop.permute.xlu0 %1068
    %v1071 = vadd.f32 %v1061, %v1069
    %v1072 = vtanh.pop %v1071
    %1074 = vrot.lane.b32.xlu0 %v1072, 64
    %v1075 = vpop.permute.xlu0 %1074
    %v1077 = vmul.f32 %v1055, %v1075
    %v1079 = vrot.slane %v1077, 1
    %1080 = vrot.lane.b32.xlu0 %v1079, 32
    %v1081 = vpop.permute.xlu0 %1080
    %1083 = vxpose.xlu0.b32.start [1/16] %v1081, 128
    %1084 = vxpose.xlu0.b32.cont [2/16] 0.0, 128
    %1085 = vxpose.xlu0.b32.cont [3/16] 0.0, 128
    %1086 = vxpose.xlu0.b32.cont [4/16] 0.0, 128
    %1087 = vxpose.xlu0.b32.cont [5/16] 0.0, 128
    %1088 = vxpose.xlu0.b32.cont [6/16] 0.0, 128
    %1089 = vxpose.xlu0.b32.cont [7/16] 0.0, 128
    %1090 = vxpose.xlu0.b32.cont [8/16] 0.0, 128
    %1091 = vxpose.xlu0.b32.cont [9/16] 0.0, 128
    %1092 = vxpose.xlu0.b32.cont [10/16] 0.0, 128
    %1093 = vxpose.xlu0.b32.cont [11/16] 0.0, 128
    %1094 = vxpose.xlu0.b32.cont [12/16] 0.0, 128
    %1095 = vxpose.xlu0.b32.cont [13/16] 0.0, 128
    %1096 = vxpose.xlu0.b32.cont [14/16] 0.0, 128
    %1097 = vxpose.xlu0.b32.cont [15/16] 0.0, 128
    %1098 = vxpose.xlu0.b32.end [16/16] 0.0, 128
    %v1099 = vpop.trf.xlu0
    %v1100 = vpop.trf.xlu0
    %v1101 = vpop.trf.xlu0
    %v1102 = vpop.trf.xlu0
    %v1103 = vpop.trf.xlu0
    %v1104 = vpop.trf.xlu0
    %v1105 = vpop.trf.xlu0
    %v1106 = vpop.trf.xlu0
    %v1107 = vpop.trf.xlu0
    %v1108 = vpop.trf.xlu0
    %v1109 = vpop.trf.xlu0
    %v1110 = vpop.trf.xlu0
    %v1111 = vpop.trf.xlu0
    %v1112 = vpop.trf.xlu0
    %v1113 = vpop.trf.xlu0
    %v1114 = vpop.trf.xlu0
    %1116 = vset.pattern.permute.xlu0 0
    %1117 = vperm.xlu0 %1116, %v1099
    %v1118 = vpop.permute.xlu0 %1117
    %1121 = vset.pattern.permute.xlu0 0
    %1122 = vperm.xlu0 %1121, %v1100
    %v1123 = vpop.permute.xlu0 %1122
    %1126 = vset.pattern.permute.xlu0 0
    %1127 = vperm.xlu0 %1126, %v1101
    %v1128 = vpop.permute.xlu0 %1127
    %1131 = vset.pattern.permute.xlu0 0
    %1132 = vperm.xlu0 %1131, %v1102
    %v1133 = vpop.permute.xlu0 %1132
    %v1135 = vmul.f32 %v1118, %v35
    %v1136 = vmul.f32 %v1123, %v36
    %v1137 = vmul.f32 %v1128, %v37
    %v1138 = vmul.f32 %v1133, %v38
    %v1139 = vadd.f32 %v1135, %v1136
    %v1140 = vadd.f32 %v1139, %v1137
    %v1141 = vadd.f32 %v1140, %v1138
    %v1142 = vrot.slane %v1141, 4
    %v1143 = vadd.f32 %v1141, %v1142
    %v1144 = vrot.slane %v1143, 2
    %v1145 = vadd.f32 %v1143, %v1144
    %v1146 = vrot.slane %v1145, 1
    %v1147 = vadd.f32 %v1145, %v1146
    %v1148 = vadd.f32 %v125, %v1147
    %v1149 = vtanh.pop %v1148
    %v1150 = vmul.f32 %v1149, 0.5
    %v1151 = vadd.f32 %v1150, 0.5
    %v1152 = vmul.f32 %v1151, 2.0
    %v1153 = vsub.f32 %v1152, 1.0
    %v1155 = vrot.slane %v1071, 7
    %v1157 = vmul.f32 %v1151, %v1155
    %1159 = vrot.lane.b32.xlu0 %v1153, 64
    %v1160 = vpop.permute.xlu0 %1159
    %v1162 = vmul.f32 %v1151, %v1160
    %1164 = vrot.lane.b32.xlu0 %v1162, 32
    %v1165 = vpop.permute.xlu0 %1164
    %v1167 = vadd.f32 %v1157, %v1165
    %v1168 = vtanh.pop %v1167
    %1170 = vrot.lane.b32.xlu0 %v1168, 64
    %v1171 = vpop.permute.xlu0 %1170
    %v1173 = vmul.f32 %v1151, %v1171
    %v1175 = vrot.slane %v1173, 2
    %1176 = vrot.lane.b32.xlu0 %v1175, 32
    %v1177 = vpop.permute.xlu0 %1176
    %1179 = vxpose.xlu0.b32.start [1/16] %v1177, 128
    %1180 = vxpose.xlu0.b32.cont [2/16] 0.0, 128
    %1181 = vxpose.xlu0.b32.cont [3/16] 0.0, 128
    %1182 = vxpose.xlu0.b32.cont [4/16] 0.0, 128
    %1183 = vxpose.xlu0.b32.cont [5/16] 0.0, 128
    %1184 = vxpose.xlu0.b32.cont [6/16] 0.0, 128
    %1185 = vxpose.xlu0.b32.cont [7/16] 0.0, 128
    %1186 = vxpose.xlu0.b32.cont [8/16] 0.0, 128
    %1187 = vxpose.xlu0.b32.cont [9/16] 0.0, 128
    %1188 = vxpose.xlu0.b32.cont [10/16] 0.0, 128
    %1189 = vxpose.xlu0.b32.cont [11/16] 0.0, 128
    %1190 = vxpose.xlu0.b32.cont [12/16] 0.0, 128
    %1191 = vxpose.xlu0.b32.cont [13/16] 0.0, 128
    %1192 = vxpose.xlu0.b32.cont [14/16] 0.0, 128
    %1193 = vxpose.xlu0.b32.cont [15/16] 0.0, 128
    %1194 = vxpose.xlu0.b32.end [16/16] 0.0, 128
    %v1195 = vpop.trf.xlu0
    %v1196 = vpop.trf.xlu0
    %v1197 = vpop.trf.xlu0
    %v1198 = vpop.trf.xlu0
    %v1199 = vpop.trf.xlu0
    %v1200 = vpop.trf.xlu0
    %v1201 = vpop.trf.xlu0
    %v1202 = vpop.trf.xlu0
    %v1203 = vpop.trf.xlu0
    %v1204 = vpop.trf.xlu0
    %v1205 = vpop.trf.xlu0
    %v1206 = vpop.trf.xlu0
    %v1207 = vpop.trf.xlu0
    %v1208 = vpop.trf.xlu0
    %v1209 = vpop.trf.xlu0
    %v1210 = vpop.trf.xlu0
    %1212 = vset.pattern.permute.xlu0 0
    %1213 = vperm.xlu0 %1212, %v1195
    %v1214 = vpop.permute.xlu0 %1213
    %1217 = vset.pattern.permute.xlu0 0
    %1218 = vperm.xlu0 %1217, %v1196
    %v1219 = vpop.permute.xlu0 %1218
    %1222 = vset.pattern.permute.xlu0 0
    %1223 = vperm.xlu0 %1222, %v1197
    %v1224 = vpop.permute.xlu0 %1223
    %1227 = vset.pattern.permute.xlu0 0
    %1228 = vperm.xlu0 %1227, %v1198
    %v1229 = vpop.permute.xlu0 %1228
    %v1231 = vmul.f32 %v1214, %v35
    %v1232 = vmul.f32 %v1219, %v36
    %v1233 = vmul.f32 %v1224, %v37
    %v1234 = vmul.f32 %v1229, %v38
    %v1235 = vadd.f32 %v1231, %v1232
    %v1236 = vadd.f32 %v1235, %v1233
    %v1237 = vadd.f32 %v1236, %v1234
    %v1238 = vrot.slane %v1237, 4
    %v1239 = vadd.f32 %v1237, %v1238
    %v1240 = vrot.slane %v1239, 2
    %v1241 = vadd.f32 %v1239, %v1240
    %v1242 = vrot.slane %v1241, 1
    %v1243 = vadd.f32 %v1241, %v1242
    %v1244 = vadd.f32 %v125, %v1243
    %v1245 = vtanh.pop %v1244
    %v1246 = vmul.f32 %v1245, 0.5
    %v1247 = vadd.f32 %v1246, 0.5
    %v1248 = vmul.f32 %v1247, 2.0
    %v1249 = vsub.f32 %v1248, 1.0
    %v1251 = vrot.slane %v1167, 7
    %v1253 = vmul.f32 %v1247, %v1251
    %1255 = vrot.lane.b32.xlu0 %v1249, 64
    %v1256 = vpop.permute.xlu0 %1255
    %v1258 = vmul.f32 %v1247, %v1256
    %1260 = vrot.lane.b32.xlu0 %v1258, 32
    %v1261 = vpop.permute.xlu0 %1260
    %v1263 = vadd.f32 %v1253, %v1261
    %v1264 = vtanh.pop %v1263
    %1266 = vrot.lane.b32.xlu0 %v1264, 64
    %v1267 = vpop.permute.xlu0 %1266
    %v1269 = vmul.f32 %v1247, %v1267
    %v1271 = vrot.slane %v1269, 3
    %1272 = vrot.lane.b32.xlu0 %v1271, 32
    %v1273 = vpop.permute.xlu0 %1272
    %1275 = vxpose.xlu0.b32.start [1/16] %v1273, 128
    %1276 = vxpose.xlu0.b32.cont [2/16] 0.0, 128
    %1277 = vxpose.xlu0.b32.cont [3/16] 0.0, 128
    %1278 = vxpose.xlu0.b32.cont [4/16] 0.0, 128
    %1279 = vxpose.xlu0.b32.cont [5/16] 0.0, 128
    %1280 = vxpose.xlu0.b32.cont [6/16] 0.0, 128
    %1281 = vxpose.xlu0.b32.cont [7/16] 0.0, 128
    %1282 = vxpose.xlu0.b32.cont [8/16] 0.0, 128
    %1283 = vxpose.xlu0.b32.cont [9/16] 0.0, 128
    %1284 = vxpose.xlu0.b32.cont [10/16] 0.0, 128
    %1285 = vxpose.xlu0.b32.cont [11/16] 0.0, 128
    %1286 = vxpose.xlu0.b32.cont [12/16] 0.0, 128
    %1287 = vxpose.xlu0.b32.cont [13/16] 0.0, 128
    %1288 = vxpose.xlu0.b32.cont [14/16] 0.0, 128
    %1289 = vxpose.xlu0.b32.cont [15/16] 0.0, 128
    %1290 = vxpose.xlu0.b32.end [16/16] 0.0, 128
    %v1291 = vpop.trf.xlu0
    %v1292 = vpop.trf.xlu0
    %v1293 = vpop.trf.xlu0
    %v1294 = vpop.trf.xlu0
    %v1295 = vpop.trf.xlu0
    %v1296 = vpop.trf.xlu0
    %v1297 = vpop.trf.xlu0
    %v1298 = vpop.trf.xlu0
    %v1299 = vpop.trf.xlu0
    %v1300 = vpop.trf.xlu0
    %v1301 = vpop.trf.xlu0
    %v1302 = vpop.trf.xlu0
    %v1303 = vpop.trf.xlu0
    %v1304 = vpop.trf.xlu0
    %v1305 = vpop.trf.xlu0
    %v1306 = vpop.trf.xlu0
    %1308 = vset.pattern.permute.xlu0 0
    %1309 = vperm.xlu0 %1308, %v1291
    %v1310 = vpop.permute.xlu0 %1309
    %1313 = vset.pattern.permute.xlu0 0
    %1314 = vperm.xlu0 %1313, %v1292
    %v1315 = vpop.permute.xlu0 %1314
    %1318 = vset.pattern.permute.xlu0 0
    %1319 = vperm.xlu0 %1318, %v1293
    %v1320 = vpop.permute.xlu0 %1319
    %1323 = vset.pattern.permute.xlu0 0
    %1324 = vperm.xlu0 %1323, %v1294
    %v1325 = vpop.permute.xlu0 %1324
    %v1327 = vmul.f32 %v1310, %v35
    %v1328 = vmul.f32 %v1315, %v36
    %v1329 = vmul.f32 %v1320, %v37
    %v1330 = vmul.f32 %v1325, %v38
    %v1331 = vadd.f32 %v1327, %v1328
    %v1332 = vadd.f32 %v1331, %v1329
    %v1333 = vadd.f32 %v1332, %v1330
    %v1334 = vrot.slane %v1333, 4
    %v1335 = vadd.f32 %v1333, %v1334
    %v1336 = vrot.slane %v1335, 2
    %v1337 = vadd.f32 %v1335, %v1336
    %v1338 = vrot.slane %v1337, 1
    %v1339 = vadd.f32 %v1337, %v1338
    %v1340 = vadd.f32 %v125, %v1339
    %v1341 = vtanh.pop %v1340
    %v1342 = vmul.f32 %v1341, 0.5
    %v1343 = vadd.f32 %v1342, 0.5
    %v1344 = vmul.f32 %v1343, 2.0
    %v1345 = vsub.f32 %v1344, 1.0
    %v1347 = vrot.slane %v1263, 7
    %v1349 = vmul.f32 %v1343, %v1347
    %1351 = vrot.lane.b32.xlu0 %v1345, 64
    %v1352 = vpop.permute.xlu0 %1351
    %v1354 = vmul.f32 %v1343, %v1352
    %1356 = vrot.lane.b32.xlu0 %v1354, 32
    %v1357 = vpop.permute.xlu0 %1356
    %v1359 = vadd.f32 %v1349, %v1357
    %v1360 = vtanh.pop %v1359
    %1362 = vrot.lane.b32.xlu0 %v1360, 64
    %v1363 = vpop.permute.xlu0 %1362
    %v1365 = vmul.f32 %v1343, %v1363
    %v1367 = vrot.slane %v1365, 4
    %1368 = vrot.lane.b32.xlu0 %v1367, 32
    %v1369 = vpop.permute.xlu0 %1368
    %1371 = vxpose.xlu0.b32.start [1/16] %v1369, 128
    %1372 = vxpose.xlu0.b32.cont [2/16] 0.0, 128
    %1373 = vxpose.xlu0.b32.cont [3/16] 0.0, 128
    %1374 = vxpose.xlu0.b32.cont [4/16] 0.0, 128
    %1375 = vxpose.xlu0.b32.cont [5/16] 0.0, 128
    %1376 = vxpose.xlu0.b32.cont [6/16] 0.0, 128
    %1377 = vxpose.xlu0.b32.cont [7/16] 0.0, 128
    %1378 = vxpose.xlu0.b32.cont [8/16] 0.0, 128
    %1379 = vxpose.xlu0.b32.cont [9/16] 0.0, 128
    %1380 = vxpose.xlu0.b32.cont [10/16] 0.0, 128
    %1381 = vxpose.xlu0.b32.cont [11/16] 0.0, 128
    %1382 = vxpose.xlu0.b32.cont [12/16] 0.0, 128
    %1383 = vxpose.xlu0.b32.cont [13/16] 0.0, 128
    %1384 = vxpose.xlu0.b32.cont [14/16] 0.0, 128
    %1385 = vxpose.xlu0.b32.cont [15/16] 0.0, 128
    %1386 = vxpose.xlu0.b32.end [16/16] 0.0, 128
    %v1387 = vpop.trf.xlu0
    %v1388 = vpop.trf.xlu0
    %v1389 = vpop.trf.xlu0
    %v1390 = vpop.trf.xlu0
    %v1391 = vpop.trf.xlu0
    %v1392 = vpop.trf.xlu0
    %v1393 = vpop.trf.xlu0
    %v1394 = vpop.trf.xlu0
    %v1395 = vpop.trf.xlu0
    %v1396 = vpop.trf.xlu0
    %v1397 = vpop.trf.xlu0
    %v1398 = vpop.trf.xlu0
    %v1399 = vpop.trf.xlu0
    %v1400 = vpop.trf.xlu0
    %v1401 = vpop.trf.xlu0
    %v1402 = vpop.trf.xlu0
    %1404 = vset.pattern.permute.xlu0 0
    %1405 = vperm.xlu0 %1404, %v1387
    %v1406 = vpop.permute.xlu0 %1405
    %1409 = vset.pattern.permute.xlu0 0
    %1410 = vperm.xlu0 %1409, %v1388
    %v1411 = vpop.permute.xlu0 %1410
    %1414 = vset.pattern.permute.xlu0 0
    %1415 = vperm.xlu0 %1414, %v1389
    %v1416 = vpop.permute.xlu0 %1415
    %1419 = vset.pattern.permute.xlu0 0
    %1420 = vperm.xlu0 %1419, %v1390
    %v1421 = vpop.permute.xlu0 %1420
    %v1423 = vmul.f32 %v1406, %v35
    %v1424 = vmul.f32 %v1411, %v36
    %v1425 = vmul.f32 %v1416, %v37
    %v1426 = vmul.f32 %v1421, %v38
    %v1427 = vadd.f32 %v1423, %v1424
    %v1428 = vadd.f32 %v1427, %v1425
    %v1429 = vadd.f32 %v1428, %v1426
    %v1430 = vrot.slane %v1429, 4
    %v1431 = vadd.f32 %v1429, %v1430
    %v1432 = vrot.slane %v1431, 2
    %v1433 = vadd.f32 %v1431, %v1432
    %v1434 = vrot.slane %v1433, 1
    %v1435 = vadd.f32 %v1433, %v1434
    %v1436 = vadd.f32 %v125, %v1435
    %v1437 = vtanh.pop %v1436
    %v1438 = vmul.f32 %v1437, 0.5
    %v1439 = vadd.f32 %v1438, 0.5
    %v1440 = vmul.f32 %v1439, 2.0
    %v1441 = vsub.f32 %v1440, 1.0
    %v1443 = vrot.slane %v1359, 7
    %v1445 = vmul.f32 %v1439, %v1443
    %1447 = vrot.lane.b32.xlu0 %v1441, 64
    %v1448 = vpop.permute.xlu0 %1447
    %v1450 = vmul.f32 %v1439, %v1448
    %1452 = vrot.lane.b32.xlu0 %v1450, 32
    %v1453 = vpop.permute.xlu0 %1452
    %v1455 = vadd.f32 %v1445, %v1453
    %v1456 = vtanh.pop %v1455
    %1458 = vrot.lane.b32.xlu0 %v1456, 64
    %v1459 = vpop.permute.xlu0 %1458
    %v1461 = vmul.f32 %v1439, %v1459
    %v1463 = vrot.slane %v1461, 5
    %1464 = vrot.lane.b32.xlu0 %v1463, 32
    %v1465 = vpop.permute.xlu0 %1464
    %1467 = vxpose.xlu0.b32.start [1/16] %v1465, 128
    %1468 = vxpose.xlu0.b32.cont [2/16] 0.0, 128
    %1469 = vxpose.xlu0.b32.cont [3/16] 0.0, 128
    %1470 = vxpose.xlu0.b32.cont [4/16] 0.0, 128
    %1471 = vxpose.xlu0.b32.cont [5/16] 0.0, 128
    %1472 = vxpose.xlu0.b32.cont [6/16] 0.0, 128
    %1473 = vxpose.xlu0.b32.cont [7/16] 0.0, 128
    %1474 = vxpose.xlu0.b32.cont [8/16] 0.0, 128
    %1475 = vxpose.xlu0.b32.cont [9/16] 0.0, 128
    %1476 = vxpose.xlu0.b32.cont [10/16] 0.0, 128
    %1477 = vxpose.xlu0.b32.cont [11/16] 0.0, 128
    %1478 = vxpose.xlu0.b32.cont [12/16] 0.0, 128
    %1479 = vxpose.xlu0.b32.cont [13/16] 0.0, 128
    %1480 = vxpose.xlu0.b32.cont [14/16] 0.0, 128
    %1481 = vxpose.xlu0.b32.cont [15/16] 0.0, 128
    %1482 = vxpose.xlu0.b32.end [16/16] 0.0, 128
    %v1483 = vpop.trf.xlu0
    %v1484 = vpop.trf.xlu0
    %v1485 = vpop.trf.xlu0
    %v1486 = vpop.trf.xlu0
    %v1487 = vpop.trf.xlu0
    %v1488 = vpop.trf.xlu0
    %v1489 = vpop.trf.xlu0
    %v1490 = vpop.trf.xlu0
    %v1491 = vpop.trf.xlu0
    %v1492 = vpop.trf.xlu0
    %v1493 = vpop.trf.xlu0
    %v1494 = vpop.trf.xlu0
    %v1495 = vpop.trf.xlu0
    %v1496 = vpop.trf.xlu0
    %v1497 = vpop.trf.xlu0
    %v1498 = vpop.trf.xlu0
    %1500 = vset.pattern.permute.xlu0 0
    %1501 = vperm.xlu0 %1500, %v1483
    %v1502 = vpop.permute.xlu0 %1501
    %1505 = vset.pattern.permute.xlu0 0
    %1506 = vperm.xlu0 %1505, %v1484
    %v1507 = vpop.permute.xlu0 %1506
    %1510 = vset.pattern.permute.xlu0 0
    %1511 = vperm.xlu0 %1510, %v1485
    %v1512 = vpop.permute.xlu0 %1511
    %1515 = vset.pattern.permute.xlu0 0
    %1516 = vperm.xlu0 %1515, %v1486
    %v1517 = vpop.permute.xlu0 %1516
    %v1519 = vmul.f32 %v1502, %v35
    %v1520 = vmul.f32 %v1507, %v36
    %v1521 = vmul.f32 %v1512, %v37
    %v1522 = vmul.f32 %v1517, %v38
    %v1523 = vadd.f32 %v1519, %v1520
    %v1524 = vadd.f32 %v1523, %v1521
    %v1525 = vadd.f32 %v1524, %v1522
    %v1526 = vrot.slane %v1525, 4
    %v1527 = vadd.f32 %v1525, %v1526
    %v1528 = vrot.slane %v1527, 2
    %v1529 = vadd.f32 %v1527, %v1528
    %v1530 = vrot.slane %v1529, 1
    %v1531 = vadd.f32 %v1529, %v1530
    %v1532 = vadd.f32 %v125, %v1531
    %v1533 = vtanh.pop %v1532
    %v1534 = vmul.f32 %v1533, 0.5
    %v1535 = vadd.f32 %v1534, 0.5
    %v1536 = vmul.f32 %v1535, 2.0
    %v1537 = vsub.f32 %v1536, 1.0
    %v1539 = vrot.slane %v1455, 7
    %v1541 = vmul.f32 %v1535, %v1539
    %1543 = vrot.lane.b32.xlu0 %v1537, 64
    %v1544 = vpop.permute.xlu0 %1543
    %v1546 = vmul.f32 %v1535, %v1544
    %1548 = vrot.lane.b32.xlu0 %v1546, 32
    %v1549 = vpop.permute.xlu0 %1548
    %v1551 = vadd.f32 %v1541, %v1549
    %v1552 = vtanh.pop %v1551
    %1554 = vrot.lane.b32.xlu0 %v1552, 64
    %v1555 = vpop.permute.xlu0 %1554
    %v1557 = vmul.f32 %v1535, %v1555
    %v1559 = vrot.slane %v1557, 6
    %1560 = vrot.lane.b32.xlu0 %v1559, 32
    %v1561 = vpop.permute.xlu0 %1560
    %1563 = vxpose.xlu0.b32.start [1/16] %v1561, 128
    %1564 = vxpose.xlu0.b32.cont [2/16] 0.0, 128
    %1565 = vxpose.xlu0.b32.cont [3/16] 0.0, 128
    %1566 = vxpose.xlu0.b32.cont [4/16] 0.0, 128
    %1567 = vxpose.xlu0.b32.cont [5/16] 0.0, 128
    %1568 = vxpose.xlu0.b32.cont [6/16] 0.0, 128
    %1569 = vxpose.xlu0.b32.cont [7/16] 0.0, 128
    %1570 = vxpose.xlu0.b32.cont [8/16] 0.0, 128
    %1571 = vxpose.xlu0.b32.cont [9/16] 0.0, 128
    %1572 = vxpose.xlu0.b32.cont [10/16] 0.0, 128
    %1573 = vxpose.xlu0.b32.cont [11/16] 0.0, 128
    %1574 = vxpose.xlu0.b32.cont [12/16] 0.0, 128
    %1575 = vxpose.xlu0.b32.cont [13/16] 0.0, 128
    %1576 = vxpose.xlu0.b32.cont [14/16] 0.0, 128
    %1577 = vxpose.xlu0.b32.cont [15/16] 0.0, 128
    %1578 = vxpose.xlu0.b32.end [16/16] 0.0, 128
    %v1579 = vpop.trf.xlu0
    %v1580 = vpop.trf.xlu0
    %v1581 = vpop.trf.xlu0
    %v1582 = vpop.trf.xlu0
    %v1583 = vpop.trf.xlu0
    %v1584 = vpop.trf.xlu0
    %v1585 = vpop.trf.xlu0
    %v1586 = vpop.trf.xlu0
    %v1587 = vpop.trf.xlu0
    %v1588 = vpop.trf.xlu0
    %v1589 = vpop.trf.xlu0
    %v1590 = vpop.trf.xlu0
    %v1591 = vpop.trf.xlu0
    %v1592 = vpop.trf.xlu0
    %v1593 = vpop.trf.xlu0
    %v1594 = vpop.trf.xlu0
    %1596 = vset.pattern.permute.xlu0 0
    %1597 = vperm.xlu0 %1596, %v1579
    %v1598 = vpop.permute.xlu0 %1597
    %1601 = vset.pattern.permute.xlu0 0
    %1602 = vperm.xlu0 %1601, %v1580
    %v1603 = vpop.permute.xlu0 %1602
    %1606 = vset.pattern.permute.xlu0 0
    %1607 = vperm.xlu0 %1606, %v1581
    %v1608 = vpop.permute.xlu0 %1607
    %1611 = vset.pattern.permute.xlu0 0
    %1612 = vperm.xlu0 %1611, %v1582
    %v1613 = vpop.permute.xlu0 %1612
    %v1615 = vmul.f32 %v1598, %v35
    %v1616 = vmul.f32 %v1603, %v36
    %v1617 = vmul.f32 %v1608, %v37
    %v1618 = vmul.f32 %v1613, %v38
    %v1619 = vadd.f32 %v1615, %v1616
    %v1620 = vadd.f32 %v1619, %v1617
    %v1621 = vadd.f32 %v1620, %v1618
    %v1622 = vrot.slane %v1621, 4
    %v1623 = vadd.f32 %v1621, %v1622
    %v1624 = vrot.slane %v1623, 2
    %v1625 = vadd.f32 %v1623, %v1624
    %v1626 = vrot.slane %v1625, 1
    %v1627 = vadd.f32 %v1625, %v1626
    %v1628 = vadd.f32 %v125, %v1627
    %v1629 = vtanh.pop %v1628
    %v1630 = vmul.f32 %v1629, 0.5
    %v1631 = vadd.f32 %v1630, 0.5
    %v1632 = vmul.f32 %v1631, 2.0
    %v1633 = vsub.f32 %v1632, 1.0
    %v1635 = vrot.slane %v1551, 7
    %v1637 = vmul.f32 %v1631, %v1635
    %1639 = vrot.lane.b32.xlu0 %v1633, 64
    %v1640 = vpop.permute.xlu0 %1639
    %v1642 = vmul.f32 %v1631, %v1640
    %1644 = vrot.lane.b32.xlu0 %v1642, 32
    %v1645 = vpop.permute.xlu0 %1644
    %v1647 = vadd.f32 %v1637, %v1645
    %v1648 = vtanh.pop %v1647
    %1650 = vrot.lane.b32.xlu0 %v1648, 64
    %v1651 = vpop.permute.xlu0 %1650
    %v1653 = vmul.f32 %v1631, %v1651
    %v1655 = vrot.slane %v1653, 7
    %1656 = vrot.lane.b32.xlu0 %v1655, 32
    %v1657 = vpop.permute.xlu0 %1656
    %1659 = vxpose.xlu0.b32.start [1/16] %v1657, 128
    %1660 = vxpose.xlu0.b32.cont [2/16] 0.0, 128
    %1661 = vxpose.xlu0.b32.cont [3/16] 0.0, 128
    %1662 = vxpose.xlu0.b32.cont [4/16] 0.0, 128
    %1663 = vxpose.xlu0.b32.cont [5/16] 0.0, 128
    %1664 = vxpose.xlu0.b32.cont [6/16] 0.0, 128
    %1665 = vxpose.xlu0.b32.cont [7/16] 0.0, 128
    %1666 = vxpose.xlu0.b32.cont [8/16] 0.0, 128
    %1667 = vxpose.xlu0.b32.cont [9/16] 0.0, 128
    %1668 = vxpose.xlu0.b32.cont [10/16] 0.0, 128
    %1669 = vxpose.xlu0.b32.cont [11/16] 0.0, 128
    %1670 = vxpose.xlu0.b32.cont [12/16] 0.0, 128
    %1671 = vxpose.xlu0.b32.cont [13/16] 0.0, 128
    %1672 = vxpose.xlu0.b32.cont [14/16] 0.0, 128
    %1673 = vxpose.xlu0.b32.cont [15/16] 0.0, 128
    %1674 = vxpose.xlu0.b32.end [16/16] 0.0, 128
    %v1675 = vpop.trf.xlu0
    %v1676 = vpop.trf.xlu0
    %v1677 = vpop.trf.xlu0
    %v1678 = vpop.trf.xlu0
    %v1679 = vpop.trf.xlu0
    %v1680 = vpop.trf.xlu0
    %v1681 = vpop.trf.xlu0
    %v1682 = vpop.trf.xlu0
    %v1683 = vpop.trf.xlu0
    %v1684 = vpop.trf.xlu0
    %v1685 = vpop.trf.xlu0
    %v1686 = vpop.trf.xlu0
    %v1687 = vpop.trf.xlu0
    %v1688 = vpop.trf.xlu0
    %v1689 = vpop.trf.xlu0
    %v1690 = vpop.trf.xlu0
    %1692 = vset.pattern.permute.xlu0 0
    %1693 = vperm.xlu0 %1692, %v1675
    %v1694 = vpop.permute.xlu0 %1693
    %1697 = vset.pattern.permute.xlu0 0
    %1698 = vperm.xlu0 %1697, %v1676
    %v1699 = vpop.permute.xlu0 %1698
    %1702 = vset.pattern.permute.xlu0 0
    %1703 = vperm.xlu0 %1702, %v1677
    %v1704 = vpop.permute.xlu0 %1703
    %1707 = vset.pattern.permute.xlu0 0
    %1708 = vperm.xlu0 %1707, %v1678
    %v1709 = vpop.permute.xlu0 %1708
    %v1711 = vmul.f32 %v1694, %v35
    %v1712 = vmul.f32 %v1699, %v36
    %v1713 = vmul.f32 %v1704, %v37
    %v1714 = vmul.f32 %v1709, %v38
    %v1715 = vadd.f32 %v1711, %v1712
    %v1716 = vadd.f32 %v1715, %v1713
    %v1717 = vadd.f32 %v1716, %v1714
    %v1718 = vrot.slane %v1717, 4
    %v1719 = vadd.f32 %v1717, %v1718
    %v1720 = vrot.slane %v1719, 2
    %v1721 = vadd.f32 %v1719, %v1720
    %v1722 = vrot.slane %v1721, 1
    %v1723 = vadd.f32 %v1721, %v1722
    %v1724 = vadd.f32 %v126, %v1723
    %v1725 = vtanh.pop %v1724
    %v1726 = vmul.f32 %v1725, 0.5
    %v1727 = vadd.f32 %v1726, 0.5
    %v1728 = vmul.f32 %v1727, 2.0
    %v1729 = vsub.f32 %v1728, 1.0
    %v1731 = vrot.slane %v1647, 7
    %v1733 = vmul.f32 %v1727, %v1731
    %1735 = vrot.lane.b32.xlu0 %v1729, 64
    %v1736 = vpop.permute.xlu0 %1735
    %v1738 = vmul.f32 %v1727, %v1736
    %1740 = vrot.lane.b32.xlu0 %v1738, 32
    %v1741 = vpop.permute.xlu0 %1740
    %v1743 = vadd.f32 %v1733, %v1741
    %v1744 = vtanh.pop %v1743
    %1746 = vrot.lane.b32.xlu0 %v1744, 64
    %v1747 = vpop.permute.xlu0 %1746
    %v1749 = vmul.f32 %v1727, %v1747
    %1751 = vrot.lane.b32.xlu0 %v1749, 32
    %v1752 = vpop.permute.xlu0 %1751
    %1754 = vxpose.xlu0.b32.start [1/16] %v1752, 128
    %1755 = vxpose.xlu0.b32.cont [2/16] 0.0, 128
    %1756 = vxpose.xlu0.b32.cont [3/16] 0.0, 128
    %1757 = vxpose.xlu0.b32.cont [4/16] 0.0, 128
    %1758 = vxpose.xlu0.b32.cont [5/16] 0.0, 128
    %1759 = vxpose.xlu0.b32.cont [6/16] 0.0, 128
    %1760 = vxpose.xlu0.b32.cont [7/16] 0.0, 128
    %1761 = vxpose.xlu0.b32.cont [8/16] 0.0, 128
    %1762 = vxpose.xlu0.b32.cont [9/16] 0.0, 128
    %1763 = vxpose.xlu0.b32.cont [10/16] 0.0, 128
    %1764 = vxpose.xlu0.b32.cont [11/16] 0.0, 128
    %1765 = vxpose.xlu0.b32.cont [12/16] 0.0, 128
    %1766 = vxpose.xlu0.b32.cont [13/16] 0.0, 128
    %1767 = vxpose.xlu0.b32.cont [14/16] 0.0, 128
    %1768 = vxpose.xlu0.b32.cont [15/16] 0.0, 128
    %1769 = vxpose.xlu0.b32.end [16/16] 0.0, 128
    %v1770 = vpop.trf.xlu0
    %v1771 = vpop.trf.xlu0
    %v1772 = vpop.trf.xlu0
    %v1773 = vpop.trf.xlu0
    %v1774 = vpop.trf.xlu0
    %v1775 = vpop.trf.xlu0
    %v1776 = vpop.trf.xlu0
    %v1777 = vpop.trf.xlu0
    %v1778 = vpop.trf.xlu0
    %v1779 = vpop.trf.xlu0
    %v1780 = vpop.trf.xlu0
    %v1781 = vpop.trf.xlu0
    %v1782 = vpop.trf.xlu0
    %v1783 = vpop.trf.xlu0
    %v1784 = vpop.trf.xlu0
    %v1785 = vpop.trf.xlu0
    %1787 = vset.pattern.permute.xlu0 0
    %1788 = vperm.xlu0 %1787, %v1770
    %v1789 = vpop.permute.xlu0 %1788
    %1792 = vset.pattern.permute.xlu0 0
    %1793 = vperm.xlu0 %1792, %v1771
    %v1794 = vpop.permute.xlu0 %1793
    %1797 = vset.pattern.permute.xlu0 0
    %1798 = vperm.xlu0 %1797, %v1772
    %v1799 = vpop.permute.xlu0 %1798
    %1802 = vset.pattern.permute.xlu0 0
    %1803 = vperm.xlu0 %1802, %v1773
    %v1804 = vpop.permute.xlu0 %1803
    %v1806 = vmul.f32 %v1789, %v35
    %v1807 = vmul.f32 %v1794, %v36
    %v1808 = vmul.f32 %v1799, %v37
    %v1809 = vmul.f32 %v1804, %v38
    %v1810 = vadd.f32 %v1806, %v1807
    %v1811 = vadd.f32 %v1810, %v1808
    %v1812 = vadd.f32 %v1811, %v1809
    %v1813 = vrot.slane %v1812, 4
    %v1814 = vadd.f32 %v1812, %v1813
    %v1815 = vrot.slane %v1814, 2
    %v1816 = vadd.f32 %v1814, %v1815
    %v1817 = vrot.slane %v1816, 1
    %v1818 = vadd.f32 %v1816, %v1817
    %v1819 = vadd.f32 %v126, %v1818
    %v1820 = vtanh.pop %v1819
    %v1821 = vmul.f32 %v1820, 0.5
    %v1822 = vadd.f32 %v1821, 0.5
    %v1823 = vmul.f32 %v1822, 2.0
    %v1824 = vsub.f32 %v1823, 1.0
    %v1826 = vrot.slane %v1743, 7
    %v1828 = vmul.f32 %v1822, %v1826
    %1830 = vrot.lane.b32.xlu0 %v1824, 64
    %v1831 = vpop.permute.xlu0 %1830
    %v1833 = vmul.f32 %v1822, %v1831
    %1835 = vrot.lane.b32.xlu0 %v1833, 32
    %v1836 = vpop.permute.xlu0 %1835
    %v1838 = vadd.f32 %v1828, %v1836
    %v1839 = vtanh.pop %v1838
    %1841 = vrot.lane.b32.xlu0 %v1839, 64
    %v1842 = vpop.permute.xlu0 %1841
    %v1844 = vmul.f32 %v1822, %v1842
    %v1846 = vrot.slane %v1844, 1
    %1847 = vrot.lane.b32.xlu0 %v1846, 32
    %v1848 = vpop.permute.xlu0 %1847
    %1850 = vxpose.xlu0.b32.start [1/16] %v1848, 128
    %1851 = vxpose.xlu0.b32.cont [2/16] 0.0, 128
    %1852 = vxpose.xlu0.b32.cont [3/16] 0.0, 128
    %1853 = vxpose.xlu0.b32.cont [4/16] 0.0, 128
    %1854 = vxpose.xlu0.b32.cont [5/16] 0.0, 128
    %1855 = vxpose.xlu0.b32.cont [6/16] 0.0, 128
    %1856 = vxpose.xlu0.b32.cont [7/16] 0.0, 128
    %1857 = vxpose.xlu0.b32.cont [8/16] 0.0, 128
    %1858 = vxpose.xlu0.b32.cont [9/16] 0.0, 128
    %1859 = vxpose.xlu0.b32.cont [10/16] 0.0, 128
    %1860 = vxpose.xlu0.b32.cont [11/16] 0.0, 128
    %1861 = vxpose.xlu0.b32.cont [12/16] 0.0, 128
    %1862 = vxpose.xlu0.b32.cont [13/16] 0.0, 128
    %1863 = vxpose.xlu0.b32.cont [14/16] 0.0, 128
    %1864 = vxpose.xlu0.b32.cont [15/16] 0.0, 128
    %1865 = vxpose.xlu0.b32.end [16/16] 0.0, 128
    %v1866 = vpop.trf.xlu0
    %v1867 = vpop.trf.xlu0
    %v1868 = vpop.trf.xlu0
    %v1869 = vpop.trf.xlu0
    %v1870 = vpop.trf.xlu0
    %v1871 = vpop.trf.xlu0
    %v1872 = vpop.trf.xlu0
    %v1873 = vpop.trf.xlu0
    %v1874 = vpop.trf.xlu0
    %v1875 = vpop.trf.xlu0
    %v1876 = vpop.trf.xlu0
    %v1877 = vpop.trf.xlu0
    %v1878 = vpop.trf.xlu0
    %v1879 = vpop.trf.xlu0
    %v1880 = vpop.trf.xlu0
    %v1881 = vpop.trf.xlu0
    %1883 = vset.pattern.permute.xlu0 0
    %1884 = vperm.xlu0 %1883, %v1866
    %v1885 = vpop.permute.xlu0 %1884
    %1888 = vset.pattern.permute.xlu0 0
    %1889 = vperm.xlu0 %1888, %v1867
    %v1890 = vpop.permute.xlu0 %1889
    %1893 = vset.pattern.permute.xlu0 0
    %1894 = vperm.xlu0 %1893, %v1868
    %v1895 = vpop.permute.xlu0 %1894
    %1898 = vset.pattern.permute.xlu0 0
    %1899 = vperm.xlu0 %1898, %v1869
    %v1900 = vpop.permute.xlu0 %1899
    %v1902 = vmul.f32 %v1885, %v35
    %v1903 = vmul.f32 %v1890, %v36
    %v1904 = vmul.f32 %v1895, %v37
    %v1905 = vmul.f32 %v1900, %v38
    %v1906 = vadd.f32 %v1902, %v1903
    %v1907 = vadd.f32 %v1906, %v1904
    %v1908 = vadd.f32 %v1907, %v1905
    %v1909 = vrot.slane %v1908, 4
    %v1910 = vadd.f32 %v1908, %v1909
    %v1911 = vrot.slane %v1910, 2
    %v1912 = vadd.f32 %v1910, %v1911
    %v1913 = vrot.slane %v1912, 1
    %v1914 = vadd.f32 %v1912, %v1913
    %v1915 = vadd.f32 %v126, %v1914
    %v1916 = vtanh.pop %v1915
    %v1917 = vmul.f32 %v1916, 0.5
    %v1918 = vadd.f32 %v1917, 0.5
    %v1919 = vmul.f32 %v1918, 2.0
    %v1920 = vsub.f32 %v1919, 1.0
    %v1922 = vrot.slane %v1838, 7
    %v1924 = vmul.f32 %v1918, %v1922
    %1926 = vrot.lane.b32.xlu0 %v1920, 64
    %v1927 = vpop.permute.xlu0 %1926
    %v1929 = vmul.f32 %v1918, %v1927
    %1931 = vrot.lane.b32.xlu0 %v1929, 32
    %v1932 = vpop.permute.xlu0 %1931
    %v1934 = vadd.f32 %v1924, %v1932
    %v1935 = vtanh.pop %v1934
    %1937 = vrot.lane.b32.xlu0 %v1935, 64
    %v1938 = vpop.permute.xlu0 %1937
    %v1940 = vmul.f32 %v1918, %v1938
    %v1942 = vrot.slane %v1940, 2
    %1943 = vrot.lane.b32.xlu0 %v1942, 32
    %v1944 = vpop.permute.xlu0 %1943
    %1946 = vxpose.xlu0.b32.start [1/16] %v1944, 128
    %1947 = vxpose.xlu0.b32.cont [2/16] 0.0, 128
    %1948 = vxpose.xlu0.b32.cont [3/16] 0.0, 128
    %1949 = vxpose.xlu0.b32.cont [4/16] 0.0, 128
    %1950 = vxpose.xlu0.b32.cont [5/16] 0.0, 128
    %1951 = vxpose.xlu0.b32.cont [6/16] 0.0, 128
    %1952 = vxpose.xlu0.b32.cont [7/16] 0.0, 128
    %1953 = vxpose.xlu0.b32.cont [8/16] 0.0, 128
    %1954 = vxpose.xlu0.b32.cont [9/16] 0.0, 128
    %1955 = vxpose.xlu0.b32.cont [10/16] 0.0, 128
    %1956 = vxpose.xlu0.b32.cont [11/16] 0.0, 128
    %1957 = vxpose.xlu0.b32.cont [12/16] 0.0, 128
    %1958 = vxpose.xlu0.b32.cont [13/16] 0.0, 128
    %1959 = vxpose.xlu0.b32.cont [14/16] 0.0, 128
    %1960 = vxpose.xlu0.b32.cont [15/16] 0.0, 128
    %1961 = vxpose.xlu0.b32.end [16/16] 0.0, 128
    %v1962 = vpop.trf.xlu0
    %v1963 = vpop.trf.xlu0
    %v1964 = vpop.trf.xlu0
    %v1965 = vpop.trf.xlu0
    %v1966 = vpop.trf.xlu0
    %v1967 = vpop.trf.xlu0
    %v1968 = vpop.trf.xlu0
    %v1969 = vpop.trf.xlu0
    %v1970 = vpop.trf.xlu0
    %v1971 = vpop.trf.xlu0
    %v1972 = vpop.trf.xlu0
    %v1973 = vpop.trf.xlu0
    %v1974 = vpop.trf.xlu0
    %v1975 = vpop.trf.xlu0
    %v1976 = vpop.trf.xlu0
    %v1977 = vpop.trf.xlu0
    %1979 = vset.pattern.permute.xlu0 0
    %1980 = vperm.xlu0 %1979, %v1962
    %v1981 = vpop.permute.xlu0 %1980
    %1984 = vset.pattern.permute.xlu0 0
    %1985 = vperm.xlu0 %1984, %v1963
    %v1986 = vpop.permute.xlu0 %1985
    %1989 = vset.pattern.permute.xlu0 0
    %1990 = vperm.xlu0 %1989, %v1964
    %v1991 = vpop.permute.xlu0 %1990
    %1994 = vset.pattern.permute.xlu0 0
    %1995 = vperm.xlu0 %1994, %v1965
    %v1996 = vpop.permute.xlu0 %1995
    %v1998 = vmul.f32 %v1981, %v35
    %v1999 = vmul.f32 %v1986, %v36
    %v2000 = vmul.f32 %v1991, %v37
    %v2001 = vmul.f32 %v1996, %v38
    %v2002 = vadd.f32 %v1998, %v1999
    %v2003 = vadd.f32 %v2002, %v2000
    %v2004 = vadd.f32 %v2003, %v2001
    %v2005 = vrot.slane %v2004, 4
    %v2006 = vadd.f32 %v2004, %v2005
    %v2007 = vrot.slane %v2006, 2
    %v2008 = vadd.f32 %v2006, %v2007
    %v2009 = vrot.slane %v2008, 1
    %v2010 = vadd.f32 %v2008, %v2009
    %v2011 = vadd.f32 %v126, %v2010
    %v2012 = vtanh.pop %v2011
    %v2013 = vmul.f32 %v2012, 0.5
    %v2014 = vadd.f32 %v2013, 0.5
    %v2015 = vmul.f32 %v2014, 2.0
    %v2016 = vsub.f32 %v2015, 1.0
    %v2018 = vrot.slane %v1934, 7
    %v2020 = vmul.f32 %v2014, %v2018
    %2022 = vrot.lane.b32.xlu0 %v2016, 64
    %v2023 = vpop.permute.xlu0 %2022
    %v2025 = vmul.f32 %v2014, %v2023
    %2027 = vrot.lane.b32.xlu0 %v2025, 32
    %v2028 = vpop.permute.xlu0 %2027
    %v2030 = vadd.f32 %v2020, %v2028
    %v2031 = vtanh.pop %v2030
    %2033 = vrot.lane.b32.xlu0 %v2031, 64
    %v2034 = vpop.permute.xlu0 %2033
    %v2036 = vmul.f32 %v2014, %v2034
    %v2038 = vrot.slane %v2036, 3
    %2039 = vrot.lane.b32.xlu0 %v2038, 32
    %v2040 = vpop.permute.xlu0 %2039
    %2042 = vxpose.xlu0.b32.start [1/16] %v2040, 128
    %2043 = vxpose.xlu0.b32.cont [2/16] 0.0, 128
    %2044 = vxpose.xlu0.b32.cont [3/16] 0.0, 128
    %2045 = vxpose.xlu0.b32.cont [4/16] 0.0, 128
    %2046 = vxpose.xlu0.b32.cont [5/16] 0.0, 128
    %2047 = vxpose.xlu0.b32.cont [6/16] 0.0, 128
    %2048 = vxpose.xlu0.b32.cont [7/16] 0.0, 128
    %2049 = vxpose.xlu0.b32.cont [8/16] 0.0, 128
    %2050 = vxpose.xlu0.b32.cont [9/16] 0.0, 128
    %2051 = vxpose.xlu0.b32.cont [10/16] 0.0, 128
    %2052 = vxpose.xlu0.b32.cont [11/16] 0.0, 128
    %2053 = vxpose.xlu0.b32.cont [12/16] 0.0, 128
    %2054 = vxpose.xlu0.b32.cont [13/16] 0.0, 128
    %2055 = vxpose.xlu0.b32.cont [14/16] 0.0, 128
    %2056 = vxpose.xlu0.b32.cont [15/16] 0.0, 128
    %2057 = vxpose.xlu0.b32.end [16/16] 0.0, 128
    %v2058 = vpop.trf.xlu0
    %v2059 = vpop.trf.xlu0
    %v2060 = vpop.trf.xlu0
    %v2061 = vpop.trf.xlu0
    %v2062 = vpop.trf.xlu0
    %v2063 = vpop.trf.xlu0
    %v2064 = vpop.trf.xlu0
    %v2065 = vpop.trf.xlu0
    %v2066 = vpop.trf.xlu0
    %v2067 = vpop.trf.xlu0
    %v2068 = vpop.trf.xlu0
    %v2069 = vpop.trf.xlu0
    %v2070 = vpop.trf.xlu0
    %v2071 = vpop.trf.xlu0
    %v2072 = vpop.trf.xlu0
    %v2073 = vpop.trf.xlu0
    %2075 = vset.pattern.permute.xlu0 0
    %2076 = vperm.xlu0 %2075, %v2058
    %v2077 = vpop.permute.xlu0 %2076
    %2080 = vset.pattern.permute.xlu0 0
    %2081 = vperm.xlu0 %2080, %v2059
    %v2082 = vpop.permute.xlu0 %2081
    %2085 = vset.pattern.permute.xlu0 0
    %2086 = vperm.xlu0 %2085, %v2060
    %v2087 = vpop.permute.xlu0 %2086
    %2090 = vset.pattern.permute.xlu0 0
    %2091 = vperm.xlu0 %2090, %v2061
    %v2092 = vpop.permute.xlu0 %2091
    %v2094 = vmul.f32 %v2077, %v35
    %v2095 = vmul.f32 %v2082, %v36
    %v2096 = vmul.f32 %v2087, %v37
    %v2097 = vmul.f32 %v2092, %v38
    %v2098 = vadd.f32 %v2094, %v2095
    %v2099 = vadd.f32 %v2098, %v2096
    %v2100 = vadd.f32 %v2099, %v2097
    %v2101 = vrot.slane %v2100, 4
    %v2102 = vadd.f32 %v2100, %v2101
    %v2103 = vrot.slane %v2102, 2
    %v2104 = vadd.f32 %v2102, %v2103
    %v2105 = vrot.slane %v2104, 1
    %v2106 = vadd.f32 %v2104, %v2105
    %v2107 = vadd.f32 %v126, %v2106
    %v2108 = vtanh.pop %v2107
    %v2109 = vmul.f32 %v2108, 0.5
    %v2110 = vadd.f32 %v2109, 0.5
    %v2111 = vmul.f32 %v2110, 2.0
    %v2112 = vsub.f32 %v2111, 1.0
    %v2114 = vrot.slane %v2030, 7
    %v2116 = vmul.f32 %v2110, %v2114
    %2118 = vrot.lane.b32.xlu0 %v2112, 64
    %v2119 = vpop.permute.xlu0 %2118
    %v2121 = vmul.f32 %v2110, %v2119
    %2123 = vrot.lane.b32.xlu0 %v2121, 32
    %v2124 = vpop.permute.xlu0 %2123
    %v2126 = vadd.f32 %v2116, %v2124
    %v2127 = vtanh.pop %v2126
    %2129 = vrot.lane.b32.xlu0 %v2127, 64
    %v2130 = vpop.permute.xlu0 %2129
    %v2132 = vmul.f32 %v2110, %v2130
    %v2134 = vrot.slane %v2132, 4
    %2135 = vrot.lane.b32.xlu0 %v2134, 32
    %v2136 = vpop.permute.xlu0 %2135
    %2138 = vxpose.xlu0.b32.start [1/16] %v2136, 128
    %2139 = vxpose.xlu0.b32.cont [2/16] 0.0, 128
    %2140 = vxpose.xlu0.b32.cont [3/16] 0.0, 128
    %2141 = vxpose.xlu0.b32.cont [4/16] 0.0, 128
    %2142 = vxpose.xlu0.b32.cont [5/16] 0.0, 128
    %2143 = vxpose.xlu0.b32.cont [6/16] 0.0, 128
    %2144 = vxpose.xlu0.b32.cont [7/16] 0.0, 128
    %2145 = vxpose.xlu0.b32.cont [8/16] 0.0, 128
    %2146 = vxpose.xlu0.b32.cont [9/16] 0.0, 128
    %2147 = vxpose.xlu0.b32.cont [10/16] 0.0, 128
    %2148 = vxpose.xlu0.b32.cont [11/16] 0.0, 128
    %2149 = vxpose.xlu0.b32.cont [12/16] 0.0, 128
    %2150 = vxpose.xlu0.b32.cont [13/16] 0.0, 128
    %2151 = vxpose.xlu0.b32.cont [14/16] 0.0, 128
    %2152 = vxpose.xlu0.b32.cont [15/16] 0.0, 128
    %2153 = vxpose.xlu0.b32.end [16/16] 0.0, 128
    %v2154 = vpop.trf.xlu0
    %v2155 = vpop.trf.xlu0
    %v2156 = vpop.trf.xlu0
    %v2157 = vpop.trf.xlu0
    %v2158 = vpop.trf.xlu0
    %v2159 = vpop.trf.xlu0
    %v2160 = vpop.trf.xlu0
    %v2161 = vpop.trf.xlu0
    %v2162 = vpop.trf.xlu0
    %v2163 = vpop.trf.xlu0
    %v2164 = vpop.trf.xlu0
    %v2165 = vpop.trf.xlu0
    %v2166 = vpop.trf.xlu0
    %v2167 = vpop.trf.xlu0
    %v2168 = vpop.trf.xlu0
    %v2169 = vpop.trf.xlu0
    %2171 = vset.pattern.permute.xlu0 0
    %2172 = vperm.xlu0 %2171, %v2154
    %v2173 = vpop.permute.xlu0 %2172
    %2176 = vset.pattern.permute.xlu0 0
    %2177 = vperm.xlu0 %2176, %v2155
    %v2178 = vpop.permute.xlu0 %2177
    %2181 = vset.pattern.permute.xlu0 0
    %2182 = vperm.xlu0 %2181, %v2156
    %v2183 = vpop.permute.xlu0 %2182
    %2186 = vset.pattern.permute.xlu0 0
    %2187 = vperm.xlu0 %2186, %v2157
    %v2188 = vpop.permute.xlu0 %2187
    %v2190 = vmul.f32 %v2173, %v35
    %v2191 = vmul.f32 %v2178, %v36
    %v2192 = vmul.f32 %v2183, %v37
    %v2193 = vmul.f32 %v2188, %v38
    %v2194 = vadd.f32 %v2190, %v2191
    %v2195 = vadd.f32 %v2194, %v2192
    %v2196 = vadd.f32 %v2195, %v2193
    %v2197 = vrot.slane %v2196, 4
    %v2198 = vadd.f32 %v2196, %v2197
    %v2199 = vrot.slane %v2198, 2
    %v2200 = vadd.f32 %v2198, %v2199
    %v2201 = vrot.slane %v2200, 1
    %v2202 = vadd.f32 %v2200, %v2201
    %v2203 = vadd.f32 %v126, %v2202
    %v2204 = vtanh.pop %v2203
    %v2205 = vmul.f32 %v2204, 0.5
    %v2206 = vadd.f32 %v2205, 0.5
    %v2207 = vmul.f32 %v2206, 2.0
    %v2208 = vsub.f32 %v2207, 1.0
    %v2210 = vrot.slane %v2126, 7
    %v2212 = vmul.f32 %v2206, %v2210
    %2214 = vrot.lane.b32.xlu0 %v2208, 64
    %v2215 = vpop.permute.xlu0 %2214
    %v2217 = vmul.f32 %v2206, %v2215
    %2219 = vrot.lane.b32.xlu0 %v2217, 32
    %v2220 = vpop.permute.xlu0 %2219
    %v2222 = vadd.f32 %v2212, %v2220
    %v2223 = vtanh.pop %v2222
    %2225 = vrot.lane.b32.xlu0 %v2223, 64
    %v2226 = vpop.permute.xlu0 %2225
    %v2228 = vmul.f32 %v2206, %v2226
    %v2230 = vrot.slane %v2228, 5
    %2231 = vrot.lane.b32.xlu0 %v2230, 32
    %v2232 = vpop.permute.xlu0 %2231
    %2234 = vxpose.xlu0.b32.start [1/16] %v2232, 128
    %2235 = vxpose.xlu0.b32.cont [2/16] 0.0, 128
    %2236 = vxpose.xlu0.b32.cont [3/16] 0.0, 128
    %2237 = vxpose.xlu0.b32.cont [4/16] 0.0, 128
    %2238 = vxpose.xlu0.b32.cont [5/16] 0.0, 128
    %2239 = vxpose.xlu0.b32.cont [6/16] 0.0, 128
    %2240 = vxpose.xlu0.b32.cont [7/16] 0.0, 128
    %2241 = vxpose.xlu0.b32.cont [8/16] 0.0, 128
    %2242 = vxpose.xlu0.b32.cont [9/16] 0.0, 128
    %2243 = vxpose.xlu0.b32.cont [10/16] 0.0, 128
    %2244 = vxpose.xlu0.b32.cont [11/16] 0.0, 128
    %2245 = vxpose.xlu0.b32.cont [12/16] 0.0, 128
    %2246 = vxpose.xlu0.b32.cont [13/16] 0.0, 128
    %2247 = vxpose.xlu0.b32.cont [14/16] 0.0, 128
    %2248 = vxpose.xlu0.b32.cont [15/16] 0.0, 128
    %2249 = vxpose.xlu0.b32.end [16/16] 0.0, 128
    %v2250 = vpop.trf.xlu0
    %v2251 = vpop.trf.xlu0
    %v2252 = vpop.trf.xlu0
    %v2253 = vpop.trf.xlu0
    %v2254 = vpop.trf.xlu0
    %v2255 = vpop.trf.xlu0
    %v2256 = vpop.trf.xlu0
    %v2257 = vpop.trf.xlu0
    %v2258 = vpop.trf.xlu0
    %v2259 = vpop.trf.xlu0
    %v2260 = vpop.trf.xlu0
    %v2261 = vpop.trf.xlu0
    %v2262 = vpop.trf.xlu0
    %v2263 = vpop.trf.xlu0
    %v2264 = vpop.trf.xlu0
    %v2265 = vpop.trf.xlu0
    %2267 = vset.pattern.permute.xlu0 0
    %2268 = vperm.xlu0 %2267, %v2250
    %v2269 = vpop.permute.xlu0 %2268
    %2272 = vset.pattern.permute.xlu0 0
    %2273 = vperm.xlu0 %2272, %v2251
    %v2274 = vpop.permute.xlu0 %2273
    %2277 = vset.pattern.permute.xlu0 0
    %2278 = vperm.xlu0 %2277, %v2252
    %v2279 = vpop.permute.xlu0 %2278
    %2282 = vset.pattern.permute.xlu0 0
    %2283 = vperm.xlu0 %2282, %v2253
    %v2284 = vpop.permute.xlu0 %2283
    %v2286 = vmul.f32 %v2269, %v35
    %v2287 = vmul.f32 %v2274, %v36
    %v2288 = vmul.f32 %v2279, %v37
    %v2289 = vmul.f32 %v2284, %v38
    %v2290 = vadd.f32 %v2286, %v2287
    %v2291 = vadd.f32 %v2290, %v2288
    %v2292 = vadd.f32 %v2291, %v2289
    %v2293 = vrot.slane %v2292, 4
    %v2294 = vadd.f32 %v2292, %v2293
    %v2295 = vrot.slane %v2294, 2
    %v2296 = vadd.f32 %v2294, %v2295
    %v2297 = vrot.slane %v2296, 1
    %v2298 = vadd.f32 %v2296, %v2297
    %v2299 = vadd.f32 %v126, %v2298
    %v2300 = vtanh.pop %v2299
    %v2301 = vmul.f32 %v2300, 0.5
    %v2302 = vadd.f32 %v2301, 0.5
    %v2303 = vmul.f32 %v2302, 2.0
    %v2304 = vsub.f32 %v2303, 1.0
    %v2306 = vrot.slane %v2222, 7
    %v2308 = vmul.f32 %v2302, %v2306
    %2310 = vrot.lane.b32.xlu0 %v2304, 64
    %v2311 = vpop.permute.xlu0 %2310
    %v2313 = vmul.f32 %v2302, %v2311
    %2315 = vrot.lane.b32.xlu0 %v2313, 32
    %v2316 = vpop.permute.xlu0 %2315
    %v2318 = vadd.f32 %v2308, %v2316
    %v2319 = vtanh.pop %v2318
    %2321 = vrot.lane.b32.xlu0 %v2319, 64
    %v2322 = vpop.permute.xlu0 %2321
    %v2324 = vmul.f32 %v2302, %v2322
    %v2326 = vrot.slane %v2324, 6
    %2327 = vrot.lane.b32.xlu0 %v2326, 32
    %v2328 = vpop.permute.xlu0 %2327
    %2330 = vxpose.xlu0.b32.start [1/16] %v2328, 128
    %2331 = vxpose.xlu0.b32.cont [2/16] 0.0, 128
    %2332 = vxpose.xlu0.b32.cont [3/16] 0.0, 128
    %2333 = vxpose.xlu0.b32.cont [4/16] 0.0, 128
    %2334 = vxpose.xlu0.b32.cont [5/16] 0.0, 128
    %2335 = vxpose.xlu0.b32.cont [6/16] 0.0, 128
    %2336 = vxpose.xlu0.b32.cont [7/16] 0.0, 128
    %2337 = vxpose.xlu0.b32.cont [8/16] 0.0, 128
    %2338 = vxpose.xlu0.b32.cont [9/16] 0.0, 128
    %2339 = vxpose.xlu0.b32.cont [10/16] 0.0, 128
    %2340 = vxpose.xlu0.b32.cont [11/16] 0.0, 128
    %2341 = vxpose.xlu0.b32.cont [12/16] 0.0, 128
    %2342 = vxpose.xlu0.b32.cont [13/16] 0.0, 128
    %2343 = vxpose.xlu0.b32.cont [14/16] 0.0, 128
    %2344 = vxpose.xlu0.b32.cont [15/16] 0.0, 128
    %2345 = vxpose.xlu0.b32.end [16/16] 0.0, 128
    %v2346 = vpop.trf.xlu0
    %v2347 = vpop.trf.xlu0
    %v2348 = vpop.trf.xlu0
    %v2349 = vpop.trf.xlu0
    %v2350 = vpop.trf.xlu0
    %v2351 = vpop.trf.xlu0
    %v2352 = vpop.trf.xlu0
    %v2353 = vpop.trf.xlu0
    %v2354 = vpop.trf.xlu0
    %v2355 = vpop.trf.xlu0
    %v2356 = vpop.trf.xlu0
    %v2357 = vpop.trf.xlu0
    %v2358 = vpop.trf.xlu0
    %v2359 = vpop.trf.xlu0
    %v2360 = vpop.trf.xlu0
    %v2361 = vpop.trf.xlu0
    %2363 = vset.pattern.permute.xlu0 0
    %2364 = vperm.xlu0 %2363, %v2346
    %v2365 = vpop.permute.xlu0 %2364
    %2368 = vset.pattern.permute.xlu0 0
    %2369 = vperm.xlu0 %2368, %v2347
    %v2370 = vpop.permute.xlu0 %2369
    %2373 = vset.pattern.permute.xlu0 0
    %2374 = vperm.xlu0 %2373, %v2348
    %v2375 = vpop.permute.xlu0 %2374
    %2378 = vset.pattern.permute.xlu0 0
    %2379 = vperm.xlu0 %2378, %v2349
    %v2380 = vpop.permute.xlu0 %2379
    %v2382 = vmul.f32 %v2365, %v35
    %v2383 = vmul.f32 %v2370, %v36
    %v2384 = vmul.f32 %v2375, %v37
    %v2385 = vmul.f32 %v2380, %v38
    %v2386 = vadd.f32 %v2382, %v2383
    %v2387 = vadd.f32 %v2386, %v2384
    %v2388 = vadd.f32 %v2387, %v2385
    %v2389 = vrot.slane %v2388, 4
    %v2390 = vadd.f32 %v2388, %v2389
    %v2391 = vrot.slane %v2390, 2
    %v2392 = vadd.f32 %v2390, %v2391
    %v2393 = vrot.slane %v2392, 1
    %v2394 = vadd.f32 %v2392, %v2393
    %v2395 = vadd.f32 %v126, %v2394
    %v2396 = vtanh.pop %v2395
    %v2397 = vmul.f32 %v2396, 0.5
    %v2398 = vadd.f32 %v2397, 0.5
    %v2399 = vmul.f32 %v2398, 2.0
    %v2400 = vsub.f32 %v2399, 1.0
    %v2402 = vrot.slane %v2318, 7
    %v2404 = vmul.f32 %v2398, %v2402
    %2406 = vrot.lane.b32.xlu0 %v2400, 64
    %v2407 = vpop.permute.xlu0 %2406
    %v2409 = vmul.f32 %v2398, %v2407
    %2411 = vrot.lane.b32.xlu0 %v2409, 32
    %v2412 = vpop.permute.xlu0 %2411
    %v2414 = vadd.f32 %v2404, %v2412
    %v2415 = vtanh.pop %v2414
    %2417 = vrot.lane.b32.xlu0 %v2415, 64
    %v2418 = vpop.permute.xlu0 %2417
    %v2420 = vmul.f32 %v2398, %v2418
    %v2422 = vrot.slane %v2420, 7
    %2423 = vrot.lane.b32.xlu0 %v2422, 32
    %v2424 = vpop.permute.xlu0 %2423
    %2426 = vxpose.xlu0.b32.start [1/16] %v2424, 128
    %2427 = vxpose.xlu0.b32.cont [2/16] 0.0, 128
    %2428 = vxpose.xlu0.b32.cont [3/16] 0.0, 128
    %2429 = vxpose.xlu0.b32.cont [4/16] 0.0, 128
    %2430 = vxpose.xlu0.b32.cont [5/16] 0.0, 128
    %2431 = vxpose.xlu0.b32.cont [6/16] 0.0, 128
    %2432 = vxpose.xlu0.b32.cont [7/16] 0.0, 128
    %2433 = vxpose.xlu0.b32.cont [8/16] 0.0, 128
    %2434 = vxpose.xlu0.b32.cont [9/16] 0.0, 128
    %2435 = vxpose.xlu0.b32.cont [10/16] 0.0, 128
    %2436 = vxpose.xlu0.b32.cont [11/16] 0.0, 128
    %2437 = vxpose.xlu0.b32.cont [12/16] 0.0, 128
    %2438 = vxpose.xlu0.b32.cont [13/16] 0.0, 128
    %2439 = vxpose.xlu0.b32.cont [14/16] 0.0, 128
    %2440 = vxpose.xlu0.b32.cont [15/16] 0.0, 128
    %2441 = vxpose.xlu0.b32.end [16/16] 0.0, 128
    %v2442 = vpop.trf.xlu0
    %v2443 = vpop.trf.xlu0
    %v2444 = vpop.trf.xlu0
    %v2445 = vpop.trf.xlu0
    %v2446 = vpop.trf.xlu0
    %v2447 = vpop.trf.xlu0
    %v2448 = vpop.trf.xlu0
    %v2449 = vpop.trf.xlu0
    %v2450 = vpop.trf.xlu0
    %v2451 = vpop.trf.xlu0
    %v2452 = vpop.trf.xlu0
    %v2453 = vpop.trf.xlu0
    %v2454 = vpop.trf.xlu0
    %v2455 = vpop.trf.xlu0
    %v2456 = vpop.trf.xlu0
    %v2457 = vpop.trf.xlu0
    %2459 = vset.pattern.permute.xlu0 0
    %2460 = vperm.xlu0 %2459, %v2442
    %v2461 = vpop.permute.xlu0 %2460
    %2464 = vset.pattern.permute.xlu0 0
    %2465 = vperm.xlu0 %2464, %v2443
    %v2466 = vpop.permute.xlu0 %2465
    %2469 = vset.pattern.permute.xlu0 0
    %2470 = vperm.xlu0 %2469, %v2444
    %v2471 = vpop.permute.xlu0 %2470
    %2474 = vset.pattern.permute.xlu0 0
    %2475 = vperm.xlu0 %2474, %v2445
    %v2476 = vpop.permute.xlu0 %2475
    %v2478 = vmul.f32 %v2461, %v35
    %v2479 = vmul.f32 %v2466, %v36
    %v2480 = vmul.f32 %v2471, %v37
    %v2481 = vmul.f32 %v2476, %v38
    %v2482 = vadd.f32 %v2478, %v2479
    %v2483 = vadd.f32 %v2482, %v2480
    %v2484 = vadd.f32 %v2483, %v2481
    %v2485 = vrot.slane %v2484, 4
    %v2486 = vadd.f32 %v2484, %v2485
    %v2487 = vrot.slane %v2486, 2
    %v2488 = vadd.f32 %v2486, %v2487
    %v2489 = vrot.slane %v2488, 1
    %v2490 = vadd.f32 %v2488, %v2489
    %v2491 = vadd.f32 %v127, %v2490
    %v2492 = vtanh.pop %v2491
    %v2493 = vmul.f32 %v2492, 0.5
    %v2494 = vadd.f32 %v2493, 0.5
    %v2495 = vmul.f32 %v2494, 2.0
    %v2496 = vsub.f32 %v2495, 1.0
    %v2498 = vrot.slane %v2414, 7
    %v2500 = vmul.f32 %v2494, %v2498
    %2502 = vrot.lane.b32.xlu0 %v2496, 64
    %v2503 = vpop.permute.xlu0 %2502
    %v2505 = vmul.f32 %v2494, %v2503
    %2507 = vrot.lane.b32.xlu0 %v2505, 32
    %v2508 = vpop.permute.xlu0 %2507
    %v2510 = vadd.f32 %v2500, %v2508
    %v2511 = vtanh.pop %v2510
    %2513 = vrot.lane.b32.xlu0 %v2511, 64
    %v2514 = vpop.permute.xlu0 %2513
    %v2516 = vmul.f32 %v2494, %v2514
    %2518 = vrot.lane.b32.xlu0 %v2516, 32
    %v2519 = vpop.permute.xlu0 %2518
    %2521 = vxpose.xlu0.b32.start [1/16] %v2519, 128
    %2522 = vxpose.xlu0.b32.cont [2/16] 0.0, 128
    %2523 = vxpose.xlu0.b32.cont [3/16] 0.0, 128
    %2524 = vxpose.xlu0.b32.cont [4/16] 0.0, 128
    %2525 = vxpose.xlu0.b32.cont [5/16] 0.0, 128
    %2526 = vxpose.xlu0.b32.cont [6/16] 0.0, 128
    %2527 = vxpose.xlu0.b32.cont [7/16] 0.0, 128
    %2528 = vxpose.xlu0.b32.cont [8/16] 0.0, 128
    %2529 = vxpose.xlu0.b32.cont [9/16] 0.0, 128
    %2530 = vxpose.xlu0.b32.cont [10/16] 0.0, 128
    %2531 = vxpose.xlu0.b32.cont [11/16] 0.0, 128
    %2532 = vxpose.xlu0.b32.cont [12/16] 0.0, 128
    %2533 = vxpose.xlu0.b32.cont [13/16] 0.0, 128
    %2534 = vxpose.xlu0.b32.cont [14/16] 0.0, 128
    %2535 = vxpose.xlu0.b32.cont [15/16] 0.0, 128
    %2536 = vxpose.xlu0.b32.end [16/16] 0.0, 128
    %v2537 = vpop.trf.xlu0
    %v2538 = vpop.trf.xlu0
    %v2539 = vpop.trf.xlu0
    %v2540 = vpop.trf.xlu0
    %v2541 = vpop.trf.xlu0
    %v2542 = vpop.trf.xlu0
    %v2543 = vpop.trf.xlu0
    %v2544 = vpop.trf.xlu0
    %v2545 = vpop.trf.xlu0
    %v2546 = vpop.trf.xlu0
    %v2547 = vpop.trf.xlu0
    %v2548 = vpop.trf.xlu0
    %v2549 = vpop.trf.xlu0
    %v2550 = vpop.trf.xlu0
    %v2551 = vpop.trf.xlu0
    %v2552 = vpop.trf.xlu0
    %2554 = vset.pattern.permute.xlu0 0
    %2555 = vperm.xlu0 %2554, %v2537
    %v2556 = vpop.permute.xlu0 %2555
    %2559 = vset.pattern.permute.xlu0 0
    %2560 = vperm.xlu0 %2559, %v2538
    %v2561 = vpop.permute.xlu0 %2560
    %2564 = vset.pattern.permute.xlu0 0
    %2565 = vperm.xlu0 %2564, %v2539
    %v2566 = vpop.permute.xlu0 %2565
    %2569 = vset.pattern.permute.xlu0 0
    %2570 = vperm.xlu0 %2569, %v2540
    %v2571 = vpop.permute.xlu0 %2570
    %v2573 = vmul.f32 %v2556, %v35
    %v2574 = vmul.f32 %v2561, %v36
    %v2575 = vmul.f32 %v2566, %v37
    %v2576 = vmul.f32 %v2571, %v38
    %v2577 = vadd.f32 %v2573, %v2574
    %v2578 = vadd.f32 %v2577, %v2575
    %v2579 = vadd.f32 %v2578, %v2576
    %v2580 = vrot.slane %v2579, 4
    %v2581 = vadd.f32 %v2579, %v2580
    %v2582 = vrot.slane %v2581, 2
    %v2583 = vadd.f32 %v2581, %v2582
    %v2584 = vrot.slane %v2583, 1
    %v2585 = vadd.f32 %v2583, %v2584
    %v2586 = vadd.f32 %v127, %v2585
    %v2587 = vtanh.pop %v2586
    %v2588 = vmul.f32 %v2587, 0.5
    %v2589 = vadd.f32 %v2588, 0.5
    %v2590 = vmul.f32 %v2589, 2.0
    %v2591 = vsub.f32 %v2590, 1.0
    %v2593 = vrot.slane %v2510, 7
    %v2595 = vmul.f32 %v2589, %v2593
    %2597 = vrot.lane.b32.xlu0 %v2591, 64
    %v2598 = vpop.permute.xlu0 %2597
    %v2600 = vmul.f32 %v2589, %v2598
    %2602 = vrot.lane.b32.xlu0 %v2600, 32
    %v2603 = vpop.permute.xlu0 %2602
    %v2605 = vadd.f32 %v2595, %v2603
    %v2606 = vtanh.pop %v2605
    %2608 = vrot.lane.b32.xlu0 %v2606, 64
    %v2609 = vpop.permute.xlu0 %2608
    %v2611 = vmul.f32 %v2589, %v2609
    %v2613 = vrot.slane %v2611, 1
    %2614 = vrot.lane.b32.xlu0 %v2613, 32
    %v2615 = vpop.permute.xlu0 %2614
    %2617 = vxpose.xlu0.b32.start [1/16] %v2615, 128
    %2618 = vxpose.xlu0.b32.cont [2/16] 0.0, 128
    %2619 = vxpose.xlu0.b32.cont [3/16] 0.0, 128
    %2620 = vxpose.xlu0.b32.cont [4/16] 0.0, 128
    %2621 = vxpose.xlu0.b32.cont [5/16] 0.0, 128
    %2622 = vxpose.xlu0.b32.cont [6/16] 0.0, 128
    %2623 = vxpose.xlu0.b32.cont [7/16] 0.0, 128
    %2624 = vxpose.xlu0.b32.cont [8/16] 0.0, 128
    %2625 = vxpose.xlu0.b32.cont [9/16] 0.0, 128
    %2626 = vxpose.xlu0.b32.cont [10/16] 0.0, 128
    %2627 = vxpose.xlu0.b32.cont [11/16] 0.0, 128
    %2628 = vxpose.xlu0.b32.cont [12/16] 0.0, 128
    %2629 = vxpose.xlu0.b32.cont [13/16] 0.0, 128
    %2630 = vxpose.xlu0.b32.cont [14/16] 0.0, 128
    %2631 = vxpose.xlu0.b32.cont [15/16] 0.0, 128
    %2632 = vxpose.xlu0.b32.end [16/16] 0.0, 128
    %v2633 = vpop.trf.xlu0
    %v2634 = vpop.trf.xlu0
    %v2635 = vpop.trf.xlu0
    %v2636 = vpop.trf.xlu0
    %v2637 = vpop.trf.xlu0
    %v2638 = vpop.trf.xlu0
    %v2639 = vpop.trf.xlu0
    %v2640 = vpop.trf.xlu0
    %v2641 = vpop.trf.xlu0
    %v2642 = vpop.trf.xlu0
    %v2643 = vpop.trf.xlu0
    %v2644 = vpop.trf.xlu0
    %v2645 = vpop.trf.xlu0
    %v2646 = vpop.trf.xlu0
    %v2647 = vpop.trf.xlu0
    %v2648 = vpop.trf.xlu0
    %2650 = vset.pattern.permute.xlu0 0
    %2651 = vperm.xlu0 %2650, %v2633
    %v2652 = vpop.permute.xlu0 %2651
    %2655 = vset.pattern.permute.xlu0 0
    %2656 = vperm.xlu0 %2655, %v2634
    %v2657 = vpop.permute.xlu0 %2656
    %2660 = vset.pattern.permute.xlu0 0
    %2661 = vperm.xlu0 %2660, %v2635
    %v2662 = vpop.permute.xlu0 %2661
    %2665 = vset.pattern.permute.xlu0 0
    %2666 = vperm.xlu0 %2665, %v2636
    %v2667 = vpop.permute.xlu0 %2666
    %v2669 = vmul.f32 %v2652, %v35
    %v2670 = vmul.f32 %v2657, %v36
    %v2671 = vmul.f32 %v2662, %v37
    %v2672 = vmul.f32 %v2667, %v38
    %v2673 = vadd.f32 %v2669, %v2670
    %v2674 = vadd.f32 %v2673, %v2671
    %v2675 = vadd.f32 %v2674, %v2672
    %v2676 = vrot.slane %v2675, 4
    %v2677 = vadd.f32 %v2675, %v2676
    %v2678 = vrot.slane %v2677, 2
    %v2679 = vadd.f32 %v2677, %v2678
    %v2680 = vrot.slane %v2679, 1
    %v2681 = vadd.f32 %v2679, %v2680
    %v2682 = vadd.f32 %v127, %v2681
    %v2683 = vtanh.pop %v2682
    %v2684 = vmul.f32 %v2683, 0.5
    %v2685 = vadd.f32 %v2684, 0.5
    %v2686 = vmul.f32 %v2685, 2.0
    %v2687 = vsub.f32 %v2686, 1.0
    %v2689 = vrot.slane %v2605, 7
    %v2691 = vmul.f32 %v2685, %v2689
    %2693 = vrot.lane.b32.xlu0 %v2687, 64
    %v2694 = vpop.permute.xlu0 %2693
    %v2696 = vmul.f32 %v2685, %v2694
    %2698 = vrot.lane.b32.xlu0 %v2696, 32
    %v2699 = vpop.permute.xlu0 %2698
    %v2701 = vadd.f32 %v2691, %v2699
    %v2702 = vtanh.pop %v2701
    %2704 = vrot.lane.b32.xlu0 %v2702, 64
    %v2705 = vpop.permute.xlu0 %2704
    %v2707 = vmul.f32 %v2685, %v2705
    %v2709 = vrot.slane %v2707, 2
    %2710 = vrot.lane.b32.xlu0 %v2709, 32
    %v2711 = vpop.permute.xlu0 %2710
    %2713 = vxpose.xlu0.b32.start [1/16] %v2711, 128
    %2714 = vxpose.xlu0.b32.cont [2/16] 0.0, 128
    %2715 = vxpose.xlu0.b32.cont [3/16] 0.0, 128
    %2716 = vxpose.xlu0.b32.cont [4/16] 0.0, 128
    %2717 = vxpose.xlu0.b32.cont [5/16] 0.0, 128
    %2718 = vxpose.xlu0.b32.cont [6/16] 0.0, 128
    %2719 = vxpose.xlu0.b32.cont [7/16] 0.0, 128
    %2720 = vxpose.xlu0.b32.cont [8/16] 0.0, 128
    %2721 = vxpose.xlu0.b32.cont [9/16] 0.0, 128
    %2722 = vxpose.xlu0.b32.cont [10/16] 0.0, 128
    %2723 = vxpose.xlu0.b32.cont [11/16] 0.0, 128
    %2724 = vxpose.xlu0.b32.cont [12/16] 0.0, 128
    %2725 = vxpose.xlu0.b32.cont [13/16] 0.0, 128
    %2726 = vxpose.xlu0.b32.cont [14/16] 0.0, 128
    %2727 = vxpose.xlu0.b32.cont [15/16] 0.0, 128
    %2728 = vxpose.xlu0.b32.end [16/16] 0.0, 128
    %v2729 = vpop.trf.xlu0
    %v2730 = vpop.trf.xlu0
    %v2731 = vpop.trf.xlu0
    %v2732 = vpop.trf.xlu0
    %v2733 = vpop.trf.xlu0
    %v2734 = vpop.trf.xlu0
    %v2735 = vpop.trf.xlu0
    %v2736 = vpop.trf.xlu0
    %v2737 = vpop.trf.xlu0
    %v2738 = vpop.trf.xlu0
    %v2739 = vpop.trf.xlu0
    %v2740 = vpop.trf.xlu0
    %v2741 = vpop.trf.xlu0
    %v2742 = vpop.trf.xlu0
    %v2743 = vpop.trf.xlu0
    %v2744 = vpop.trf.xlu0
    %2746 = vset.pattern.permute.xlu0 0
    %2747 = vperm.xlu0 %2746, %v2729
    %v2748 = vpop.permute.xlu0 %2747
    %2751 = vset.pattern.permute.xlu0 0
    %2752 = vperm.xlu0 %2751, %v2730
    %v2753 = vpop.permute.xlu0 %2752
    %2756 = vset.pattern.permute.xlu0 0
    %2757 = vperm.xlu0 %2756, %v2731
    %v2758 = vpop.permute.xlu0 %2757
    %2761 = vset.pattern.permute.xlu0 0
    %2762 = vperm.xlu0 %2761, %v2732
    %v2763 = vpop.permute.xlu0 %2762
    %v2765 = vmul.f32 %v2748, %v35
    %v2766 = vmul.f32 %v2753, %v36
    %v2767 = vmul.f32 %v2758, %v37
    %v2768 = vmul.f32 %v2763, %v38
    %v2769 = vadd.f32 %v2765, %v2766
    %v2770 = vadd.f32 %v2769, %v2767
    %v2771 = vadd.f32 %v2770, %v2768
    %v2772 = vrot.slane %v2771, 4
    %v2773 = vadd.f32 %v2771, %v2772
    %v2774 = vrot.slane %v2773, 2
    %v2775 = vadd.f32 %v2773, %v2774
    %v2776 = vrot.slane %v2775, 1
    %v2777 = vadd.f32 %v2775, %v2776
    %v2778 = vadd.f32 %v127, %v2777
    %v2779 = vtanh.pop %v2778
    %v2780 = vmul.f32 %v2779, 0.5
    %v2781 = vadd.f32 %v2780, 0.5
    %v2782 = vmul.f32 %v2781, 2.0
    %v2783 = vsub.f32 %v2782, 1.0
    %v2785 = vrot.slane %v2701, 7
    %v2787 = vmul.f32 %v2781, %v2785
    %2789 = vrot.lane.b32.xlu0 %v2783, 64
    %v2790 = vpop.permute.xlu0 %2789
    %v2792 = vmul.f32 %v2781, %v2790
    %2794 = vrot.lane.b32.xlu0 %v2792, 32
    %v2795 = vpop.permute.xlu0 %2794
    %v2797 = vadd.f32 %v2787, %v2795
    %v2798 = vtanh.pop %v2797
    %2800 = vrot.lane.b32.xlu0 %v2798, 64
    %v2801 = vpop.permute.xlu0 %2800
    %v2803 = vmul.f32 %v2781, %v2801
    %v2805 = vrot.slane %v2803, 3
    %2806 = vrot.lane.b32.xlu0 %v2805, 32
    %v2807 = vpop.permute.xlu0 %2806
    %2809 = vxpose.xlu0.b32.start [1/16] %v2807, 128
    %2810 = vxpose.xlu0.b32.cont [2/16] 0.0, 128
    %2811 = vxpose.xlu0.b32.cont [3/16] 0.0, 128
    %2812 = vxpose.xlu0.b32.cont [4/16] 0.0, 128
    %2813 = vxpose.xlu0.b32.cont [5/16] 0.0, 128
    %2814 = vxpose.xlu0.b32.cont [6/16] 0.0, 128
    %2815 = vxpose.xlu0.b32.cont [7/16] 0.0, 128
    %2816 = vxpose.xlu0.b32.cont [8/16] 0.0, 128
    %2817 = vxpose.xlu0.b32.cont [9/16] 0.0, 128
    %2818 = vxpose.xlu0.b32.cont [10/16] 0.0, 128
    %2819 = vxpose.xlu0.b32.cont [11/16] 0.0, 128
    %2820 = vxpose.xlu0.b32.cont [12/16] 0.0, 128
    %2821 = vxpose.xlu0.b32.cont [13/16] 0.0, 128
    %2822 = vxpose.xlu0.b32.cont [14/16] 0.0, 128
    %2823 = vxpose.xlu0.b32.cont [15/16] 0.0, 128
    %2824 = vxpose.xlu0.b32.end [16/16] 0.0, 128
    %v2825 = vpop.trf.xlu0
    %v2826 = vpop.trf.xlu0
    %v2827 = vpop.trf.xlu0
    %v2828 = vpop.trf.xlu0
    %v2829 = vpop.trf.xlu0
    %v2830 = vpop.trf.xlu0
    %v2831 = vpop.trf.xlu0
    %v2832 = vpop.trf.xlu0
    %v2833 = vpop.trf.xlu0
    %v2834 = vpop.trf.xlu0
    %v2835 = vpop.trf.xlu0
    %v2836 = vpop.trf.xlu0
    %v2837 = vpop.trf.xlu0
    %v2838 = vpop.trf.xlu0
    %v2839 = vpop.trf.xlu0
    %v2840 = vpop.trf.xlu0
    %2842 = vset.pattern.permute.xlu0 0
    %2843 = vperm.xlu0 %2842, %v2825
    %v2844 = vpop.permute.xlu0 %2843
    %2847 = vset.pattern.permute.xlu0 0
    %2848 = vperm.xlu0 %2847, %v2826
    %v2849 = vpop.permute.xlu0 %2848
    %2852 = vset.pattern.permute.xlu0 0
    %2853 = vperm.xlu0 %2852, %v2827
    %v2854 = vpop.permute.xlu0 %2853
    %2857 = vset.pattern.permute.xlu0 0
    %2858 = vperm.xlu0 %2857, %v2828
    %v2859 = vpop.permute.xlu0 %2858
    %v2861 = vmul.f32 %v2844, %v35
    %v2862 = vmul.f32 %v2849, %v36
    %v2863 = vmul.f32 %v2854, %v37
    %v2864 = vmul.f32 %v2859, %v38
    %v2865 = vadd.f32 %v2861, %v2862
    %v2866 = vadd.f32 %v2865, %v2863
    %v2867 = vadd.f32 %v2866, %v2864
    %v2868 = vrot.slane %v2867, 4
    %v2869 = vadd.f32 %v2867, %v2868
    %v2870 = vrot.slane %v2869, 2
    %v2871 = vadd.f32 %v2869, %v2870
    %v2872 = vrot.slane %v2871, 1
    %v2873 = vadd.f32 %v2871, %v2872
    %v2874 = vadd.f32 %v127, %v2873
    %v2875 = vtanh.pop %v2874
    %v2876 = vmul.f32 %v2875, 0.5
    %v2877 = vadd.f32 %v2876, 0.5
    %v2878 = vmul.f32 %v2877, 2.0
    %v2879 = vsub.f32 %v2878, 1.0
    %v2881 = vrot.slane %v2797, 7
    %v2883 = vmul.f32 %v2877, %v2881
    %2885 = vrot.lane.b32.xlu0 %v2879, 64
    %v2886 = vpop.permute.xlu0 %2885
    %v2888 = vmul.f32 %v2877, %v2886
    %2890 = vrot.lane.b32.xlu0 %v2888, 32
    %v2891 = vpop.permute.xlu0 %2890
    %v2893 = vadd.f32 %v2883, %v2891
    %v2894 = vtanh.pop %v2893
    %2896 = vrot.lane.b32.xlu0 %v2894, 64
    %v2897 = vpop.permute.xlu0 %2896
    %v2899 = vmul.f32 %v2877, %v2897
    %v2901 = vrot.slane %v2899, 4
    %2902 = vrot.lane.b32.xlu0 %v2901, 32
    %v2903 = vpop.permute.xlu0 %2902
    %2905 = vxpose.xlu0.b32.start [1/16] %v2903, 128
    %2906 = vxpose.xlu0.b32.cont [2/16] 0.0, 128
    %2907 = vxpose.xlu0.b32.cont [3/16] 0.0, 128
    %2908 = vxpose.xlu0.b32.cont [4/16] 0.0, 128
    %2909 = vxpose.xlu0.b32.cont [5/16] 0.0, 128
    %2910 = vxpose.xlu0.b32.cont [6/16] 0.0, 128
    %2911 = vxpose.xlu0.b32.cont [7/16] 0.0, 128
    %2912 = vxpose.xlu0.b32.cont [8/16] 0.0, 128
    %2913 = vxpose.xlu0.b32.cont [9/16] 0.0, 128
    %2914 = vxpose.xlu0.b32.cont [10/16] 0.0, 128
    %2915 = vxpose.xlu0.b32.cont [11/16] 0.0, 128
    %2916 = vxpose.xlu0.b32.cont [12/16] 0.0, 128
    %2917 = vxpose.xlu0.b32.cont [13/16] 0.0, 128
    %2918 = vxpose.xlu0.b32.cont [14/16] 0.0, 128
    %2919 = vxpose.xlu0.b32.cont [15/16] 0.0, 128
    %2920 = vxpose.xlu0.b32.end [16/16] 0.0, 128
    %v2921 = vpop.trf.xlu0
    %v2922 = vpop.trf.xlu0
    %v2923 = vpop.trf.xlu0
    %v2924 = vpop.trf.xlu0
    %v2925 = vpop.trf.xlu0
    %v2926 = vpop.trf.xlu0
    %v2927 = vpop.trf.xlu0
    %v2928 = vpop.trf.xlu0
    %v2929 = vpop.trf.xlu0
    %v2930 = vpop.trf.xlu0
    %v2931 = vpop.trf.xlu0
    %v2932 = vpop.trf.xlu0
    %v2933 = vpop.trf.xlu0
    %v2934 = vpop.trf.xlu0
    %v2935 = vpop.trf.xlu0
    %v2936 = vpop.trf.xlu0
    %2938 = vset.pattern.permute.xlu0 0
    %2939 = vperm.xlu0 %2938, %v2921
    %v2940 = vpop.permute.xlu0 %2939
    %2943 = vset.pattern.permute.xlu0 0
    %2944 = vperm.xlu0 %2943, %v2922
    %v2945 = vpop.permute.xlu0 %2944
    %2948 = vset.pattern.permute.xlu0 0
    %2949 = vperm.xlu0 %2948, %v2923
    %v2950 = vpop.permute.xlu0 %2949
    %2953 = vset.pattern.permute.xlu0 0
    %2954 = vperm.xlu0 %2953, %v2924
    %v2955 = vpop.permute.xlu0 %2954
    %v2957 = vmul.f32 %v2940, %v35
    %v2958 = vmul.f32 %v2945, %v36
    %v2959 = vmul.f32 %v2950, %v37
    %v2960 = vmul.f32 %v2955, %v38
    %v2961 = vadd.f32 %v2957, %v2958
    %v2962 = vadd.f32 %v2961, %v2959
    %v2963 = vadd.f32 %v2962, %v2960
    %v2964 = vrot.slane %v2963, 4
    %v2965 = vadd.f32 %v2963, %v2964
    %v2966 = vrot.slane %v2965, 2
    %v2967 = vadd.f32 %v2965, %v2966
    %v2968 = vrot.slane %v2967, 1
    %v2969 = vadd.f32 %v2967, %v2968
    %v2970 = vadd.f32 %v127, %v2969
    %v2971 = vtanh.pop %v2970
    %v2972 = vmul.f32 %v2971, 0.5
    %v2973 = vadd.f32 %v2972, 0.5
    %v2974 = vmul.f32 %v2973, 2.0
    %v2975 = vsub.f32 %v2974, 1.0
    %v2977 = vrot.slane %v2893, 7
    %v2979 = vmul.f32 %v2973, %v2977
    %2981 = vrot.lane.b32.xlu0 %v2975, 64
    %v2982 = vpop.permute.xlu0 %2981
    %v2984 = vmul.f32 %v2973, %v2982
    %2986 = vrot.lane.b32.xlu0 %v2984, 32
    %v2987 = vpop.permute.xlu0 %2986
    %v2989 = vadd.f32 %v2979, %v2987
    %v2990 = vtanh.pop %v2989
    %2992 = vrot.lane.b32.xlu0 %v2990, 64
    %v2993 = vpop.permute.xlu0 %2992
    %v2995 = vmul.f32 %v2973, %v2993
    %v2997 = vrot.slane %v2995, 5
    %2998 = vrot.lane.b32.xlu0 %v2997, 32
    %v2999 = vpop.permute.xlu0 %2998
    %3001 = vxpose.xlu0.b32.start [1/16] %v2999, 128
    %3002 = vxpose.xlu0.b32.cont [2/16] 0.0, 128
    %3003 = vxpose.xlu0.b32.cont [3/16] 0.0, 128
    %3004 = vxpose.xlu0.b32.cont [4/16] 0.0, 128
    %3005 = vxpose.xlu0.b32.cont [5/16] 0.0, 128
    %3006 = vxpose.xlu0.b32.cont [6/16] 0.0, 128
    %3007 = vxpose.xlu0.b32.cont [7/16] 0.0, 128
    %3008 = vxpose.xlu0.b32.cont [8/16] 0.0, 128
    %3009 = vxpose.xlu0.b32.cont [9/16] 0.0, 128
    %3010 = vxpose.xlu0.b32.cont [10/16] 0.0, 128
    %3011 = vxpose.xlu0.b32.cont [11/16] 0.0, 128
    %3012 = vxpose.xlu0.b32.cont [12/16] 0.0, 128
    %3013 = vxpose.xlu0.b32.cont [13/16] 0.0, 128
    %3014 = vxpose.xlu0.b32.cont [14/16] 0.0, 128
    %3015 = vxpose.xlu0.b32.cont [15/16] 0.0, 128
    %3016 = vxpose.xlu0.b32.end [16/16] 0.0, 128
    %v3017 = vpop.trf.xlu0
    %v3018 = vpop.trf.xlu0
    %v3019 = vpop.trf.xlu0
    %v3020 = vpop.trf.xlu0
    %v3021 = vpop.trf.xlu0
    %v3022 = vpop.trf.xlu0
    %v3023 = vpop.trf.xlu0
    %v3024 = vpop.trf.xlu0
    %v3025 = vpop.trf.xlu0
    %v3026 = vpop.trf.xlu0
    %v3027 = vpop.trf.xlu0
    %v3028 = vpop.trf.xlu0
    %v3029 = vpop.trf.xlu0
    %v3030 = vpop.trf.xlu0
    %v3031 = vpop.trf.xlu0
    %v3032 = vpop.trf.xlu0
    %3034 = vset.pattern.permute.xlu0 0
    %3035 = vperm.xlu0 %3034, %v3017
    %v3036 = vpop.permute.xlu0 %3035
    %3039 = vset.pattern.permute.xlu0 0
    %3040 = vperm.xlu0 %3039, %v3018
    %v3041 = vpop.permute.xlu0 %3040
    %3044 = vset.pattern.permute.xlu0 0
    %3045 = vperm.xlu0 %3044, %v3019
    %v3046 = vpop.permute.xlu0 %3045
    %3049 = vset.pattern.permute.xlu0 0
    %3050 = vperm.xlu0 %3049, %v3020
    %v3051 = vpop.permute.xlu0 %3050
    %v3053 = vmul.f32 %v3036, %v35
    %v3054 = vmul.f32 %v3041, %v36
    %v3055 = vmul.f32 %v3046, %v37
    %v3056 = vmul.f32 %v3051, %v38
    %v3057 = vadd.f32 %v3053, %v3054
    %v3058 = vadd.f32 %v3057, %v3055
    %v3059 = vadd.f32 %v3058, %v3056
    %v3060 = vrot.slane %v3059, 4
    %v3061 = vadd.f32 %v3059, %v3060
    %v3062 = vrot.slane %v3061, 2
    %v3063 = vadd.f32 %v3061, %v3062
    %v3064 = vrot.slane %v3063, 1
    %v3065 = vadd.f32 %v3063, %v3064
    %v3066 = vadd.f32 %v127, %v3065
    %v3067 = vtanh.pop %v3066
    %v3068 = vmul.f32 %v3067, 0.5
    %v3069 = vadd.f32 %v3068, 0.5
    %v3070 = vmul.f32 %v3069, 2.0
    %v3071 = vsub.f32 %v3070, 1.0
    %v3073 = vrot.slane %v2989, 7
    %v3075 = vmul.f32 %v3069, %v3073
    %3077 = vrot.lane.b32.xlu0 %v3071, 64
    %v3078 = vpop.permute.xlu0 %3077
    %v3080 = vmul.f32 %v3069, %v3078
    %3082 = vrot.lane.b32.xlu0 %v3080, 32
    %v3083 = vpop.permute.xlu0 %3082
    %v3085 = vadd.f32 %v3075, %v3083
    %v3086 = vtanh.pop %v3085
    %3088 = vrot.lane.b32.xlu0 %v3086, 64
    %v3089 = vpop.permute.xlu0 %3088
    %v3091 = vmul.f32 %v3069, %v3089
    %v3093 = vrot.slane %v3091, 6
    %3094 = vrot.lane.b32.xlu0 %v3093, 32
    %v3095 = vpop.permute.xlu0 %3094
    %3097 = vxpose.xlu0.b32.start [1/16] %v3095, 128
    %3098 = vxpose.xlu0.b32.cont [2/16] 0.0, 128
    %3099 = vxpose.xlu0.b32.cont [3/16] 0.0, 128
    %3100 = vxpose.xlu0.b32.cont [4/16] 0.0, 128
    %3101 = vxpose.xlu0.b32.cont [5/16] 0.0, 128
    %3102 = vxpose.xlu0.b32.cont [6/16] 0.0, 128
    %3103 = vxpose.xlu0.b32.cont [7/16] 0.0, 128
    %3104 = vxpose.xlu0.b32.cont [8/16] 0.0, 128
    %3105 = vxpose.xlu0.b32.cont [9/16] 0.0, 128
    %3106 = vxpose.xlu0.b32.cont [10/16] 0.0, 128
    %3107 = vxpose.xlu0.b32.cont [11/16] 0.0, 128
    %3108 = vxpose.xlu0.b32.cont [12/16] 0.0, 128
    %3109 = vxpose.xlu0.b32.cont [13/16] 0.0, 128
    %3110 = vxpose.xlu0.b32.cont [14/16] 0.0, 128
    %3111 = vxpose.xlu0.b32.cont [15/16] 0.0, 128
    %3112 = vxpose.xlu0.b32.end [16/16] 0.0, 128
    %v3113 = vpop.trf.xlu0
    %v3114 = vpop.trf.xlu0
    %v3115 = vpop.trf.xlu0
    %v3116 = vpop.trf.xlu0
    %v3117 = vpop.trf.xlu0
    %v3118 = vpop.trf.xlu0
    %v3119 = vpop.trf.xlu0
    %v3120 = vpop.trf.xlu0
    %v3121 = vpop.trf.xlu0
    %v3122 = vpop.trf.xlu0
    %v3123 = vpop.trf.xlu0
    %v3124 = vpop.trf.xlu0
    %v3125 = vpop.trf.xlu0
    %v3126 = vpop.trf.xlu0
    %v3127 = vpop.trf.xlu0
    %v3128 = vpop.trf.xlu0
    %3130 = vset.pattern.permute.xlu0 0
    %3131 = vperm.xlu0 %3130, %v3113
    %v3132 = vpop.permute.xlu0 %3131
    %3135 = vset.pattern.permute.xlu0 0
    %3136 = vperm.xlu0 %3135, %v3114
    %v3137 = vpop.permute.xlu0 %3136
    %3140 = vset.pattern.permute.xlu0 0
    %3141 = vperm.xlu0 %3140, %v3115
    %v3142 = vpop.permute.xlu0 %3141
    %3145 = vset.pattern.permute.xlu0 0
    %3146 = vperm.xlu0 %3145, %v3116
    %v3147 = vpop.permute.xlu0 %3146
    %v3149 = vmul.f32 %v3132, %v35
    %v3150 = vmul.f32 %v3137, %v36
    %v3151 = vmul.f32 %v3142, %v37
    %v3152 = vmul.f32 %v3147, %v38
    %v3153 = vadd.f32 %v3149, %v3150
    %v3154 = vadd.f32 %v3153, %v3151
    %v3155 = vadd.f32 %v3154, %v3152
    %v3156 = vrot.slane %v3155, 4
    %v3157 = vadd.f32 %v3155, %v3156
    %v3158 = vrot.slane %v3157, 2
    %v3159 = vadd.f32 %v3157, %v3158
    %v3160 = vrot.slane %v3159, 1
    %v3161 = vadd.f32 %v3159, %v3160
    %v3162 = vadd.f32 %v127, %v3161
    %v3163 = vtanh.pop %v3162
    %v3164 = vmul.f32 %v3163, 0.5
    %v3165 = vadd.f32 %v3164, 0.5
    %v3166 = vmul.f32 %v3165, 2.0
    %v3167 = vsub.f32 %v3166, 1.0
    %v3169 = vrot.slane %v3085, 7
    %v3171 = vmul.f32 %v3165, %v3169
    %3173 = vrot.lane.b32.xlu0 %v3167, 64
    %v3174 = vpop.permute.xlu0 %3173
    %v3176 = vmul.f32 %v3165, %v3174
    %3178 = vrot.lane.b32.xlu0 %v3176, 32
    %v3179 = vpop.permute.xlu0 %3178
    %v3181 = vadd.f32 %v3171, %v3179
    %v3182 = vtanh.pop %v3181
    %3184 = vrot.lane.b32.xlu0 %v3182, 64
    %v3185 = vpop.permute.xlu0 %3184
    %v3187 = vmul.f32 %v3165, %v3185
    %v3189 = vrot.slane %v3187, 7
    %3190 = vrot.lane.b32.xlu0 %v3189, 32
    %v3191 = vpop.permute.xlu0 %3190
    %vm3192 = vcmask 261120
    %v3193 = vsel %vm3192, %v3191, 0
    %3195 = vmatprep.subr.mxu0 0.0
    %3196 = vmatpush1.msra.mxu0 0.0
    %3197 = vmatprep.subr.mxu0 0.0
    %3198 = vmatpush1.msra.mxu0 0.0
    %3199 = vmatprep.subr.mxu0 0.0
    %3200 = vmatpush1.msra.mxu0 0.0
    %3201 = vmatprep.subr.mxu0 0.0
    %3202 = vmatpush1.msra.mxu0 0.0
    %3203 = vmatprep.subr.mxu0 0.0
    %3204 = vmatpush1.msra.mxu0 0.0
    %3205 = vmatprep.subr.mxu0 0.0
    %3206 = vmatpush1.msra.mxu0 0.0
    %3207 = vmatprep.subr.mxu0 0.0
    %3208 = vmatpush1.msra.mxu0 0.0
    %3209 = vmatprep.subr.mxu0 0.0
    %3210 = vmatpush1.msra.mxu0 0.0
    %3211 = vmatprep.subr.mxu0 0.0
    %3212 = vmatpush1.msra.mxu0 0.0
    %3213 = vmatprep.subr.mxu0 0.0
    %3214 = vmatpush1.msra.mxu0 0.0
    %3215 = vmatprep.subr.mxu0 0.0
    %3216 = vmatpush1.msra.mxu0 0.0
    %3217 = vmatprep.subr.mxu0 0.0
    %3218 = vmatpush1.msra.mxu0 0.0
    %3219 = vmatprep.subr.mxu0 0.0
    %3220 = vmatpush1.msra.mxu0 %v42
    %3221 = vmatprep.subr.mxu0 0.0
    %3222 = vmatpush1.msra.mxu0 %v41
    %3223 = vmatprep.subr.mxu0 0.0
    %3224 = vmatpush1.msra.mxu0 %v40
    %3225 = vmatprep.subr.mxu0 0.0
    %3226 = vmatpush1.msra.mxu0 %v39
    %3227 = vmatprep.subr.mxu0 0.0
    %3228 = vmatpush2.msra.mxu0 0.0
    %3229 = vmatprep.subr.mxu0 0.0
    %3230 = vmatpush2.msra.mxu0 0.0
    %3231 = vmatprep.subr.mxu0 0.0
    %3232 = vmatpush2.msra.mxu0 0.0
    %3233 = vmatprep.subr.mxu0 0.0
    %3234 = vmatpush2.msra.mxu0 0.0
    %3235 = vmatprep.subr.mxu0 0.0
    %3236 = vmatpush2.msra.mxu0 0.0
    %3237 = vmatprep.subr.mxu0 0.0
    %3238 = vmatpush2.msra.mxu0 0.0
    %3239 = vmatprep.subr.mxu0 0.0
    %3240 = vmatpush2.msra.mxu0 0.0
    %3241 = vmatprep.subr.mxu0 0.0
    %3242 = vmatpush2.msra.mxu0 0.0
    %3243 = vmatprep.subr.mxu0 0.0
    %3244 = vmatpush2.msra.mxu0 0.0
    %3245 = vmatprep.subr.mxu0 0.0
    %3246 = vmatpush2.msra.mxu0 0.0
    %3247 = vmatprep.subr.mxu0 0.0
    %3248 = vmatpush2.msra.mxu0 0.0
    %3249 = vmatprep.subr.mxu0 0.0
    %3250 = vmatpush2.msra.mxu0 0.0
    %3251 = vmatprep.subr.mxu0 0.0
    %3252 = vmatpush2.msra.mxu0 0.0
    %3253 = vmatprep.subr.mxu0 0.0
    %3254 = vmatpush2.msra.mxu0 0.0
    %3255 = vmatprep.subr.mxu0 0.0
    %3256 = vmatpush2.msra.mxu0 0.0
    %3257 = vmatprep.subr.mxu0 0.0
    %3258 = vmatpush2.msra.mxu0 0.0
    %3259 = vmatprep.mubr.f32.mxu0 0.0
    %3260 = vmatmul.mubr.f32.gmra.mxu0 %v3193
    %v3261 = vpop.f32.mrf.mxu0
    %v3262 = vadd.f32 %v31, %v3261
    %v3263 = vpop.f32.mrf.mxu0
    %3264 = vdwg.mxu0
    %v3265 = vmax.f32 %v3262, 0.0
    %3266 = vmatprep.subr.mxu0 0.0
    %3267 = vmatpush1.msra.mxu0 %v58
    %3268 = vmatprep.subr.mxu0 0.0
    %3269 = vmatpush1.msra.mxu0 %v57
    %3270 = vmatprep.subr.mxu0 0.0
    %3271 = vmatpush1.msra.mxu0 %v56
    %3272 = vmatprep.subr.mxu0 0.0
    %3273 = vmatpush1.msra.mxu0 %v55
    %3274 = vmatprep.subr.mxu0 0.0
    %3275 = vmatpush1.msra.mxu0 %v54
    %3276 = vmatprep.subr.mxu0 0.0
    %3277 = vmatpush1.msra.mxu0 %v53
    %3278 = vmatprep.subr.mxu0 0.0
    %3279 = vmatpush1.msra.mxu0 %v52
    %3280 = vmatprep.subr.mxu0 0.0
    %3281 = vmatpush1.msra.mxu0 %v51
    %3282 = vmatprep.subr.mxu0 0.0
    %3283 = vmatpush1.msra.mxu0 %v50
    %3284 = vmatprep.subr.mxu0 0.0
    %3285 = vmatpush1.msra.mxu0 %v49
    %3286 = vmatprep.subr.mxu0 0.0
    %3287 = vmatpush1.msra.mxu0 %v48
    %3288 = vmatprep.subr.mxu0 0.0
    %3289 = vmatpush1.msra.mxu0 %v47
    %3290 = vmatprep.subr.mxu0 0.0
    %3291 = vmatpush1.msra.mxu0 %v46
    %3292 = vmatprep.subr.mxu0 0.0
    %3293 = vmatpush1.msra.mxu0 %v45
    %3294 = vmatprep.subr.mxu0 0.0
    %3295 = vmatpush1.msra.mxu0 %v44
    %3296 = vmatprep.subr.mxu0 0.0
    %3297 = vmatpush1.msra.mxu0 %v43
    %3298 = vmatprep.subr.mxu0 0.0
    %3299 = vmatpush2.msra.mxu0 0.0
    %3300 = vmatprep.subr.mxu0 0.0
    %3301 = vmatpush2.msra.mxu0 0.0
    %3302 = vmatprep.subr.mxu0 0.0
    %3303 = vmatpush2.msra.mxu0 0.0
    %3304 = vmatprep.subr.mxu0 0.0
    %3305 = vmatpush2.msra.mxu0 0.0
    %3306 = vmatprep.subr.mxu0 0.0
    %3307 = vmatpush2.msra.mxu0 0.0
    %3308 = vmatprep.subr.mxu0 0.0
    %3309 = vmatpush2.msra.mxu0 0.0
    %3310 = vmatprep.subr.mxu0 0.0
    %3311 = vmatpush2.msra.mxu0 0.0
    %3312 = vmatprep.subr.mxu0 0.0
    %3313 = vmatpush2.msra.mxu0 0.0
    %3314 = vmatprep.subr.mxu0 0.0
    %3315 = vmatpush2.msra.mxu0 0.0
    %3316 = vmatprep.subr.mxu0 0.0
    %3317 = vmatpush2.msra.mxu0 0.0
    %3318 = vmatprep.subr.mxu0 0.0
    %3319 = vmatpush2.msra.mxu0 0.0
    %3320 = vmatprep.subr.mxu0 0.0
    %3321 = vmatpush2.msra.mxu0 0.0
    %3322 = vmatprep.subr.mxu0 0.0
    %3323 = vmatpush2.msra.mxu0 0.0
    %3324 = vmatprep.subr.mxu0 0.0
    %3325 = vmatpush2.msra.mxu0 0.0
    %3326 = vmatprep.subr.mxu0 0.0
    %3327 = vmatpush2.msra.mxu0 0.0
    %3328 = vmatprep.subr.mxu0 0.0
    %3329 = vmatpush2.msra.mxu0 0.0
    %3330 = vmatprep.mubr.f32.mxu0 0.0
    %3331 = vmatmul.mubr.f32.gmra.mxu0 %v3265
    %v3332 = vpop.f32.mrf.mxu0
    %v3333 = vadd.f32 %v32, %v3332
    %v3334 = vpop.f32.mrf.mxu0
    %3335 = vdwg.mxu0
    %v3336 = vmax.f32 %v3333, 0.0
    %v3337 = vmul.f32 %v3336, %v33
    %v3338 = vadd.f32 %v3337, %v34
    %vm3339 = vcmask 1040384
    %v3340 = vsel %vm3339, %v3338, 0.0
    %3341 = vadd.xlane.f32.xlu0 %v3340
    %v3342 = vpop.xlane.xlu0 %3341
    %vm3343 = vcmask 0
    %3344 = vst.msk [vmem:[#allocation5] sm:$0x1] %vm3343, %v3342
    // Predicated region
    $region18: #{lstm_wp_forward.1} parent=1 // pred_check
      _
    $region19: #{lstm_wp_forward.1} parent=1 // pred_check_branch
      %3346 = sbr.rel (0) target = $region21
    $region20: #{lstm_wp_forward.1} parent=1 // pred_region
      %s3348 = ssub.s32 16, 16
      %3349 = vsyncadd [#allocation4], %s3348
      %s3351 = sshll.u32 [#allocation5], 4
      %s3352 = int_to_ptr.vmem [resolvable:$true] %s3351
      %3354 = dma.vmem_to_hbm [thread:$0]  %s3352, 16, %s3, [#allocation4]
    $region21: #{lstm_wp_forward.1} parent=1 // pred_fallthru
      _
    // Predicated region
    $region22: #{lstm_wp_forward.1} parent=1 // pred_check
      _
    $region23: #{lstm_wp_forward.1} parent=1 // pred_check_branch
      %3356 = sbr.rel (0) target = $region25
    $region24: #{lstm_wp_forward.1} parent=1 // pred_region
      %3357 = dma.done [#allocation4], 16
    $region25: #{lstm_wp_forward.1} parent=1 // pred_fallthru
      _
    %3358 = vsyncpa [#allocation3], 1
    %3359 = vsyncpa [#allocation4], 1

</llo_original>
